<compile_context>
chip_gen: v7x
topology: tpu7x:2x2x1
jax: 0.10.0
libtpu: 0.0.40
codegen_flags: <defaults>
</compile_context>

<pallas_src>
import functools
import numpy as np
import jax
import jax.numpy as jnp
from jax.experimental import pallas as pl
from jax.experimental.pallas import tpu as pltpu


def _pick_tile(n, cap=512):
    """Largest batch tile <= cap that satisfies the (8,128) block rule (divides n, multiple of 8),
    falling back to the full extent."""
    if n <= cap:
        return n
    t = cap - (cap % 8)
    while t >= 8:
        if n % t == 0:
            return t
        t -= 8
    return n


# ----------------------------- BatchNorm statistics (two-pass, tiled) -----------------------------
def _bn_stats_kernel(x_ref, g_ref, b_ref, scale_ref, shift_ref,
                     sum_scr, mean_scr, m2_scr, *, n_rows):
    stage = pl.program_id(0)              # 0: mean pass, 1: centered-variance pass
    t = pl.program_id(1)
    nt = pl.num_programs(1)
    rt = x_ref.shape[0]

    row = t * rt + jax.lax.broadcasted_iota(jnp.int32, x_ref.shape, 0)
    valid = row < n_rows
    x = x_ref[...]

    @pl.when((stage == 0) & (t == 0))
    def _():
        sum_scr[...] = jnp.zeros_like(sum_scr)

    @pl.when(stage == 0)
    def _():
        sum_scr[...] += jnp.sum(jnp.where(valid, x, 0.0), axis=0, keepdims=True)

    @pl.when((stage == 0) & (t == nt - 1))
    def _():
        mean_scr[...] = sum_scr[...] * (1.0 / n_rows)

    @pl.when((stage == 1) & (t == 0))
    def _():
        m2_scr[...] = jnp.zeros_like(m2_scr)

    @pl.when(stage == 1)
    def _():
        xc = jnp.where(valid, x - mean_scr[...], 0.0)
        m2_scr[...] += jnp.sum(xc * xc, axis=0, keepdims=True)

    @pl.when((stage == 1) & (t == nt - 1))
    def _():
        var = m2_scr[...] * (1.0 / n_rows)          # biased variance (PyTorch BN normalization)
        inv = jax.lax.rsqrt(var + 1e-5)
        sc = g_ref[...] * inv
        scale_ref[...] = sc
        shift_ref[...] = b_ref[...] - mean_scr[...] * sc


def bn_stats(x_rows, gamma, beta):
    R, d = x_rows.shape
    row_tile = R if R <= 4096 else 2048
    n_tiles = pl.cdiv(R, row_tile)
    kernel = functools.partial(_bn_stats_kernel, n_rows=R)
    return pl.pallas_call(
        kernel,
        out_shape=(jax.ShapeDtypeStruct((1, d), jnp.float32),
                   jax.ShapeDtypeStruct((1, d), jnp.float32)),
        grid=(2, n_tiles),
        in_specs=[pl.BlockSpec((row_tile, d), lambda st, t: (t, 0)),
                  pl.BlockSpec((1, d), lambda st, t: (0, 0)),
                  pl.BlockSpec((1, d), lambda st, t: (0, 0))],
        out_specs=(pl.BlockSpec((1, d), lambda st, t: (0, 0)),
                   pl.BlockSpec((1, d), lambda st, t: (0, 0))),
        scratch_shapes=[pltpu.VMEM((1, d), jnp.float32),
                        pltpu.VMEM((1, d), jnp.float32),
                        pltpu.VMEM((1, d), jnp.float32)],
        compiler_params=pltpu.CompilerParams(
            dimension_semantics=("arbitrary", "arbitrary")),
    )(x_rows, gamma, beta)


# ------------- fused: BN normalize + level-2 log-signature + LSTM input projection -------------
def _logsig_gates_kernel(starts_ref, lens_ref, path_ref, scale_ref, shift_ref,
                         wsp_ref, winc_ref, wlv_ref, o_ref, *, T, Lmax, H):
    d = path_ref.shape[-1]
    s = pl.program_id(1)
    start = starts_ref[s]
    seg_len = lens_ref[s]
    c0 = jnp.minimum(start, T - Lmax)     # clamp so the Lmax-window stays inside the path
    off = start - c0                      # local index of the segment start inside the window

    scale = scale_ref[...]                # (1, d) BatchNorm affine
    shift = shift_ref[...]

    w = path_ref[:, pl.ds(c0, Lmax), :] * scale + shift                 # (tb, Lmax, d), BN applied
    sp = path_ref[:, pl.ds(start, 1), :][:, 0, :] * scale + shift       # (tb, d) segment start point

    delta = w[:, 1:, :] - w[:, :-1, :]                                  # (tb, Lmax-1, d) increments
    rel = w[:, :-1, :] - sp[:, None, :]                                 # (tb, Lmax-1, d) X_l - X_0
    j = jax.lax.broadcasted_iota(jnp.int32, (1, Lmax - 1, d), 1)
    valid = (j >= off) & (j < off + seg_len - 1)
    delta = jnp.where(valid, delta, 0.0)                                # mask rows outside the segment

    inc = jnp.sum(delta, axis=1)                                        # (tb, d) level-1 log-signature
    # per-sample Gram matrix M = rel^T @ delta ; Levy area A = 0.5 * (M - M^T)
    m = jax.lax.dot_general(rel, delta, (((1,), (1,)), ((0,), (0,))),
                            preferred_element_type=jnp.float32)         # (tb, d, d)

    gates = (jnp.dot(sp, wsp_ref[...], preferred_element_type=jnp.float32)
             + jnp.dot(inc, winc_ref[...], preferred_element_type=jnp.float32))

    # Level-2 contribution via the antisymmetric weight extension:
    #   sum_{i<j} A_ij w_ij == 0.5 * sum_{i,j} M_ij Wfull_ij
    # (accumulated with per-row dots to avoid an unaligned in-kernel reshape of M).
    lev = jnp.zeros_like(gates)
    for i in range(d):
        lev = lev + jnp.dot(m[:, i, :], wlv_ref[i],
                            preferred_element_type=jnp.float32)
    gates = gates + 0.5 * lev                                           # (tb, 4H), PyTorch order [i,f,g,o]

    for k in range(4):                                                  # gate-major store for the LSTM
        o_ref[0, k] = gates[:, k * H:(k + 1) * H]


def logsig_gates(path, scale, shift, starts, lens, w_sp, w_inc, w_lev_full, *, Lmax, H):
    B, T, d = path.shape
    S = int(starts.shape[0])
    G4 = 4 * H
    tile_b = _pick_tile(B)
    n_bt = B // tile_b
    kernel = functools.partial(_logsig_gates_kernel, T=T, Lmax=Lmax, H=H)
    return pl.pallas_call(
        kernel,
        out_shape=jax.ShapeDtypeStruct((S, 4, B, H), jnp.float32),
        grid_spec=pltpu.PrefetchScalarGridSpec(
            num_scalar_prefetch=2,
            grid=(n_bt, S),
            in_specs=[pl.BlockSpec((tile_b, T, d), lambda bt, s, st, ln: (bt, 0, 0)),
                      pl.BlockSpec((1, d), lambda bt, s, st, ln: (0, 0)),
                      pl.BlockSpec((1, d), lambda bt, s, st, ln: (0, 0)),
                      pl.BlockSpec((d, G4), lambda bt, s, st, ln: (0, 0)),
                      pl.BlockSpec((d, G4), lambda bt, s, st, ln: (0, 0)),
                      pl.BlockSpec((d, d, G4), lambda bt, s, st, ln: (0, 0, 0))],
            out_specs=pl.BlockSpec((1, 4, tile_b, H), lambda bt, s, st, ln: (s, 0, bt, 0)),
        ),
        compiler_params=pltpu.CompilerParams(
            dimension_semantics=("parallel", "arbitrary")),
    )(starts, lens, path, scale, shift, w_sp, w_inc, w_lev_full)


# ----------------------------- LSTM over segments (recurrence only) -----------------------------
def _lstm_kernel(gin_ref, whh_ref, b_ref, o_ref, h_scr, c_scr):
    @pl.when(pl.program_id(1) == 0)
    def _():
        h_scr[...] = jnp.zeros_like(h_scr)
        c_scr[...] = jnp.zeros_like(c_scr)

    h = h_scr[...]
    gin = gin_ref[0]                                   # (4, tb, H), precomputed x @ W_ih (gate-major)
    b = b_ref[...]                                     # (4, 1, H)
    g = [gin[k] + jnp.dot(h, whh_ref[k], preferred_element_type=jnp.float32) + b[k]
         for k in range(4)]                            # PyTorch gate order [i, f, g, o]
    i_g = jax.nn.sigmoid(g[0])
    f_g = jax.nn.sigmoid(g[1])
    c_g = jnp.tanh(g[2])
    o_g = jax.nn.sigmoid(g[3])
    c = f_g * c_scr[...] + i_g * c_g
    h_new = o_g * jnp.tanh(c)
    c_scr[...] = c
    h_scr[...] = h_new
    o_ref[0] = h_new


def lstm_forward(gates_in, w_hh_g, b_g):
    S, _, B, H = gates_in.shape
    tile_b = _pick_tile(B)
    n_bt = B // tile_b
    return pl.pallas_call(
        _lstm_kernel,
        out_shape=jax.ShapeDtypeStruct((S, B, H), jnp.float32),
        grid=(n_bt, S),
        in_specs=[pl.BlockSpec((1, 4, tile_b, H), lambda bt, s: (s, 0, bt, 0)),
                  pl.BlockSpec((4, H, H), lambda bt, s: (0, 0, 0)),
                  pl.BlockSpec((4, 1, H), lambda bt, s: (0, 0, 0))],
        out_specs=pl.BlockSpec((1, tile_b, H), lambda bt, s: (s, bt, 0)),
        scratch_shapes=[pltpu.VMEM((tile_b, H), jnp.float32),
                        pltpu.VMEM((tile_b, H), jnp.float32)],
        compiler_params=pltpu.CompilerParams(
            dimension_semantics=("parallel", "arbitrary")),
    )(gates_in, w_hh_g, b_g)


# ----------------------------- person mean + flatten + fully connected -----------------------------
def _fc_kernel(x_ref, p_ref, w_ref, b_ref, o_ref):
    y = jnp.dot(x_ref[...], w_ref[...], preferred_element_type=jnp.float32)   # (B, C)
    o_ref[...] = jnp.dot(p_ref[...], y, preferred_element_type=jnp.float32) + b_ref[...]


def fc_forward(x, pmat, w, b):
    B, F = x.shape
    N = pmat.shape[0]
    Cc = w.shape[1]
    return pl.pallas_call(
        _fc_kernel,
        out_shape=jax.ShapeDtypeStruct((N, Cc), jnp.float32),
        grid=(1,),
        in_specs=[pl.BlockSpec((B, F), lambda i: (0, 0)),
                  pl.BlockSpec((N, B), lambda i: (0, 0)),
                  pl.BlockSpec((F, Cc), lambda i: (0, 0)),
                  pl.BlockSpec((1, Cc), lambda i: (0, 0))],
        out_specs=pl.BlockSpec((N, Cc), lambda i: (0, 0)),
    )(x, pmat, w, b)


# ----------------------------- full model forward -----------------------------
def logsigrnn_forward(x, params, num_segments):
    N, M, C, T, V = x.shape
    B, d, S = N * M, C * V, num_segments
    H = params["w_hh"].shape[0]
    G4 = 4 * H

    # Person2Batch (person_dimension=1) + permute/reshape to a path of T points in d = C*V dims
    path = jnp.transpose(x.reshape(B, C, T, V), (0, 2, 1, 3)).reshape(B, T, d)

    # ChannelwiseBatchNorm statistics -> per-channel affine (normalization fused downstream)
    scale, shift = bn_stats(path.reshape(B * T, d), params["bn_gamma"], params["bn_beta"])

    # segment boundaries exactly as the reference Logsig-RNN code: t_vec = round(linspace(1, T, S+1))
    t_vec = np.array([int(round(v)) for v in np.linspace(1.0, float(T), S + 1)])
    starts = (t_vec[:-1] - 1).astype(np.int32)
    ends = (t_vec[1:] - 1).astype(np.int32)
    lens = (ends - starts + 1).astype(np.int32)
    Lmax = int(lens.max())

    # rearrange the LSTM input-projection weights (rows = [start(d), increment(d), Levy pairs])
    w_ih = params["w_ih"]
    w_sp, w_inc, w_lev = w_ih[:d], w_ih[d:2 * d], w_ih[2 * d:]
    iu, ju = np.triu_indices(d, k=1)
    pidx = np.zeros((d, d), np.int32)
    sgn = np.zeros((d, d), np.float32)
    pidx[iu, ju] = np.arange(iu.size, dtype=np.int32)
    sgn[iu, ju] = 1.0
    pidx[ju, iu] = np.arange(iu.size, dtype=np.int32)
    sgn[ju, iu] = -1.0
    w_lev_full = (w_lev[pidx.reshape(-1)] * sgn.reshape(-1)[:, None]).reshape(d, d, G4)

    gates_in = logsig_gates(path, scale, shift,
                            jnp.asarray(starts), jnp.asarray(lens),
                            w_sp, w_inc, w_lev_full, Lmax=Lmax, H=H)        # (S, 4, B, H)

    # LSTM over segments (gate-major recurrent weights / combined bias)
    w_hh_g = jnp.transpose(params["w_hh"].reshape(H, 4, H), (1, 0, 2))      # (4, H, H)
    b_g = params["lstm_b"].reshape(4, 1, H)                                  # (4, 1, H)
    h_seq = lstm_forward(gates_in, w_hh_g, b_g)                              # (S, B, H)

    # extract_persons (mean over persons, folded into the FC kernel) + flatten like
    # torch.flatten of (N, H, S, 1): feature order = (hidden, segment)
    hb = jnp.transpose(h_seq, (1, 2, 0)).reshape(B, H * S)
    pmat = jnp.asarray(np.kron(np.eye(N, dtype=np.float32),
                               np.full((1, M), 1.0 / M, np.float32)))        # (N, B)
    return fc_forward(hb, pmat, params["fc_w"], params["fc_b"])


def init_params(key, d, H, num_classes, S):
    In = 2 * d + (d * (d - 1)) // 2          # start point + level-1 + level-2 log-sig channels
    ks = jax.random.split(key, 8)
    u = lambda k, shape, s: jax.random.uniform(k, shape, jnp.float32, -s, s)
    bound = 1.0 / np.sqrt(H)
    bound_fc = 1.0 / np.sqrt(H * S)
    return dict(
        bn_gamma=1.0 + 0.1 * jax.random.normal(ks[0], (1, d), jnp.float32),
        bn_beta=0.1 * jax.random.normal(ks[1], (1, d), jnp.float32),
        w_ih=u(ks[2], (In, 4 * H), bound),                       # == torch weight_ih_l0.T
        w_hh=u(ks[3], (H, 4 * H), bound),                        # == torch weight_hh_l0.T
        lstm_b=u(ks[4], (1, 4 * H), bound) + u(ks[5], (1, 4 * H), bound),  # b_ih + b_hh
        fc_w=u(ks[6], (H * S, num_classes), bound_fc),           # == torch fc.weight.T
        fc_b=u(ks[7], (1, num_classes), bound_fc),
    )


if __name__ == "__main__":
    # small shapes: batch N=2, persons M=2, keypoint_dim C=3, frames T=17, landmarks V=5
    N, M, C, T, V = 2, 2, 3, 17, 5
    num_segments, lstm_channels, num_classes = 4, 32, 10
    d = C * V

    key = jax.random.PRNGKey(0)
    kx, kp = jax.random.split(key)
    x = jax.random.normal(kx, (N, M, C, T, V), jnp.float32)
    params = init_params(kp, d, lstm_channels, num_classes, num_segments)

    fwd = jax.jit(functools.partial(logsigrnn_forward, num_segments=num_segments))
    out = jax.block_until_ready(fwd(x, params))

    assert out.shape == (N, num_classes), out.shape
    assert bool(jnp.all(jnp.isfinite(out)))
    print("KERNEL_OK")
</pallas_src>

<mosaic_0001>
module attributes {stable_mosaic.version = 11 : i64} {
  func.func @_bn_stats_kernel(%arg0: i32, %arg1: i32, %arg2: memref<68x15xf32, #tpu.memory_space<vmem>>, %arg3: memref<1x15xf32, #tpu.memory_space<vmem>>, %arg4: memref<1x15xf32, #tpu.memory_space<vmem>>, %arg5: memref<1x15xf32, #tpu.memory_space<vmem>>, %arg6: memref<1x15xf32, #tpu.memory_space<vmem>>, %arg7: memref<1x15xf32, #tpu.memory_space<vmem>>, %arg8: memref<1x15xf32, #tpu.memory_space<vmem>>, %arg9: memref<1x15xf32, #tpu.memory_space<vmem>>) attributes {dimension_semantics = [#tpu.dimension_semantics<arbitrary>, #tpu.dimension_semantics<arbitrary>], iteration_bounds = array<i64: 2, 1>, scalar_prefetch = 0 : i64, scratch_operands = 3 : i64, tpu.core_type = #tpu.core_type<tc>, window_params = [{transform_indices = @transform_0, window_bounds = array<i64: 68, 15>}, {pipeline_mode = #tpu.pipeline_mode<synchronous>, transform_indices = @transform_1, window_bounds = array<i64: 1, 15>}, {pipeline_mode = #tpu.pipeline_mode<synchronous>, transform_indices = @transform_2, window_bounds = array<i64: 1, 15>}, {pipeline_mode = #tpu.pipeline_mode<synchronous>, transform_indices = @transform_3, window_bounds = array<i64: 1, 15>}, {pipeline_mode = #tpu.pipeline_mode<synchronous>, transform_indices = @transform_4, window_bounds = array<i64: 1, 15>}]} {
    %c68_i32 = arith.constant 68 : i32
    %0 = arith.muli %arg1, %c68_i32 : i32
    %1 = tpu.iota {dimensions = array<i32: 0>} : vector<68x15xi32>
    %2 = vector.broadcast %0 : i32 to vector<68x15xi32>
    %3 = arith.addi %2, %1 : vector<68x15xi32>
    %c68_i32_0 = arith.constant 68 : i32
    %4 = vector.broadcast %c68_i32_0 : i32 to vector<68x15xi32>
    %5 = arith.cmpi slt, %3, %4 : vector<68x15xi32>
    %c0 = arith.constant 0 : index
    %c0_1 = arith.constant 0 : index
    %6 = vector.load %arg2[%c0, %c0_1] : memref<68x15xf32, #tpu.memory_space<vmem>>, vector<68x15xf32>
    %c0_i32 = arith.constant 0 : i32
    %7 = arith.cmpi eq, %arg0, %c0_i32 : i32
    %c0_i32_2 = arith.constant 0 : i32
    %8 = arith.cmpi eq, %arg1, %c0_i32_2 : i32
    %9 = arith.andi %7, %8 : i1
    %10 = arith.extui %9 : i1 to i32
    %c0_i32_3 = arith.constant 0 : i32
    %11 = arith.cmpi ne, %10, %c0_i32_3 : i32
    scf.if %11 {
      %cst = arith.constant 0.000000e+00 : f32
      %33 = vector.broadcast %cst : f32 to vector<1x15xf32>
      %c0_16 = arith.constant 0 : index
      %c0_17 = arith.constant 0 : index
      %34 = vector.load %arg7[%c0_16, %c0_17] : memref<1x15xf32, #tpu.memory_space<vmem>>, vector<1x15xf32>
      tpu.vector_store %arg7[%c0_16, %c0_17], %33 {strides = array<i32>} : memref<1x15xf32, #tpu.memory_space<vmem>>, vector<1x15xf32>,
    } else {
    }
    %c0_i32_4 = arith.constant 0 : i32
    %12 = arith.cmpi eq, %arg0, %c0_i32_4 : i32
    %13 = arith.extui %12 : i1 to i32
    %c0_i32_5 = arith.constant 0 : i32
    %14 = arith.cmpi ne, %13, %c0_i32_5 : i32
    scf.if %14 {
      %c0_16 = arith.constant 0 : index
      %c0_17 = arith.constant 0 : index
      %33 = vector.load %arg7[%c0_16, %c0_17] : memref<1x15xf32, #tpu.memory_space<vmem>>, vector<1x15xf32>
      %cst = arith.constant 0.000000e+00 : f32
      %34 = vector.broadcast %cst : f32 to vector<68x15xf32>
      %35 = arith.select %5, %6, %34 : vector<68x15xi1>, vector<68x15xf32>
      %cst_18 = arith.constant dense<0.000000e+00> : vector<15xf32>
      %36 = vector.multi_reduction <add>, %35, %cst_18 [0] : vector<68x15xf32> to vector<15xf32>
      %37 = vector.shape_cast %36 : vector<15xf32> to vector<1x15xf32>
      %38 = arith.addf %33, %37 : vector<1x15xf32>
      %c0_19 = arith.constant 0 : index
      %c0_20 = arith.constant 0 : index
      %39 = vector.load %arg7[%c0_19, %c0_20] : memref<1x15xf32, #tpu.memory_space<vmem>>, vector<1x15xf32>
      tpu.vector_store %arg7[%c0_19, %c0_20], %38 {strides = array<i32>} : memref<1x15xf32, #tpu.memory_space<vmem>>, vector<1x15xf32>,
    } else {
    }
    %c0_i32_6 = arith.constant 0 : i32
    %15 = arith.cmpi eq, %arg0, %c0_i32_6 : i32
    %c0_i32_7 = arith.constant 0 : i32
    %16 = arith.cmpi eq, %arg1, %c0_i32_7 : i32
    %17 = arith.andi %15, %16 : i1
    %18 = arith.extui %17 : i1 to i32
    %c0_i32_8 = arith.constant 0 : i32
    %19 = arith.cmpi ne, %18, %c0_i32_8 : i32
    scf.if %19 {
      %c0_16 = arith.constant 0 : index
      %c0_17 = arith.constant 0 : index
      %33 = vector.load %arg7[%c0_16, %c0_17] : memref<1x15xf32, #tpu.memory_space<vmem>>, vector<1x15xf32>
      %cst = arith.constant 0.0147058824 : f32
      %34 = vector.broadcast %cst : f32 to vector<1x15xf32>
      %35 = arith.mulf %33, %34 : vector<1x15xf32>
      %c0_18 = arith.constant 0 : index
      %c0_19 = arith.constant 0 : index
      %36 = vector.load %arg8[%c0_18, %c0_19] : memref<1x15xf32, #tpu.memory_space<vmem>>, vector<1x15xf32>
      tpu.vector_store %arg8[%c0_18, %c0_19], %35 {strides = array<i32>} : memref<1x15xf32, #tpu.memory_space<vmem>>, vector<1x15xf32>,
    } else {
    }
    %c1_i32 = arith.constant 1 : i32
    %20 = arith.cmpi eq, %arg0, %c1_i32 : i32
    %c0_i32_9 = arith.constant 0 : i32
    %21 = arith.cmpi eq, %arg1, %c0_i32_9 : i32
    %22 = arith.andi %20, %21 : i1
    %23 = arith.extui %22 : i1 to i32
    %c0_i32_10 = arith.constant 0 : i32
    %24 = arith.cmpi ne, %23, %c0_i32_10 : i32
    scf.if %24 {
      %cst = arith.constant 0.000000e+00 : f32
      %33 = vector.broadcast %cst : f32 to vector<1x15xf32>
      %c0_16 = arith.constant 0 : index
      %c0_17 = arith.constant 0 : index
      %34 = vector.load %arg9[%c0_16, %c0_17] : memref<1x15xf32, #tpu.memory_space<vmem>>, vector<1x15xf32>
      tpu.vector_store %arg9[%c0_16, %c0_17], %33 {strides = array<i32>} : memref<1x15xf32, #tpu.memory_space<vmem>>, vector<1x15xf32>,
    } else {
    }
    %c1_i32_11 = arith.constant 1 : i32
    %25 = arith.cmpi eq, %arg0, %c1_i32_11 : i32
    %26 = arith.extui %25 : i1 to i32
    %c0_i32_12 = arith.constant 0 : i32
    %27 = arith.cmpi ne, %26, %c0_i32_12 : i32
    scf.if %27 {
      %c0_16 = arith.constant 0 : index
      %c0_17 = arith.constant 0 : index
      %33 = vector.load %arg8[%c0_16, %c0_17] : memref<1x15xf32, #tpu.memory_space<vmem>>, vector<1x15xf32>
      %34 = vector.broadcast %33 : vector<1x15xf32> to vector<68x15xf32>
      %35 = arith.subf %6, %34 : vector<68x15xf32>
      %cst = arith.constant 0.000000e+00 : f32
      %36 = vector.broadcast %cst : f32 to vector<68x15xf32>
      %37 = arith.select %5, %35, %36 : vector<68x15xi1>, vector<68x15xf32>
      %c0_18 = arith.constant 0 : index
      %c0_19 = arith.constant 0 : index
      %38 = vector.load %arg9[%c0_18, %c0_19] : memref<1x15xf32, #tpu.memory_space<vmem>>, vector<1x15xf32>
      %39 = arith.mulf %37, %37 : vector<68x15xf32>
      %cst_20 = arith.constant dense<0.000000e+00> : vector<15xf32>
      %40 = vector.multi_reduction <add>, %39, %cst_20 [0] : vector<68x15xf32> to vector<15xf32>
      %41 = vector.shape_cast %40 : vector<15xf32> to vector<1x15xf32>
      %42 = arith.addf %38, %41 : vector<1x15xf32>
      %c0_21 = arith.constant 0 : index
      %c0_22 = arith.constant 0 : index
      %43 = vector.load %arg9[%c0_21, %c0_22] : memref<1x15xf32, #tpu.memory_space<vmem>>, vector<1x15xf32>
      tpu.vector_store %arg9[%c0_21, %c0_22], %42 {strides = array<i32>} : memref<1x15xf32, #tpu.memory_space<vmem>>, vector<1x15xf32>,
    } else {
    }
    %c1_i32_13 = arith.constant 1 : i32
    %28 = arith.cmpi eq, %arg0, %c1_i32_13 : i32
    %c0_i32_14 = arith.constant 0 : i32
    %29 = arith.cmpi eq, %arg1, %c0_i32_14 : i32
    %30 = arith.andi %28, %29 : i1
    %31 = arith.extui %30 : i1 to i32
    %c0_i32_15 = arith.constant 0 : i32
    %32 = arith.cmpi ne, %31, %c0_i32_15 : i32
    scf.if %32 {
      %c0_16 = arith.constant 0 : index
      %c0_17 = arith.constant 0 : index
      %33 = vector.load %arg9[%c0_16, %c0_17] : memref<1x15xf32, #tpu.memory_space<vmem>>, vector<1x15xf32>
      %cst = arith.constant 0.0147058824 : f32
      %34 = vector.broadcast %cst : f32 to vector<1x15xf32>
      %35 = arith.mulf %33, %34 : vector<1x15xf32>
      %cst_18 = arith.constant 9.99999974E-6 : f32
      %36 = vector.broadcast %cst_18 : f32 to vector<1x15xf32>
      %37 = arith.addf %35, %36 : vector<1x15xf32>
      %38 = math.rsqrt %37 : vector<1x15xf32>
      %c0_19 = arith.constant 0 : index
      %c0_20 = arith.constant 0 : index
      %39 = vector.load %arg3[%c0_19, %c0_20] : memref<1x15xf32, #tpu.memory_space<vmem>>, vector<1x15xf32>
      %40 = arith.mulf %39, %38 : vector<1x15xf32>
      %c0_21 = arith.constant 0 : index
      %c0_22 = arith.constant 0 : index
      %41 = vector.load %arg5[%c0_21, %c0_22] : memref<1x15xf32, #tpu.memory_space<vmem>>, vector<1x15xf32>
      tpu.vector_store %arg5[%c0_21, %c0_22], %40 {strides = array<i32>} : memref<1x15xf32, #tpu.memory_space<vmem>>, vector<1x15xf32>,
      %c0_23 = arith.constant 0 : index
      %c0_24 = arith.constant 0 : index
      %42 = vector.load %arg4[%c0_23, %c0_24] : memref<1x15xf32, #tpu.memory_space<vmem>>, vector<1x15xf32>
      %c0_25 = arith.constant 0 : index
      %c0_26 = arith.constant 0 : index
      %43 = vector.load %arg8[%c0_25, %c0_26] : memref<1x15xf32, #tpu.memory_space<vmem>>, vector<1x15xf32>
      %44 = arith.mulf %43, %40 : vector<1x15xf32>
      %45 = arith.subf %42, %44 : vector<1x15xf32>
      %c0_27 = arith.constant 0 : index
      %c0_28 = arith.constant 0 : index
      %46 = vector.load %arg6[%c0_27, %c0_28] : memref<1x15xf32, #tpu.memory_space<vmem>>, vector<1x15xf32>
      tpu.vector_store %arg6[%c0_27, %c0_28], %45 {strides = array<i32>} : memref<1x15xf32, #tpu.memory_space<vmem>>, vector<1x15xf32>,
    } else {
    }
    return
  }
  func.func @transform_0(%arg0: i32, %arg1: i32) -> (i32, i32) {
    %c0_i32 = arith.constant 0 : i32
    %c0_i32_0 = arith.constant 0 : i32
    return %arg1, %c0_i32 : i32, i32
  }
  func.func @transform_1(%arg0: i32, %arg1: i32) -> (i32, i32) {
    %c0_i32 = arith.constant 0 : i32
    %c0_i32_0 = arith.constant 0 : i32
    %c0_i32_1 = arith.constant 0 : i32
    return %c0_i32, %c0_i32_0 : i32, i32
  }
  func.func @transform_2(%arg0: i32, %arg1: i32) -> (i32, i32) {
    %c0_i32 = arith.constant 0 : i32
    %c0_i32_0 = arith.constant 0 : i32
    %c0_i32_1 = arith.constant 0 : i32
    return %c0_i32, %c0_i32_0 : i32, i32
  }
  func.func @transform_3(%arg0: i32, %arg1: i32) -> (i32, i32) {
    %c0_i32 = arith.constant 0 : i32
    %c0_i32_0 = arith.constant 0 : i32
    %c0_i32_1 = arith.constant 0 : i32
    return %c0_i32, %c0_i32_0 : i32, i32
  }
  func.func @transform_4(%arg0: i32, %arg1: i32) -> (i32, i32) {
    %c0_i32 = arith.constant 0 : i32
    %c0_i32_0 = arith.constant 0 : i32
    %c0_i32_1 = arith.constant 0 : i32
    return %c0_i32, %c0_i32_0 : i32, i32
  }
}

module attributes {stable_mosaic.version = 11 : i64} {
  func.func @_logsig_gates_kernel(%arg0: i32, %arg1: i32, %arg2: memref<4xi32, #tpu.memory_space<smem>>, %arg3: memref<4xi32, #tpu.memory_space<smem>>, %arg4: memref<4x17x15xf32, #tpu.memory_space<vmem>>, %arg5: memref<1x15xf32, #tpu.memory_space<vmem>>, %arg6: memref<1x15xf32, #tpu.memory_space<vmem>>, %arg7: memref<15x128xf32, #tpu.memory_space<vmem>>, %arg8: memref<15x128xf32, #tpu.memory_space<vmem>>, %arg9: memref<15x15x128xf32, #tpu.memory_space<vmem>>, %arg10: memref<1x4x4x32xf32, #tpu.memory_space<vmem>>) attributes {dimension_semantics = [#tpu.dimension_semantics<parallel>, #tpu.dimension_semantics<arbitrary>], iteration_bounds = array<i64: 1, 4>, scalar_prefetch = 2 : i64, scratch_operands = 0 : i64, tpu.core_type = #tpu.core_type<tc>, window_params = [{transform_indices = @transform_0, window_bounds = array<i64: 4, 17, 15>}, {pipeline_mode = #tpu.pipeline_mode<synchronous>, transform_indices = @transform_1, window_bounds = array<i64: 1, 15>}, {pipeline_mode = #tpu.pipeline_mode<synchronous>, transform_indices = @transform_2, window_bounds = array<i64: 1, 15>}, {pipeline_mode = #tpu.pipeline_mode<synchronous>, transform_indices = @transform_3, window_bounds = array<i64: 15, 128>}, {pipeline_mode = #tpu.pipeline_mode<synchronous>, transform_indices = @transform_4, window_bounds = array<i64: 15, 128>}, {pipeline_mode = #tpu.pipeline_mode<synchronous>, transform_indices = @transform_5, window_bounds = array<i64: 15, 15, 128>}, {transform_indices = @transform_6, window_bounds = array<i64: 1, 4, 4, 32>}]} {
    %0 = arith.index_cast %arg1 : i32 to index
    %1 = memref.load %arg2[%0] : memref<4xi32, #tpu.memory_space<smem>>
    %2 = arith.index_cast %arg1 : i32 to index
    %3 = memref.load %arg3[%2] : memref<4xi32, #tpu.memory_space<smem>>
    %c12_i32 = arith.constant 12 : i32
    %4 = arith.minsi %1, %c12_i32 : i32
    %5 = arith.subi %1, %4 : i32
    %c0 = arith.constant 0 : index
    %c0_0 = arith.constant 0 : index
    %6 = vector.load %arg5[%c0, %c0_0] : memref<1x15xf32, #tpu.memory_space<vmem>>, vector<1x15xf32>
    %c0_1 = arith.constant 0 : index
    %c0_2 = arith.constant 0 : index
    %7 = vector.load %arg6[%c0_1, %c0_2] : memref<1x15xf32, #tpu.memory_space<vmem>>, vector<1x15xf32>
    %c0_3 = arith.constant 0 : index
    %8 = arith.index_cast %4 : i32 to index
    %c0_4 = arith.constant 0 : index
    %9 = vector.load %arg4[%c0_3, %8, %c0_4] : memref<4x17x15xf32, #tpu.memory_space<vmem>>, vector<4x5x15xf32>
    %10 = vector.shape_cast %6 : vector<1x15xf32> to vector<1x1x15xf32>
    %11 = vector.broadcast %10 : vector<1x1x15xf32> to vector<4x5x15xf32>
    %12 = arith.mulf %9, %11 : vector<4x5x15xf32>
    %13 = vector.shape_cast %7 : vector<1x15xf32> to vector<1x1x15xf32>
    %14 = vector.broadcast %13 : vector<1x1x15xf32> to vector<4x5x15xf32>
    %15 = arith.addf %12, %14 : vector<4x5x15xf32>
    %c0_5 = arith.constant 0 : index
    %16 = arith.index_cast %1 : i32 to index
    %c0_6 = arith.constant 0 : index
    %17 = vector.load %arg4[%c0_5, %16, %c0_6] : memref<4x17x15xf32, #tpu.memory_space<vmem>>, vector<4x1x15xf32>
    %18 = vector.shape_cast %17 : vector<4x1x15xf32> to vector<4x15xf32>
    %19 = vector.broadcast %6 : vector<1x15xf32> to vector<4x15xf32>
    %20 = arith.mulf %18, %19 : vector<4x15xf32>
    %21 = vector.broadcast %7 : vector<1x15xf32> to vector<4x15xf32>
    %22 = arith.addf %20, %21 : vector<4x15xf32>
    %23 = vector.extract_strided_slice %15 {offsets = [0, 1, 0], sizes = [4, 4, 15], strides = [1, 1, 1]} : vector<4x5x15xf32> to vector<4x4x15xf32>
    %24 = vector.extract_strided_slice %15 {offsets = [0, 0, 0], sizes = [4, 4, 15], strides = [1, 1, 1]} : vector<4x5x15xf32> to vector<4x4x15xf32>
    %25 = arith.subf %23, %24 : vector<4x4x15xf32>
    %26 = vector.extract_strided_slice %15 {offsets = [0, 0, 0], sizes = [4, 4, 15], strides = [1, 1, 1]} : vector<4x5x15xf32> to vector<4x4x15xf32>
    %27 = vector.shape_cast %22 : vector<4x15xf32> to vector<4x1x15xf32>
    %28 = vector.broadcast %27 : vector<4x1x15xf32> to vector<4x4x15xf32>
    %29 = arith.subf %26, %28 : vector<4x4x15xf32>
    %30 = tpu.iota {dimensions = array<i32: 1>} : vector<1x4x15xi32>
    %31 = vector.broadcast %5 : i32 to vector<1x4x15xi32>
    %32 = arith.cmpi sge, %30, %31 : vector<1x4x15xi32>
    %33 = arith.addi %5, %3 : i32
    %c1_i32 = arith.constant 1 : i32
    %34 = arith.subi %33, %c1_i32 : i32
    %35 = vector.broadcast %34 : i32 to vector<1x4x15xi32>
    %36 = arith.cmpi slt, %30, %35 : vector<1x4x15xi32>
    %37 = arith.andi %32, %36 : vector<1x4x15xi1>
    %cst = arith.constant 0.000000e+00 : f32
    %38 = vector.shape_cast %37 : vector<1x4x15xi1> to vector<1x4x15xi1>
    %39 = vector.broadcast %38 : vector<1x4x15xi1> to vector<4x4x15xi1>
    %40 = vector.broadcast %cst : f32 to vector<4x4x15xf32>
    %41 = arith.select %39, %25, %40 : vector<4x4x15xi1>, vector<4x4x15xf32>
    %cst_7 = arith.constant dense<0.000000e+00> : vector<4x15xf32>
    %42 = vector.multi_reduction <add>, %41, %cst_7 [1] : vector<4x4x15xf32> to vector<4x15xf32>
    %cst_8 = arith.constant dense<0.000000e+00> : vector<4x15x15xf32>
    %43 = tpu.matmul %29, %41, %cst_8 {dimension_numbers = #tpu.dot_dimension_numbers<[1], [1], [2], [2], [0, 0, 0, 2, 1, 2], [0], [0]>} : vector<4x4x15xf32>, vector<4x4x15xf32>, vector<4x15x15xf32> -> vector<4x15x15xf32>
    %c0_9 = arith.constant 0 : index
    %c0_10 = arith.constant 0 : index
    %44 = vector.load %arg7[%c0_9, %c0_10] : memref<15x128xf32, #tpu.memory_space<vmem>>, vector<15x128xf32>
    %cst_11 = arith.constant dense<0.000000e+00> : vector<4x128xf32>
    %45 = tpu.matmul %22, %44, %cst_11 {dimension_numbers = #tpu.dot_dimension_numbers<[1], [0], [0], [1], [0, 0, 1, 1], [], []>} : vector<4x15xf32>, vector<15x128xf32>, vector<4x128xf32> -> vector<4x128xf32>
    %c0_12 = arith.constant 0 : index
    %c0_13 = arith.constant 0 : index
    %46 = vector.load %arg8[%c0_12, %c0_13] : memref<15x128xf32, #tpu.memory_space<vmem>>, vector<15x128xf32>
    %cst_14 = arith.constant dense<0.000000e+00> : vector<4x128xf32>
    %47 = tpu.matmul %42, %46, %cst_14 {dimension_numbers = #tpu.dot_dimension_numbers<[1], [0], [0], [1], [0, 0, 1, 1], [], []>} : vector<4x15xf32>, vector<15x128xf32>, vector<4x128xf32> -> vector<4x128xf32>
    %48 = arith.addf %45, %47 : vector<4x128xf32>
    %cst_15 = arith.constant 0.000000e+00 : f32
    %49 = vector.broadcast %cst_15 : f32 to vector<4x128xf32>
    %50 = vector.extract_strided_slice %43 {offsets = [0, 0, 0], sizes = [4, 1, 15], strides = [1, 1, 1]} : vector<4x15x15xf32> to vector<4x1x15xf32>
    %51 = vector.shape_cast %50 : vector<4x1x15xf32> to vector<4x15xf32>
    %c0_16 = arith.constant 0 : index
    %c0_17 = arith.constant 0 : index
    %c0_18 = arith.constant 0 : index
    %52 = vector.load %arg9[%c0_16, %c0_17, %c0_18] : memref<15x15x128xf32, #tpu.memory_space<vmem>>, vector<1x15x128xf32>
    %53 = vector.shape_cast %52 : vector<1x15x128xf32> to vector<15x128xf32>
    %cst_19 = arith.constant dense<0.000000e+00> : vector<4x128xf32>
    %54 = tpu.matmul %51, %53, %cst_19 {dimension_numbers = #tpu.dot_dimension_numbers<[1], [0], [0], [1], [0, 0, 1, 1], [], []>} : vector<4x15xf32>, vector<15x128xf32>, vector<4x128xf32> -> vector<4x128xf32>
    %55 = arith.addf %49, %54 : vector<4x128xf32>
    %56 = vector.extract_strided_slice %43 {offsets = [0, 1, 0], sizes = [4, 1, 15], strides = [1, 1, 1]} : vector<4x15x15xf32> to vector<4x1x15xf32>
    %57 = vector.shape_cast %56 : vector<4x1x15xf32> to vector<4x15xf32>
    %c1 = arith.constant 1 : index
    %c0_20 = arith.constant 0 : index
    %c0_21 = arith.constant 0 : index
    %58 = vector.load %arg9[%c1, %c0_20, %c0_21] : memref<15x15x128xf32, #tpu.memory_space<vmem>>, vector<1x15x128xf32>
    %59 = vector.shape_cast %58 : vector<1x15x128xf32> to vector<15x128xf32>
    %cst_22 = arith.constant dense<0.000000e+00> : vector<4x128xf32>
    %60 = tpu.matmul %57, %59, %cst_22 {dimension_numbers = #tpu.dot_dimension_numbers<[1], [0], [0], [1], [0, 0, 1, 1], [], []>} : vector<4x15xf32>, vector<15x128xf32>, vector<4x128xf32> -> vector<4x128xf32>
    %61 = arith.addf %55, %60 : vector<4x128xf32>
    %62 = vector.extract_strided_slice %43 {offsets = [0, 2, 0], sizes = [4, 1, 15], strides = [1, 1, 1]} : vector<4x15x15xf32> to vector<4x1x15xf32>
    %63 = vector.shape_cast %62 : vector<4x1x15xf32> to vector<4x15xf32>
    %c2 = arith.constant 2 : index
    %c0_23 = arith.constant 0 : index
    %c0_24 = arith.constant 0 : index
    %64 = vector.load %arg9[%c2, %c0_23, %c0_24] : memref<15x15x128xf32, #tpu.memory_space<vmem>>, vector<1x15x128xf32>
    %65 = vector.shape_cast %64 : vector<1x15x128xf32> to vector<15x128xf32>
    %cst_25 = arith.constant dense<0.000000e+00> : vector<4x128xf32>
    %66 = tpu.matmul %63, %65, %cst_25 {dimension_numbers = #tpu.dot_dimension_numbers<[1], [0], [0], [1], [0, 0, 1, 1], [], []>} : vector<4x15xf32>, vector<15x128xf32>, vector<4x128xf32> -> vector<4x128xf32>
    %67 = arith.addf %61, %66 : vector<4x128xf32>
    %68 = vector.extract_strided_slice %43 {offsets = [0, 3, 0], sizes = [4, 1, 15], strides = [1, 1, 1]} : vector<4x15x15xf32> to vector<4x1x15xf32>
    %69 = vector.shape_cast %68 : vector<4x1x15xf32> to vector<4x15xf32>
    %c3 = arith.constant 3 : index
    %c0_26 = arith.constant 0 : index
    %c0_27 = arith.constant 0 : index
    %70 = vector.load %arg9[%c3, %c0_26, %c0_27] : memref<15x15x128xf32, #tpu.memory_space<vmem>>, vector<1x15x128xf32>
    %71 = vector.shape_cast %70 : vector<1x15x128xf32> to vector<15x128xf32>
    %cst_28 = arith.constant dense<0.000000e+00> : vector<4x128xf32>
    %72 = tpu.matmul %69, %71, %cst_28 {dimension_numbers = #tpu.dot_dimension_numbers<[1], [0], [0], [1], [0, 0, 1, 1], [], []>} : vector<4x15xf32>, vector<15x128xf32>, vector<4x128xf32> -> vector<4x128xf32>
    %73 = arith.addf %67, %72 : vector<4x128xf32>
    %74 = vector.extract_strided_slice %43 {offsets = [0, 4, 0], sizes = [4, 1, 15], strides = [1, 1, 1]} : vector<4x15x15xf32> to vector<4x1x15xf32>
    %75 = vector.shape_cast %74 : vector<4x1x15xf32> to vector<4x15xf32>
    %c4 = arith.constant 4 : index
    %c0_29 = arith.constant 0 : index
    %c0_30 = arith.constant 0 : index
    %76 = vector.load %arg9[%c4, %c0_29, %c0_30] : memref<15x15x128xf32, #tpu.memory_space<vmem>>, vector<1x15x128xf32>
    %77 = vector.shape_cast %76 : vector<1x15x128xf32> to vector<15x128xf32>
    %cst_31 = arith.constant dense<0.000000e+00> : vector<4x128xf32>
    %78 = tpu.matmul %75, %77, %cst_31 {dimension_numbers = #tpu.dot_dimension_numbers<[1], [0], [0], [1], [0, 0, 1, 1], [], []>} : vector<4x15xf32>, vector<15x128xf32>, vector<4x128xf32> -> vector<4x128xf32>
    %79 = arith.addf %73, %78 : vector<4x128xf32>
    %80 = vector.extract_strided_slice %43 {offsets = [0, 5, 0], sizes = [4, 1, 15], strides = [1, 1, 1]} : vector<4x15x15xf32> to vector<4x1x15xf32>
    %81 = vector.shape_cast %80 : vector<4x1x15xf32> to vector<4x15xf32>
    %c5 = arith.constant 5 : index
    %c0_32 = arith.constant 0 : index
    %c0_33 = arith.constant 0 : index
    %82 = vector.load %arg9[%c5, %c0_32, %c0_33] : memref<15x15x128xf32, #tpu.memory_space<vmem>>, vector<1x15x128xf32>
    %83 = vector.shape_cast %82 : vector<1x15x128xf32> to vector<15x128xf32>
    %cst_34 = arith.constant dense<0.000000e+00> : vector<4x128xf32>
    %84 = tpu.matmul %81, %83, %cst_34 {dimension_numbers = #tpu.dot_dimension_numbers<[1], [0], [0], [1], [0, 0, 1, 1], [], []>} : vector<4x15xf32>, vector<15x128xf32>, vector<4x128xf32> -> vector<4x128xf32>
    %85 = arith.addf %79, %84 : vector<4x128xf32>
    %86 = vector.extract_strided_slice %43 {offsets = [0, 6, 0], sizes = [4, 1, 15], strides = [1, 1, 1]} : vector<4x15x15xf32> to vector<4x1x15xf32>
    %87 = vector.shape_cast %86 : vector<4x1x15xf32> to vector<4x15xf32>
    %c6 = arith.constant 6 : index
    %c0_35 = arith.constant 0 : index
    %c0_36 = arith.constant 0 : index
    %88 = vector.load %arg9[%c6, %c0_35, %c0_36] : memref<15x15x128xf32, #tpu.memory_space<vmem>>, vector<1x15x128xf32>
    %89 = vector.shape_cast %88 : vector<1x15x128xf32> to vector<15x128xf32>
    %cst_37 = arith.constant dense<0.000000e+00> : vector<4x128xf32>
    %90 = tpu.matmul %87, %89, %cst_37 {dimension_numbers = #tpu.dot_dimension_numbers<[1], [0], [0], [1], [0, 0, 1, 1], [], []>} : vector<4x15xf32>, vector<15x128xf32>, vector<4x128xf32> -> vector<4x128xf32>
    %91 = arith.addf %85, %90 : vector<4x128xf32>
    %92 = vector.extract_strided_slice %43 {offsets = [0, 7, 0], sizes = [4, 1, 15], strides = [1, 1, 1]} : vector<4x15x15xf32> to vector<4x1x15xf32>
    %93 = vector.shape_cast %92 : vector<4x1x15xf32> to vector<4x15xf32>
    %c7 = arith.constant 7 : index
    %c0_38 = arith.constant 0 : index
    %c0_39 = arith.constant 0 : index
    %94 = vector.load %arg9[%c7, %c0_38, %c0_39] : memref<15x15x128xf32, #tpu.memory_space<vmem>>, vector<1x15x128xf32>
    %95 = vector.shape_cast %94 : vector<1x15x128xf32> to vector<15x128xf32>
    %cst_40 = arith.constant dense<0.000000e+00> : vector<4x128xf32>
    %96 = tpu.matmul %93, %95, %cst_40 {dimension_numbers = #tpu.dot_dimension_numbers<[1], [0], [0], [1], [0, 0, 1, 1], [], []>} : vector<4x15xf32>, vector<15x128xf32>, vector<4x128xf32> -> vector<4x128xf32>
    %97 = arith.addf %91, %96 : vector<4x128xf32>
    %98 = vector.extract_strided_slice %43 {offsets = [0, 8, 0], sizes = [4, 1, 15], strides = [1, 1, 1]} : vector<4x15x15xf32> to vector<4x1x15xf32>
    %99 = vector.shape_cast %98 : vector<4x1x15xf32> to vector<4x15xf32>
    %c8 = arith.constant 8 : index
    %c0_41 = arith.constant 0 : index
    %c0_42 = arith.constant 0 : index
    %100 = vector.load %arg9[%c8, %c0_41, %c0_42] : memref<15x15x128xf32, #tpu.memory_space<vmem>>, vector<1x15x128xf32>
    %101 = vector.shape_cast %100 : vector<1x15x128xf32> to vector<15x128xf32>
    %cst_43 = arith.constant dense<0.000000e+00> : vector<4x128xf32>
    %102 = tpu.matmul %99, %101, %cst_43 {dimension_numbers = #tpu.dot_dimension_numbers<[1], [0], [0], [1], [0, 0, 1, 1], [], []>} : vector<4x15xf32>, vector<15x128xf32>, vector<4x128xf32> -> vector<4x128xf32>
    %103 = arith.addf %97, %102 : vector<4x128xf32>
    %104 = vector.extract_strided_slice %43 {offsets = [0, 9, 0], sizes = [4, 1, 15], strides = [1, 1, 1]} : vector<4x15x15xf32> to vector<4x1x15xf32>
    %105 = vector.shape_cast %104 : vector<4x1x15xf32> to vector<4x15xf32>
    %c9 = arith.constant 9 : index
    %c0_44 = arith.constant 0 : index
    %c0_45 = arith.constant 0 : index
    %106 = vector.load %arg9[%c9, %c0_44, %c0_45] : memref<15x15x128xf32, #tpu.memory_space<vmem>>, vector<1x15x128xf32>
    %107 = vector.shape_cast %106 : vector<1x15x128xf32> to vector<15x128xf32>
    %cst_46 = arith.constant dense<0.000000e+00> : vector<4x128xf32>
    %108 = tpu.matmul %105, %107, %cst_46 {dimension_numbers = #tpu.dot_dimension_numbers<[1], [0], [0], [1], [0, 0, 1, 1], [], []>} : vector<4x15xf32>, vector<15x128xf32>, vector<4x128xf32> -> vector<4x128xf32>
    %109 = arith.addf %103, %108 : vector<4x128xf32>
    %110 = vector.extract_strided_slice %43 {offsets = [0, 10, 0], sizes = [4, 1, 15], strides = [1, 1, 1]} : vector<4x15x15xf32> to vector<4x1x15xf32>
    %111 = vector.shape_cast %110 : vector<4x1x15xf32> to vector<4x15xf32>
    %c10 = arith.constant 10 : index
    %c0_47 = arith.constant 0 : index
    %c0_48 = arith.constant 0 : index
    %112 = vector.load %arg9[%c10, %c0_47, %c0_48] : memref<15x15x128xf32, #tpu.memory_space<vmem>>, vector<1x15x128xf32>
    %113 = vector.shape_cast %112 : vector<1x15x128xf32> to vector<15x128xf32>
    %cst_49 = arith.constant dense<0.000000e+00> : vector<4x128xf32>
    %114 = tpu.matmul %111, %113, %cst_49 {dimension_numbers = #tpu.dot_dimension_numbers<[1], [0], [0], [1], [0, 0, 1, 1], [], []>} : vector<4x15xf32>, vector<15x128xf32>, vector<4x128xf32> -> vector<4x128xf32>
    %115 = arith.addf %109, %114 : vector<4x128xf32>
    %116 = vector.extract_strided_slice %43 {offsets = [0, 11, 0], sizes = [4, 1, 15], strides = [1, 1, 1]} : vector<4x15x15xf32> to vector<4x1x15xf32>
    %117 = vector.shape_cast %116 : vector<4x1x15xf32> to vector<4x15xf32>
    %c11 = arith.constant 11 : index
    %c0_50 = arith.constant 0 : index
    %c0_51 = arith.constant 0 : index
    %118 = vector.load %arg9[%c11, %c0_50, %c0_51] : memref<15x15x128xf32, #tpu.memory_space<vmem>>, vector<1x15x128xf32>
    %119 = vector.shape_cast %118 : vector<1x15x128xf32> to vector<15x128xf32>
    %cst_52 = arith.constant dense<0.000000e+00> : vector<4x128xf32>
    %120 = tpu.matmul %117, %119, %cst_52 {dimension_numbers = #tpu.dot_dimension_numbers<[1], [0], [0], [1], [0, 0, 1, 1], [], []>} : vector<4x15xf32>, vector<15x128xf32>, vector<4x128xf32> -> vector<4x128xf32>
    %121 = arith.addf %115, %120 : vector<4x128xf32>
    %122 = vector.extract_strided_slice %43 {offsets = [0, 12, 0], sizes = [4, 1, 15], strides = [1, 1, 1]} : vector<4x15x15xf32> to vector<4x1x15xf32>
    %123 = vector.shape_cast %122 : vector<4x1x15xf32> to vector<4x15xf32>
    %c12 = arith.constant 12 : index
    %c0_53 = arith.constant 0 : index
    %c0_54 = arith.constant 0 : index
    %124 = vector.load %arg9[%c12, %c0_53, %c0_54] : memref<15x15x128xf32, #tpu.memory_space<vmem>>, vector<1x15x128xf32>
    %125 = vector.shape_cast %124 : vector<1x15x128xf32> to vector<15x128xf32>
    %cst_55 = arith.constant dense<0.000000e+00> : vector<4x128xf32>
    %126 = tpu.matmul %123, %125, %cst_55 {dimension_numbers = #tpu.dot_dimension_numbers<[1], [0], [0], [1], [0, 0, 1, 1], [], []>} : vector<4x15xf32>, vector<15x128xf32>, vector<4x128xf32> -> vector<4x128xf32>
    %127 = arith.addf %121, %126 : vector<4x128xf32>
    %128 = vector.extract_strided_slice %43 {offsets = [0, 13, 0], sizes = [4, 1, 15], strides = [1, 1, 1]} : vector<4x15x15xf32> to vector<4x1x15xf32>
    %129 = vector.shape_cast %128 : vector<4x1x15xf32> to vector<4x15xf32>
    %c13 = arith.constant 13 : index
    %c0_56 = arith.constant 0 : index
    %c0_57 = arith.constant 0 : index
    %130 = vector.load %arg9[%c13, %c0_56, %c0_57] : memref<15x15x128xf32, #tpu.memory_space<vmem>>, vector<1x15x128xf32>
    %131 = vector.shape_cast %130 : vector<1x15x128xf32> to vector<15x128xf32>
    %cst_58 = arith.constant dense<0.000000e+00> : vector<4x128xf32>
    %132 = tpu.matmul %129, %131, %cst_58 {dimension_numbers = #tpu.dot_dimension_numbers<[1], [0], [0], [1], [0, 0, 1, 1], [], []>} : vector<4x15xf32>, vector<15x128xf32>, vector<4x128xf32> -> vector<4x128xf32>
    %133 = arith.addf %127, %132 : vector<4x128xf32>
    %134 = vector.extract_strided_slice %43 {offsets = [0, 14, 0], sizes = [4, 1, 15], strides = [1, 1, 1]} : vector<4x15x15xf32> to vector<4x1x15xf32>
    %135 = vector.shape_cast %134 : vector<4x1x15xf32> to vector<4x15xf32>
    %c14 = arith.constant 14 : index
    %c0_59 = arith.constant 0 : index
    %c0_60 = arith.constant 0 : index
    %136 = vector.load %arg9[%c14, %c0_59, %c0_60] : memref<15x15x128xf32, #tpu.memory_space<vmem>>, vector<1x15x128xf32>
    %137 = vector.shape_cast %136 : vector<1x15x128xf32> to vector<15x128xf32>
    %cst_61 = arith.constant dense<0.000000e+00> : vector<4x128xf32>
    %138 = tpu.matmul %135, %137, %cst_61 {dimension_numbers = #tpu.dot_dimension_numbers<[1], [0], [0], [1], [0, 0, 1, 1], [], []>} : vector<4x15xf32>, vector<15x128xf32>, vector<4x128xf32> -> vector<4x128xf32>
    %139 = arith.addf %133, %138 : vector<4x128xf32>
    %cst_62 = arith.constant 5.000000e-01 : f32
    %140 = vector.broadcast %cst_62 : f32 to vector<4x128xf32>
    %141 = arith.mulf %140, %139 : vector<4x128xf32>
    %142 = arith.addf %48, %141 : vector<4x128xf32>
    %143 = vector.extract_strided_slice %142 {offsets = [0, 0], sizes = [4, 32], strides = [1, 1]} : vector<4x128xf32> to vector<4x32xf32>
    %c0_63 = arith.constant 0 : index
    %c0_64 = arith.constant 0 : index
    %c0_65 = arith.constant 0 : index
    %c0_66 = arith.constant 0 : index
    %144 = vector.load %arg10[%c0_63, %c0_64, %c0_65, %c0_66] : memref<1x4x4x32xf32, #tpu.memory_space<vmem>>, vector<1x1x4x32xf32>
    %145 = vector.shape_cast %144 : vector<1x1x4x32xf32> to vector<4x32xf32>
    %146 = vector.shape_cast %143 : vector<4x32xf32> to vector<1x1x4x32xf32>
    tpu.vector_store %arg10[%c0_63, %c0_64, %c0_65, %c0_66], %146 {strides = array<i32>} : memref<1x4x4x32xf32, #tpu.memory_space<vmem>>, vector<1x1x4x32xf32>,
    %147 = vector.extract_strided_slice %142 {offsets = [0, 32], sizes = [4, 32], strides = [1, 1]} : vector<4x128xf32> to vector<4x32xf32>
    %c0_67 = arith.constant 0 : index
    %c1_68 = arith.constant 1 : index
    %c0_69 = arith.constant 0 : index
    %c0_70 = arith.constant 0 : index
    %148 = vector.load %arg10[%c0_67, %c1_68, %c0_69, %c0_70] : memref<1x4x4x32xf32, #tpu.memory_space<vmem>>, vector<1x1x4x32xf32>
    %149 = vector.shape_cast %148 : vector<1x1x4x32xf32> to vector<4x32xf32>
    %150 = vector.shape_cast %147 : vector<4x32xf32> to vector<1x1x4x32xf32>
    tpu.vector_store %arg10[%c0_67, %c1_68, %c0_69, %c0_70], %150 {strides = array<i32>} : memref<1x4x4x32xf32, #tpu.memory_space<vmem>>, vector<1x1x4x32xf32>,
    %151 = vector.extract_strided_slice %142 {offsets = [0, 64], sizes = [4, 32], strides = [1, 1]} : vector<4x128xf32> to vector<4x32xf32>
    %c0_71 = arith.constant 0 : index
    %c2_72 = arith.constant 2 : index
    %c0_73 = arith.constant 0 : index
    %c0_74 = arith.constant 0 : index
    %152 = vector.load %arg10[%c0_71, %c2_72, %c0_73, %c0_74] : memref<1x4x4x32xf32, #tpu.memory_space<vmem>>, vector<1x1x4x32xf32>
    %153 = vector.shape_cast %152 : vector<1x1x4x32xf32> to vector<4x32xf32>
    %154 = vector.shape_cast %151 : vector<4x32xf32> to vector<1x1x4x32xf32>
    tpu.vector_store %arg10[%c0_71, %c2_72, %c0_73, %c0_74], %154 {strides = array<i32>} : memref<1x4x4x32xf32, #tpu.memory_space<vmem>>, vector<1x1x4x32xf32>,
    %155 = vector.extract_strided_slice %142 {offsets = [0, 96], sizes = [4, 32], strides = [1, 1]} : vector<4x128xf32> to vector<4x32xf32>
    %c0_75 = arith.constant 0 : index
    %c3_76 = arith.constant 3 : index
    %c0_77 = arith.constant 0 : index
    %c0_78 = arith.constant 0 : index
    %156 = vector.load %arg10[%c0_75, %c3_76, %c0_77, %c0_78] : memref<1x4x4x32xf32, #tpu.memory_space<vmem>>, vector<1x1x4x32xf32>
    %157 = vector.shape_cast %156 : vector<1x1x4x32xf32> to vector<4x32xf32>
    %158 = vector.shape_cast %155 : vector<4x32xf32> to vector<1x1x4x32xf32>
    tpu.vector_store %arg10[%c0_75, %c3_76, %c0_77, %c0_78], %158 {strides = array<i32>} : memref<1x4x4x32xf32, #tpu.memory_space<vmem>>, vector<1x1x4x32xf32>,
    return
  }
  func.func @transform_0(%arg0: i32, %arg1: i32, %arg2: memref<4xi32, #tpu.memory_space<smem>>, %arg3: memref<4xi32, #tpu.memory_space<smem>>) -> (i32, i32, i32) {
    %c0_i32 = arith.constant 0 : i32
    %c0_i32_0 = arith.constant 0 : i32
    %c0_i32_1 = arith.constant 0 : i32
    return %arg0, %c0_i32, %c0_i32_0 : i32, i32, i32
  }
  func.func @transform_1(%arg0: i32, %arg1: i32, %arg2: memref<4xi32, #tpu.memory_space<smem>>, %arg3: memref<4xi32, #tpu.memory_space<smem>>) -> (i32, i32) {
    %c0_i32 = arith.constant 0 : i32
    %c0_i32_0 = arith.constant 0 : i32
    %c0_i32_1 = arith.constant 0 : i32
    return %c0_i32, %c0_i32_0 : i32, i32
  }
  func.func @transform_2(%arg0: i32, %arg1: i32, %arg2: memref<4xi32, #tpu.memory_space<smem>>, %arg3: memref<4xi32, #tpu.memory_space<smem>>) -> (i32, i32) {
    %c0_i32 = arith.constant 0 : i32
    %c0_i32_0 = arith.constant 0 : i32
    %c0_i32_1 = arith.constant 0 : i32
    return %c0_i32, %c0_i32_0 : i32, i32
  }
  func.func @transform_3(%arg0: i32, %arg1: i32, %arg2: memref<4xi32, #tpu.memory_space<smem>>, %arg3: memref<4xi32, #tpu.memory_space<smem>>) -> (i32, i32) {
    %c0_i32 = arith.constant 0 : i32
    %c0_i32_0 = arith.constant 0 : i32
    %c0_i32_1 = arith.constant 0 : i32
    return %c0_i32, %c0_i32_0 : i32, i32
  }
  func.func @transform_4(%arg0: i32, %arg1: i32, %arg2: memref<4xi32, #tpu.memory_space<smem>>, %arg3: memref<4xi32, #tpu.memory_space<smem>>) -> (i32, i32) {
    %c0_i32 = arith.constant 0 : i32
    %c0_i32_0 = arith.constant 0 : i32
    %c0_i32_1 = arith.constant 0 : i32
    return %c0_i32, %c0_i32_0 : i32, i32
  }
  func.func @transform_5(%arg0: i32, %arg1: i32, %arg2: memref<4xi32, #tpu.memory_space<smem>>, %arg3: memref<4xi32, #tpu.memory_space<smem>>) -> (i32, i32, i32) {
    %c0_i32 = arith.constant 0 : i32
    %c0_i32_0 = arith.constant 0 : i32
    %c0_i32_1 = arith.constant 0 : i32
    %c0_i32_2 = arith.constant 0 : i32
    return %c0_i32, %c0_i32_0, %c0_i32_1 : i32, i32, i32
  }
  func.func @transform_6(%arg0: i32, %arg1: i32, %arg2: memref<4xi32, #tpu.memory_space<smem>>, %arg3: memref<4xi32, #tpu.memory_space<smem>>) -> (i32, i32, i32, i32) {
    %c0_i32 = arith.constant 0 : i32
    %c0_i32_0 = arith.constant 0 : i32
    %c0_i32_1 = arith.constant 0 : i32
    return %arg1, %c0_i32, %arg0, %c0_i32_0 : i32, i32, i32, i32
  }
}

module attributes {stable_mosaic.version = 11 : i64} {
  func.func @_lstm_kernel(%arg0: i32, %arg1: i32, %arg2: memref<1x4x4x32xf32, #tpu.memory_space<vmem>>, %arg3: memref<4x32x32xf32, #tpu.memory_space<vmem>>, %arg4: memref<4x1x32xf32, #tpu.memory_space<vmem>>, %arg5: memref<1x4x32xf32, #tpu.memory_space<vmem>>, %arg6: memref<4x32xf32, #tpu.memory_space<vmem>>, %arg7: memref<4x32xf32, #tpu.memory_space<vmem>>) attributes {dimension_semantics = [#tpu.dimension_semantics<parallel>, #tpu.dimension_semantics<arbitrary>], iteration_bounds = array<i64: 1, 4>, scalar_prefetch = 0 : i64, scratch_operands = 2 : i64, tpu.core_type = #tpu.core_type<tc>, window_params = [{transform_indices = @transform_0, window_bounds = array<i64: 1, 4, 4, 32>}, {pipeline_mode = #tpu.pipeline_mode<synchronous>, transform_indices = @transform_1, window_bounds = array<i64: 4, 32, 32>}, {pipeline_mode = #tpu.pipeline_mode<synchronous>, transform_indices = @transform_2, window_bounds = array<i64: 4, 1, 32>}, {transform_indices = @transform_3, window_bounds = array<i64: 1, 4, 32>}]} {
    %c0_i32 = arith.constant 0 : i32
    %0 = arith.cmpi eq, %arg1, %c0_i32 : i32
    %1 = arith.extui %0 : i1 to i32
    %c0_i32_0 = arith.constant 0 : i32
    %2 = arith.cmpi ne, %1, %c0_i32_0 : i32
    scf.if %2 {
      %cst_33 = arith.constant 0.000000e+00 : f32
      %74 = vector.broadcast %cst_33 : f32 to vector<4x32xf32>
      %c0_34 = arith.constant 0 : index
      %c0_35 = arith.constant 0 : index
      %75 = vector.load %arg6[%c0_34, %c0_35] : memref<4x32xf32, #tpu.memory_space<vmem>>, vector<4x32xf32>
      tpu.vector_store %arg6[%c0_34, %c0_35], %74 {strides = array<i32>} : memref<4x32xf32, #tpu.memory_space<vmem>>, vector<4x32xf32>,
      %cst_36 = arith.constant 0.000000e+00 : f32
      %76 = vector.broadcast %cst_36 : f32 to vector<4x32xf32>
      %c0_37 = arith.constant 0 : index
      %c0_38 = arith.constant 0 : index
      %77 = vector.load %arg7[%c0_37, %c0_38] : memref<4x32xf32, #tpu.memory_space<vmem>>, vector<4x32xf32>
      tpu.vector_store %arg7[%c0_37, %c0_38], %76 {strides = array<i32>} : memref<4x32xf32, #tpu.memory_space<vmem>>, vector<4x32xf32>,
    } else {
    }
    %c0 = arith.constant 0 : index
    %c0_1 = arith.constant 0 : index
    %3 = vector.load %arg6[%c0, %c0_1] : memref<4x32xf32, #tpu.memory_space<vmem>>, vector<4x32xf32>
    %c0_2 = arith.constant 0 : index
    %c0_3 = arith.constant 0 : index
    %c0_4 = arith.constant 0 : index
    %c0_5 = arith.constant 0 : index
    %4 = vector.load %arg2[%c0_2, %c0_3, %c0_4, %c0_5] : memref<1x4x4x32xf32, #tpu.memory_space<vmem>>, vector<1x4x4x32xf32>
    %5 = vector.shape_cast %4 : vector<1x4x4x32xf32> to vector<4x4x32xf32>
    %c0_6 = arith.constant 0 : index
    %c0_7 = arith.constant 0 : index
    %c0_8 = arith.constant 0 : index
    %6 = vector.load %arg4[%c0_6, %c0_7, %c0_8] : memref<4x1x32xf32, #tpu.memory_space<vmem>>, vector<4x1x32xf32>
    %7 = vector.extract_strided_slice %5 {offsets = [0, 0, 0], sizes = [1, 4, 32], strides = [1, 1, 1]} : vector<4x4x32xf32> to vector<1x4x32xf32>
    %8 = vector.shape_cast %7 : vector<1x4x32xf32> to vector<4x32xf32>
    %c0_9 = arith.constant 0 : index
    %c0_10 = arith.constant 0 : index
    %c0_11 = arith.constant 0 : index
    %9 = vector.load %arg3[%c0_9, %c0_10, %c0_11] : memref<4x32x32xf32, #tpu.memory_space<vmem>>, vector<1x32x32xf32>
    %10 = vector.shape_cast %9 : vector<1x32x32xf32> to vector<32x32xf32>
    %cst = arith.constant dense<0.000000e+00> : vector<4x32xf32>
    %11 = tpu.matmul %3, %10, %cst {dimension_numbers = #tpu.dot_dimension_numbers<[1], [0], [0], [1], [0, 0, 1, 1], [], []>} : vector<4x32xf32>, vector<32x32xf32>, vector<4x32xf32> -> vector<4x32xf32>
    %12 = arith.addf %8, %11 : vector<4x32xf32>
    %13 = vector.extract_strided_slice %6 {offsets = [0, 0, 0], sizes = [1, 1, 32], strides = [1, 1, 1]} : vector<4x1x32xf32> to vector<1x1x32xf32>
    %14 = vector.shape_cast %13 : vector<1x1x32xf32> to vector<1x32xf32>
    %15 = vector.broadcast %14 : vector<1x32xf32> to vector<4x32xf32>
    %16 = arith.addf %12, %15 : vector<4x32xf32>
    %17 = vector.extract_strided_slice %5 {offsets = [1, 0, 0], sizes = [1, 4, 32], strides = [1, 1, 1]} : vector<4x4x32xf32> to vector<1x4x32xf32>
    %18 = vector.shape_cast %17 : vector<1x4x32xf32> to vector<4x32xf32>
    %c1 = arith.constant 1 : index
    %c0_12 = arith.constant 0 : index
    %c0_13 = arith.constant 0 : index
    %19 = vector.load %arg3[%c1, %c0_12, %c0_13] : memref<4x32x32xf32, #tpu.memory_space<vmem>>, vector<1x32x32xf32>
    %20 = vector.shape_cast %19 : vector<1x32x32xf32> to vector<32x32xf32>
    %cst_14 = arith.constant dense<0.000000e+00> : vector<4x32xf32>
    %21 = tpu.matmul %3, %20, %cst_14 {dimension_numbers = #tpu.dot_dimension_numbers<[1], [0], [0], [1], [0, 0, 1, 1], [], []>} : vector<4x32xf32>, vector<32x32xf32>, vector<4x32xf32> -> vector<4x32xf32>
    %22 = arith.addf %18, %21 : vector<4x32xf32>
    %23 = vector.extract_strided_slice %6 {offsets = [1, 0, 0], sizes = [1, 1, 32], strides = [1, 1, 1]} : vector<4x1x32xf32> to vector<1x1x32xf32>
    %24 = vector.shape_cast %23 : vector<1x1x32xf32> to vector<1x32xf32>
    %25 = vector.broadcast %24 : vector<1x32xf32> to vector<4x32xf32>
    %26 = arith.addf %22, %25 : vector<4x32xf32>
    %27 = vector.extract_strided_slice %5 {offsets = [2, 0, 0], sizes = [1, 4, 32], strides = [1, 1, 1]} : vector<4x4x32xf32> to vector<1x4x32xf32>
    %28 = vector.shape_cast %27 : vector<1x4x32xf32> to vector<4x32xf32>
    %c2 = arith.constant 2 : index
    %c0_15 = arith.constant 0 : index
    %c0_16 = arith.constant 0 : index
    %29 = vector.load %arg3[%c2, %c0_15, %c0_16] : memref<4x32x32xf32, #tpu.memory_space<vmem>>, vector<1x32x32xf32>
    %30 = vector.shape_cast %29 : vector<1x32x32xf32> to vector<32x32xf32>
    %cst_17 = arith.constant dense<0.000000e+00> : vector<4x32xf32>
    %31 = tpu.matmul %3, %30, %cst_17 {dimension_numbers = #tpu.dot_dimension_numbers<[1], [0], [0], [1], [0, 0, 1, 1], [], []>} : vector<4x32xf32>, vector<32x32xf32>, vector<4x32xf32> -> vector<4x32xf32>
    %32 = arith.addf %28, %31 : vector<4x32xf32>
    %33 = vector.extract_strided_slice %6 {offsets = [2, 0, 0], sizes = [1, 1, 32], strides = [1, 1, 1]} : vector<4x1x32xf32> to vector<1x1x32xf32>
    %34 = vector.shape_cast %33 : vector<1x1x32xf32> to vector<1x32xf32>
    %35 = vector.broadcast %34 : vector<1x32xf32> to vector<4x32xf32>
    %36 = arith.addf %32, %35 : vector<4x32xf32>
    %37 = vector.extract_strided_slice %5 {offsets = [3, 0, 0], sizes = [1, 4, 32], strides = [1, 1, 1]} : vector<4x4x32xf32> to vector<1x4x32xf32>
    %38 = vector.shape_cast %37 : vector<1x4x32xf32> to vector<4x32xf32>
    %c3 = arith.constant 3 : index
    %c0_18 = arith.constant 0 : index
    %c0_19 = arith.constant 0 : index
    %39 = vector.load %arg3[%c3, %c0_18, %c0_19] : memref<4x32x32xf32, #tpu.memory_space<vmem>>, vector<1x32x32xf32>
    %40 = vector.shape_cast %39 : vector<1x32x32xf32> to vector<32x32xf32>
    %cst_20 = arith.constant dense<0.000000e+00> : vector<4x32xf32>
    %41 = tpu.matmul %3, %40, %cst_20 {dimension_numbers = #tpu.dot_dimension_numbers<[1], [0], [0], [1], [0, 0, 1, 1], [], []>} : vector<4x32xf32>, vector<32x32xf32>, vector<4x32xf32> -> vector<4x32xf32>
    %42 = arith.addf %38, %41 : vector<4x32xf32>
    %43 = vector.extract_strided_slice %6 {offsets = [3, 0, 0], sizes = [1, 1, 32], strides = [1, 1, 1]} : vector<4x1x32xf32> to vector<1x1x32xf32>
    %44 = vector.shape_cast %43 : vector<1x1x32xf32> to vector<1x32xf32>
    %45 = vector.broadcast %44 : vector<1x32xf32> to vector<4x32xf32>
    %46 = arith.addf %42, %45 : vector<4x32xf32>
    %47 = arith.negf %16 : vector<4x32xf32>
    %48 = math.exp %47 : vector<4x32xf32>
    %cst_21 = arith.constant 1.000000e+00 : f32
    %49 = vector.broadcast %cst_21 : f32 to vector<4x32xf32>
    %50 = arith.addf %49, %48 : vector<4x32xf32>
    %51 = arith.divf %49, %50 : vector<4x32xf32>
    %52 = arith.negf %26 : vector<4x32xf32>
    %53 = math.exp %52 : vector<4x32xf32>
    %cst_22 = arith.constant 1.000000e+00 : f32
    %54 = vector.broadcast %cst_22 : f32 to vector<4x32xf32>
    %55 = arith.addf %54, %53 : vector<4x32xf32>
    %56 = arith.divf %54, %55 : vector<4x32xf32>
    %57 = math.tanh %36 : vector<4x32xf32>
    %58 = arith.negf %46 : vector<4x32xf32>
    %59 = math.exp %58 : vector<4x32xf32>
    %cst_23 = arith.constant 1.000000e+00 : f32
    %60 = vector.broadcast %cst_23 : f32 to vector<4x32xf32>
    %61 = arith.addf %60, %59 : vector<4x32xf32>
    %62 = arith.divf %60, %61 : vector<4x32xf32>
    %c0_24 = arith.constant 0 : index
    %c0_25 = arith.constant 0 : index
    %63 = vector.load %arg7[%c0_24, %c0_25] : memref<4x32xf32, #tpu.memory_space<vmem>>, vector<4x32xf32>
    %64 = arith.mulf %56, %63 : vector<4x32xf32>
    %65 = arith.mulf %51, %57 : vector<4x32xf32>
    %66 = arith.addf %64, %65 : vector<4x32xf32>
    %67 = math.tanh %66 : vector<4x32xf32>
    %68 = arith.mulf %62, %67 : vector<4x32xf32>
    %c0_26 = arith.constant 0 : index
    %c0_27 = arith.constant 0 : index
    %69 = vector.load %arg7[%c0_26, %c0_27] : memref<4x32xf32, #tpu.memory_space<vmem>>, vector<4x32xf32>
    tpu.vector_store %arg7[%c0_26, %c0_27], %66 {strides = array<i32>} : memref<4x32xf32, #tpu.memory_space<vmem>>, vector<4x32xf32>,
    %c0_28 = arith.constant 0 : index
    %c0_29 = arith.constant 0 : index
    %70 = vector.load %arg6[%c0_28, %c0_29] : memref<4x32xf32, #tpu.memory_space<vmem>>, vector<4x32xf32>
    tpu.vector_store %arg6[%c0_28, %c0_29], %68 {strides = array<i32>} : memref<4x32xf32, #tpu.memory_space<vmem>>, vector<4x32xf32>,
    %c0_30 = arith.constant 0 : index
    %c0_31 = arith.constant 0 : index
    %c0_32 = arith.constant 0 : index
    %71 = vector.load %arg5[%c0_30, %c0_31, %c0_32] : memref<1x4x32xf32, #tpu.memory_space<vmem>>, vector<1x4x32xf32>
    %72 = vector.shape_cast %71 : vector<1x4x32xf32> to vector<4x32xf32>
    %73 = vector.shape_cast %68 : vector<4x32xf32> to vector<1x4x32xf32>
    tpu.vector_store %arg5[%c0_30, %c0_31, %c0_32], %73 {strides = array<i32>} : memref<1x4x32xf32, #tpu.memory_space<vmem>>, vector<1x4x32xf32>,
    return
  }
  func.func @transform_0(%arg0: i32, %arg1: i32) -> (i32, i32, i32, i32) {
    %c0_i32 = arith.constant 0 : i32
    %c0_i32_0 = arith.constant 0 : i32
    %c0_i32_1 = arith.constant 0 : i32
    return %arg1, %c0_i32, %arg0, %c0_i32_0 : i32, i32, i32, i32
  }
  func.func @transform_1(%arg0: i32, %arg1: i32) -> (i32, i32, i32) {
    %c0_i32 = arith.constant 0 : i32
    %c0_i32_0 = arith.constant 0 : i32
    %c0_i32_1 = arith.constant 0 : i32
    %c0_i32_2 = arith.constant 0 : i32
    return %c0_i32, %c0_i32_0, %c0_i32_1 : i32, i32, i32
  }
  func.func @transform_2(%arg0: i32, %arg1: i32) -> (i32, i32, i32) {
    %c0_i32 = arith.constant 0 : i32
    %c0_i32_0 = arith.constant 0 : i32
    %c0_i32_1 = arith.constant 0 : i32
    %c0_i32_2 = arith.constant 0 : i32
    return %c0_i32, %c0_i32_0, %c0_i32_1 : i32, i32, i32
  }
  func.func @transform_3(%arg0: i32, %arg1: i32) -> (i32, i32, i32) {
    %c0_i32 = arith.constant 0 : i32
    %c0_i32_0 = arith.constant 0 : i32
    return %arg1, %arg0, %c0_i32 : i32, i32, i32
  }
}

module attributes {stable_mosaic.version = 11 : i64} {
  func.func @_fc_kernel(%arg0: i32, %arg1: memref<4x128xf32, #tpu.memory_space<vmem>>, %arg2: memref<2x4xf32, #tpu.memory_space<vmem>>, %arg3: memref<128x10xf32, #tpu.memory_space<vmem>>, %arg4: memref<1x10xf32, #tpu.memory_space<vmem>>, %arg5: memref<2x10xf32, #tpu.memory_space<vmem>>) attributes {dimension_semantics = [#tpu.dimension_semantics<arbitrary>], iteration_bounds = array<i64: 1>, scalar_prefetch = 0 : i64, scratch_operands = 0 : i64, tpu.core_type = #tpu.core_type<tc>, window_params = [{pipeline_mode = #tpu.pipeline_mode<synchronous>, transform_indices = @transform_0, window_bounds = array<i64: 4, 128>}, {pipeline_mode = #tpu.pipeline_mode<synchronous>, transform_indices = @transform_1, window_bounds = array<i64: 2, 4>}, {pipeline_mode = #tpu.pipeline_mode<synchronous>, transform_indices = @transform_2, window_bounds = array<i64: 128, 10>}, {pipeline_mode = #tpu.pipeline_mode<synchronous>, transform_indices = @transform_3, window_bounds = array<i64: 1, 10>}, {pipeline_mode = #tpu.pipeline_mode<synchronous>, transform_indices = @transform_4, window_bounds = array<i64: 2, 10>}]} {
    %c0 = arith.constant 0 : index
    %c0_0 = arith.constant 0 : index
    %0 = vector.load %arg1[%c0, %c0_0] : memref<4x128xf32, #tpu.memory_space<vmem>>, vector<4x128xf32>
    %c0_1 = arith.constant 0 : index
    %c0_2 = arith.constant 0 : index
    %1 = vector.load %arg3[%c0_1, %c0_2] : memref<128x10xf32, #tpu.memory_space<vmem>>, vector<128x10xf32>
    %cst = arith.constant dense<0.000000e+00> : vector<4x10xf32>
    %2 = tpu.matmul %0, %1, %cst {dimension_numbers = #tpu.dot_dimension_numbers<[1], [0], [0], [1], [0, 0, 1, 1], [], []>} : vector<4x128xf32>, vector<128x10xf32>, vector<4x10xf32> -> vector<4x10xf32>
    %c0_3 = arith.constant 0 : index
    %c0_4 = arith.constant 0 : index
    %3 = vector.load %arg2[%c0_3, %c0_4] : memref<2x4xf32, #tpu.memory_space<vmem>>, vector<2x4xf32>
    %cst_5 = arith.constant dense<0.000000e+00> : vector<2x10xf32>
    %4 = tpu.matmul %3, %2, %cst_5 {dimension_numbers = #tpu.dot_dimension_numbers<[1], [0], [0], [1], [0, 0, 1, 1], [], []>} : vector<2x4xf32>, vector<4x10xf32>, vector<2x10xf32> -> vector<2x10xf32>
    %c0_6 = arith.constant 0 : index
    %c0_7 = arith.constant 0 : index
    %5 = vector.load %arg4[%c0_6, %c0_7] : memref<1x10xf32, #tpu.memory_space<vmem>>, vector<1x10xf32>
    %6 = vector.broadcast %5 : vector<1x10xf32> to vector<2x10xf32>
    %7 = arith.addf %4, %6 : vector<2x10xf32>
    %c0_8 = arith.constant 0 : index
    %c0_9 = arith.constant 0 : index
    %8 = vector.load %arg5[%c0_8, %c0_9] : memref<2x10xf32, #tpu.memory_space<vmem>>, vector<2x10xf32>
    tpu.vector_store %arg5[%c0_8, %c0_9], %7 {strides = array<i32>} : memref<2x10xf32, #tpu.memory_space<vmem>>, vector<2x10xf32>,
    return
  }
  func.func @transform_0(%arg0: i32) -> (i32, i32) {
    %c0_i32 = arith.constant 0 : i32
    %c0_i32_0 = arith.constant 0 : i32
    %c0_i32_1 = arith.constant 0 : i32
    return %c0_i32, %c0_i32_0 : i32, i32
  }
  func.func @transform_1(%arg0: i32) -> (i32, i32) {
    %c0_i32 = arith.constant 0 : i32
    %c0_i32_0 = arith.constant 0 : i32
    %c0_i32_1 = arith.constant 0 : i32
    return %c0_i32, %c0_i32_0 : i32, i32
  }
  func.func @transform_2(%arg0: i32) -> (i32, i32) {
    %c0_i32 = arith.constant 0 : i32
    %c0_i32_0 = arith.constant 0 : i32
    %c0_i32_1 = arith.constant 0 : i32
    return %c0_i32, %c0_i32_0 : i32, i32
  }
  func.func @transform_3(%arg0: i32) -> (i32, i32) {
    %c0_i32 = arith.constant 0 : i32
    %c0_i32_0 = arith.constant 0 : i32
    %c0_i32_1 = arith.constant 0 : i32
    return %c0_i32, %c0_i32_0 : i32, i32
  }
  func.func @transform_4(%arg0: i32) -> (i32, i32) {
    %c0_i32 = arith.constant 0 : i32
    %c0_i32_0 = arith.constant 0 : i32
    %c0_i32_1 = arith.constant 0 : i32
    return %c0_i32, %c0_i32_0 : i32, i32
  }
}

</mosaic_0001>

<llo_original>
// kernel: logsigrnn_forward.4
$region0: #{logsigrnn_forward.4}
  #allocation0 [shape = 'u32[]', space=smem, size = 0x4, offset = 0x4, fixed_abs, tag = 'smem constant byte address 0x4 - core index']
  #allocation1 [shape = 'u32[144,128]{1,0:T(1,128)}', space=vmem, size = 0x12000, scoped, tag = 'internal scratch']
  #allocation2 [shape = 'f32[1,15]{1,0:T(1,128)}', space=vmem, size = 0x200, scoped, tag = 'scratch operand']
  #allocation3 [shape = 'f32[1,15]{1,0:T(1,128)}', space=vmem, size = 0x200, scoped, tag = 'scratch operand']
  #allocation4 [shape = 'f32[1,15]{1,0:T(1,128)}', space=vmem, size = 0x200, scoped, tag = 'scratch operand']
  %s0 = inlined_call_operand.vmem [shape: f32[68,15], index: 0, kind: input, shape index: {}]
  %s1 = inlined_call_operand.vmem [shape: f32[1,15], index: 1, kind: input, shape index: {}]
  %s2 = inlined_call_operand.vmem [shape: f32[1,15], index: 2, kind: input, shape index: {}]
  %s3 = inlined_call_operand.vmem [shape: f32[1,15], index: 3, kind: output, shape index: {0}]
  %s4 = inlined_call_operand.vmem [shape: f32[1,15], index: 4, kind: output, shape index: {1}]
  %5 = xla_tuple %s3, %s4
  %s6 = sld [smem:[#allocation0]]
  $region77: #{logsigrnn_forward.4} parent=0
    _
  %s8 = ssub.s32 1, %s6
  %s9 = scalar_select 0, %s8, %s6
  loop: start=0, step=1, limit=4
  $region2: #{logsigrnn_forward.4} parent=0 // loop_pre_header
    _
  $region3: #{logsigrnn_forward.4} parent=0 // loop_header
    %s11 = sphi 0, %s15
    %p12 = scmp.ge.s32.totalorder %s11, 4
    %s18 = sphi 0, %s30
    %s19 = sphi 0, %s26
    %s20 = sphi 0, %s18
    %s21 = sphi 0, %s19
    %s22 = sphi 0, %s20
    %s23 = sphi 0, %s21
    %s33 = sphi 0, %s35
    %s36 = sphi 0, %s33
    %s37 = sphi 0, %s36
    %s53 = sphi 0, %s37
    %s57 = sphi 0, %s57
    %s59 = sphi 0, %s57
    %s60 = sphi 0, %s59
    %s74 = sphi 0, %s60
    %s78 = sphi 0, %s78
    %s80 = sphi 0, %s78
    %s81 = sphi 0, %s80
    %s95 = sphi 0, %s81
    %s99 = sphi 0, %s99
    %s101 = sphi 0, %s99
    %s102 = sphi 0, %s101
    %s116 = sphi 0, %s102
    %s120 = sphi 0, %s120
    %s122 = sphi 0, %s120
    %s123 = sphi 0, %s122
    %s137 = sphi 0, %s123
  $region4: #{logsigrnn_forward.4} parent=0 // loop_header_branch
    %14 = sbr.rel (%p12) target = $region8
  $region5: #{logsigrnn_forward.4} parent=0 // loop_body
    %s16 = ssub.s32 %s11, 1
    %s17 = ssub.s32 %s11, 2
    %s24 = sadd.s32 1, %s19
    %p25 = scmp.ge.s32.totalorder %s24, 1
    %s26 = scalar_select %p25, 0, %s24
    %s27 = sadd.s32 1, %s18
    %s28 = scalar_select %p25, %s27, %s18
    %p29 = scmp.ge.s32.totalorder %s28, 2
    %s30 = scalar_select %p29, 0, %s28
    %s31 = ssub.s32 %s19, %s26
    %p32 = scmp.eq.s32.totalorder %s31, 0
    %s34 = sadd.s32 %s33, 1
    %s35 = scalar_select %p32, %s33, %s34
    %p38 = pneg %p32
    %p39 = scmp.eq.s32.totalorder %s11, 1
    %p40 = por %p38, %p39
    %p41 = scmp.ne.s32.totalorder %s33, %s36
    %p42 = scmp.eq.s32.totalorder %s11, 0
    %p43 = por %p41, %p42
    %p44 = scmp.ne.s32.totalorder %s33, %s36
    %p45 = scmp.eq.s32.totalorder %s16, 1
    %p46 = por %p44, %p45
    %p47 = scmp.ne.s32.totalorder %s36, %s37
    %p48 = scmp.eq.s32.totalorder %s16, 0
    %p49 = por %p47, %p48
    %p50 = scmp.ne.s32.totalorder %s36, %s37
    %p51 = scmp.eq.s32.totalorder %s17, 1
    %p52 = por %p50, %p51
    %p54 = scmp.ne.s32.totalorder %s37, %s53
    %p55 = scmp.eq.s32.totalorder %s17, 0
    %p56 = por %p54, %p55
    %s58 = sadd.s32 %s57, 1
    %p61 = scmp.eq.s32.totalorder %s11, 1
    %p62 = scmp.ne.s32.totalorder %s57, %s59
    %p63 = scmp.eq.s32.totalorder %s11, 0
    %p64 = por %p62, %p63
    %p65 = scmp.ne.s32.totalorder %s57, %s59
    %p66 = scmp.eq.s32.totalorder %s16, 1
    %p67 = por %p65, %p66
    %p68 = scmp.ne.s32.totalorder %s59, %s60
    %p69 = scmp.eq.s32.totalorder %s16, 0
    %p70 = por %p68, %p69
    %p71 = scmp.ne.s32.totalorder %s59, %s60
    %p72 = scmp.eq.s32.totalorder %s17, 1
    %p73 = por %p71, %p72
    %p75 = scmp.ne.s32.totalorder %s60, %s74
    %p76 = scmp.eq.s32.totalorder %s17, 0
    %p77 = por %p75, %p76
    %s79 = sadd.s32 %s78, 1
    %p82 = scmp.eq.s32.totalorder %s11, 1
    %p83 = scmp.ne.s32.totalorder %s78, %s80
    %p84 = scmp.eq.s32.totalorder %s11, 0
    %p85 = por %p83, %p84
    %p86 = scmp.ne.s32.totalorder %s78, %s80
    %p87 = scmp.eq.s32.totalorder %s16, 1
    %p88 = por %p86, %p87
    %p89 = scmp.ne.s32.totalorder %s80, %s81
    %p90 = scmp.eq.s32.totalorder %s16, 0
    %p91 = por %p89, %p90
    %p92 = scmp.ne.s32.totalorder %s80, %s81
    %p93 = scmp.eq.s32.totalorder %s17, 1
    %p94 = por %p92, %p93
    %p96 = scmp.ne.s32.totalorder %s81, %s95
    %p97 = scmp.eq.s32.totalorder %s17, 0
    %p98 = por %p96, %p97
    %s100 = sadd.s32 %s99, 1
    %p103 = scmp.eq.s32.totalorder %s11, 1
    %p104 = scmp.ne.s32.totalorder %s99, %s101
    %p105 = scmp.eq.s32.totalorder %s11, 0
    %p106 = por %p104, %p105
    %p107 = scmp.ne.s32.totalorder %s99, %s101
    %p108 = scmp.eq.s32.totalorder %s16, 1
    %p109 = por %p107, %p108
    %p110 = scmp.ne.s32.totalorder %s101, %s102
    %p111 = scmp.eq.s32.totalorder %s16, 0
    %p112 = por %p110, %p111
    %p113 = scmp.ne.s32.totalorder %s101, %s102
    %p114 = scmp.eq.s32.totalorder %s17, 1
    %p115 = por %p113, %p114
    %p117 = scmp.ne.s32.totalorder %s102, %s116
    %p118 = scmp.eq.s32.totalorder %s17, 0
    %p119 = por %p117, %p118
    %s121 = sadd.s32 %s120, 1
    %p124 = scmp.eq.s32.totalorder %s11, 1
    %p125 = scmp.ne.s32.totalorder %s120, %s122
    %p126 = scmp.eq.s32.totalorder %s11, 0
    %p127 = por %p125, %p126
    %p128 = scmp.ne.s32.totalorder %s120, %s122
    %p129 = scmp.eq.s32.totalorder %s16, 1
    %p130 = por %p128, %p129
    %p131 = scmp.ne.s32.totalorder %s122, %s123
    %p132 = scmp.eq.s32.totalorder %s16, 0
    %p133 = por %p131, %p132
    %p134 = scmp.ne.s32.totalorder %s122, %s123
    %p135 = scmp.eq.s32.totalorder %s17, 1
    %p136 = por %p134, %p135
    %p138 = scmp.ne.s32.totalorder %s123, %s137
    %p139 = scmp.eq.s32.totalorder %s17, 0
    %p140 = por %p138, %p139
    %p141 = scmp.le.s32.totalorder 1, %s11
    %p142 = scmp.lt.s32.totalorder %s11, 3
    %p143 = pnand %p141, %p142
    %p144 = pneg %p143
    // Predicated region
    $region9: #{logsigrnn_forward.4} parent=5 // pred_check
      _
    $region10: #{logsigrnn_forward.4} parent=5 // pred_check_branch
      %146 = sbr.rel (%p143) target = $region12
    $region11: #{logsigrnn_forward.4} parent=5 // pred_region
      %s147 = ssub.s32 %s11, 1
      // Predicated region
      $region13: #{logsigrnn_forward.4} parent=11 // pred_check
        %p148 = pneg %p49
      $region14: #{logsigrnn_forward.4} parent=11 // pred_check_branch
        %150 = sbr.rel (%p148) target = $region16
      $region15: #{logsigrnn_forward.4} parent=11 // pred_region
        %s151 = smul.u32 9, %s21
        %p152 = scmp.lt.s32.totalorder %s151, 8
        %s153 = scalar_select %p152, %s151, 8
        %s154 = smul.addr %s153, 8
        %s155 = scalar_lea.vmem %s0, %s154
        %s156 = smul.u32 9, %s21
      $region16: #{logsigrnn_forward.4} parent=11 // pred_fallthru
        _
      // Predicated region
      $region17: #{logsigrnn_forward.4} parent=11 // pred_check
        %p157 = pneg %p70
      $region18: #{logsigrnn_forward.4} parent=11 // pred_check_branch
        %159 = sbr.rel (%p157) target = $region20
      $region19: #{logsigrnn_forward.4} parent=11 // pred_region
        _
      $region20: #{logsigrnn_forward.4} parent=11 // pred_fallthru
        _
      // Predicated region
      $region21: #{logsigrnn_forward.4} parent=11 // pred_check
        %p160 = pneg %p91
      $region22: #{logsigrnn_forward.4} parent=11 // pred_check_branch
        %162 = sbr.rel (%p160) target = $region24
      $region23: #{logsigrnn_forward.4} parent=11 // pred_region
        _
      $region24: #{logsigrnn_forward.4} parent=11 // pred_fallthru
        _
    $region12: #{logsigrnn_forward.4} parent=5 // pred_fallthru
      _
    %p163 = scmp.lt.s32.totalorder %s11, 2
    // Predicated region
    $region25: #{logsigrnn_forward.4} parent=5 // pred_check
      %p164 = pneg %p163
    $region26: #{logsigrnn_forward.4} parent=5 // pred_check_branch
      %166 = sbr.rel (%p164) target = $region28
    $region27: #{logsigrnn_forward.4} parent=5 // pred_region
      _
    $region28: #{logsigrnn_forward.4} parent=5 // pred_fallthru
      _
    %p167 = scmp.le.s32.totalorder 1, %s11
    %p168 = scmp.lt.s32.totalorder %s11, 3
    %p169 = pnand %p167, %p168
    %p170 = pneg %p169
    // Predicated region
    $region29: #{logsigrnn_forward.4} parent=5 // pred_check
      _
    $region30: #{logsigrnn_forward.4} parent=5 // pred_check_branch
      %172 = sbr.rel (%p169) target = $region32
    $region31: #{logsigrnn_forward.4} parent=5 // pred_region
      %s173 = ssub.s32 %s11, 1
      %s174 = smul.u32 9, %s21
      %p175 = scmp.lt.s32.totalorder %s174, 8
      %s176 = scalar_select %p175, %s174, 8
      %s177 = smul.addr %s176, 8
      %s178 = scalar_lea.vmem %s0, %s177
      %p179 = pneg %p49
      %p180 = pneg %p46
      %p181 = pneg %p70
      %p182 = pneg %p67
      %p183 = pneg %p91
      %p184 = pneg %p88
      %p185 = pneg %p112
      %p186 = pneg %p109
      %p187 = pneg %p133
      %p188 = pneg %p130
      %s189 = smul.u32 9, %s21
      %p190 = scmp.lt.s32.totalorder %s189, 8
      %s191 = scalar_select %p190, %s189, 8
      %s192 = smul.addr %s191, 8
      %s193 = scalar_lea.vmem %s0, %s192
      %s194 = smul.u32 9, %s21
      %s195 = smul.u32 %s21, 68
      %v196 = vlaneseq
      %v197 = vshrl.u32 %v196, 7
      %v198 = vadd.s32 %v197, 8
      %v199 = vadd.s32 %v197, 16
      %v200 = vadd.s32 %v197, 24
      %v201 = vadd.s32 %v197, 32
      %v202 = vadd.s32 %v197, 40
      %v203 = vadd.s32 %v197, 48
      %v204 = vadd.s32 %v197, 56
      %v205 = vadd.s32 %v197, 64
      %v206 = vstv %s195
      %v207 = vadd.s32 %v206, %v197
      %v208 = vadd.s32 %v206, %v198
      %v209 = vadd.s32 %v206, %v199
      %v210 = vadd.s32 %v206, %v200
      %v211 = vadd.s32 %v206, %v201
      %v212 = vadd.s32 %v206, %v202
      %v213 = vadd.s32 %v206, %v203
      %v214 = vadd.s32 %v206, %v204
      %v215 = vadd.s32 %v206, %v205
      %vm216 = vcmp.lt.s32.totalorder %v207, 68
      %vm217 = vcmp.lt.s32.totalorder %v208, 68
      %vm218 = vcmp.lt.s32.totalorder %v209, 68
      %vm219 = vcmp.lt.s32.totalorder %v210, 68
      %vm220 = vcmp.lt.s32.totalorder %v211, 68
      %vm221 = vcmp.lt.s32.totalorder %v212, 68
      %vm222 = vcmp.lt.s32.totalorder %v213, 68
      %vm223 = vcmp.lt.s32.totalorder %v214, 68
      %vm224 = vcmp.lt.s32.totalorder %v215, 68
      %v225 = vld [vmem:[%s193] sm:$0xff]
      %v226 = vld [vmem:[%s193 + $0x8] sm:$0xff]
      %v227 = vld [vmem:[%s193 + $0x10] sm:$0xff]
      %v228 = vld [vmem:[%s193 + $0x18] sm:$0xff]
      %v229 = vld [vmem:[%s193 + $0x20] sm:$0xff]
      %v230 = vld [vmem:[%s193 + $0x28] sm:$0xff]
      %v231 = vld [vmem:[%s193 + $0x30] sm:$0xff]
      %v232 = vld [vmem:[%s193 + $0x38] sm:$0xff]
      %v233 = vld [vmem:[%s193 + $0x40] sm:$0xf]
      %p234 = scmp.eq.s32.totalorder %s20, 0
      %p235 = scmp.eq.s32.totalorder %s21, 0
      %p236 = pnand %p234, %p235
      %p237 = pneg %p236
      // Predicated region
      $region33: #{logsigrnn_forward.4} parent=31 // pred_check
        _
      $region34: #{logsigrnn_forward.4} parent=31 // pred_check_branch
        %239 = sbr.rel (%p236) target = $region36
      $region35: #{logsigrnn_forward.4} parent=31 // pred_region
        %vm240 = vcmask 114688
        %241 = vst.msk [vmem:[#allocation2] sm:$0x1] %vm240, 0.0
      $region36: #{logsigrnn_forward.4} parent=31 // pred_fallthru
        _
      // Predicated region
      $region37: #{logsigrnn_forward.4} parent=31 // pred_check
        %p242 = pneg %p234
      $region38: #{logsigrnn_forward.4} parent=31 // pred_check_branch
        %244 = sbr.rel (%p242) target = $region40
      $region39: #{logsigrnn_forward.4} parent=31 // pred_region
        %v245 = vld [vmem:[#allocation2] sm:$0x1]
        %v246 = vsel %vm216, %v225, 0.0
        %v247 = vsel %vm217, %v226, 0.0
        %v248 = vsel %vm218, %v227, 0.0
        %v249 = vsel %vm219, %v228, 0.0
        %v250 = vsel %vm220, %v229, 0.0
        %v251 = vsel %vm221, %v230, 0.0
        %v252 = vsel %vm222, %v231, 0.0
        %v253 = vsel %vm223, %v232, 0.0
        %v254 = vsel %vm224, %v233, 0.0
        %vm255 = vcmask 121856
        %v256 = vsel %vm255, %v246, 0.0
        %v257 = vsel %vm255, %v247, 0.0
        %v258 = vadd.f32 %v256, %v257
        %v259 = vsel %vm255, %v248, 0.0
        %v260 = vadd.f32 %v258, %v259
        %v261 = vsel %vm255, %v249, 0.0
        %v262 = vadd.f32 %v260, %v261
        %v263 = vsel %vm255, %v250, 0.0
        %v264 = vadd.f32 %v262, %v263
        %v265 = vsel %vm255, %v251, 0.0
        %v266 = vadd.f32 %v264, %v265
        %v267 = vsel %vm255, %v252, 0.0
        %v268 = vadd.f32 %v266, %v267
        %v269 = vsel %vm255, %v253, 0.0
        %v270 = vadd.f32 %v268, %v269
        %vm271 = vcmask 117760
        %v272 = vsel %vm271, %v254, 0.0
        %v273 = vadd.f32 %v270, %v272
        %v274 = vrot.slane %v273, 4
        %v275 = vadd.f32 %v273, %v274
        %v276 = vrot.slane %v275, 2
        %v277 = vadd.f32 %v275, %v276
        %v278 = vrot.slane %v277, 1
        %v279 = vadd.f32 %v277, %v278
        %v280 = vadd.f32 %v245, %v279
        %vm281 = vcmask 114688
        %282 = vst.msk [vmem:[#allocation2] sm:$0x1] %vm281, %v280
      $region40: #{logsigrnn_forward.4} parent=31 // pred_fallthru
        _
      // Predicated region
      $region41: #{logsigrnn_forward.4} parent=31 // pred_check
        _
      $region42: #{logsigrnn_forward.4} parent=31 // pred_check_branch
        %284 = sbr.rel (%p236) target = $region44
      $region43: #{logsigrnn_forward.4} parent=31 // pred_region
        %v285 = vld [vmem:[#allocation2] sm:$0x1]
        %v286 = vmul.f32 %v285, 0.014705882
        %vm287 = vcmask 114688
        %288 = vst.msk [vmem:[#allocation3] sm:$0x1] %vm287, %v286
      $region44: #{logsigrnn_forward.4} parent=31 // pred_fallthru
        _
      %p289 = scmp.eq.s32.totalorder %s20, 1
      %p290 = pnand %p289, %p235
      %p291 = pneg %p290
      // Predicated region
      $region45: #{logsigrnn_forward.4} parent=31 // pred_check
        _
      $region46: #{logsigrnn_forward.4} parent=31 // pred_check_branch
        %293 = sbr.rel (%p290) target = $region48
      $region47: #{logsigrnn_forward.4} parent=31 // pred_region
        %vm294 = vcmask 114688
        %295 = vst.msk [vmem:[#allocation4] sm:$0x1] %vm294, 0.0
      $region48: #{logsigrnn_forward.4} parent=31 // pred_fallthru
        _
      // Predicated region
      $region49: #{logsigrnn_forward.4} parent=31 // pred_check
        %p296 = pneg %p289
      $region50: #{logsigrnn_forward.4} parent=31 // pred_check_branch
        %298 = sbr.rel (%p296) target = $region52
      $region51: #{logsigrnn_forward.4} parent=31 // pred_region
        %v299 = vld [vmem:[#allocation3] sm:$0x1]
        %v301 = vlaneseq
        %v302 = vshrl.u32 %v301, 7
        %v303 = vsub.s32 0, %v302
        %v304 = vrot.slane %v299, %v303
        %v306 = vsub.f32 %v225, %v304
        %v307 = vsub.f32 %v226, %v304
        %v308 = vsub.f32 %v227, %v304
        %v309 = vsub.f32 %v228, %v304
        %v310 = vsub.f32 %v229, %v304
        %v311 = vsub.f32 %v230, %v304
        %v312 = vsub.f32 %v231, %v304
        %v313 = vsub.f32 %v232, %v304
        %v314 = vsub.f32 %v233, %v304
        %v315 = vsel %vm216, %v306, 0.0
        %v316 = vsel %vm217, %v307, 0.0
        %v317 = vsel %vm218, %v308, 0.0
        %v318 = vsel %vm219, %v309, 0.0
        %v319 = vsel %vm220, %v310, 0.0
        %v320 = vsel %vm221, %v311, 0.0
        %v321 = vsel %vm222, %v312, 0.0
        %v322 = vsel %vm223, %v313, 0.0
        %v323 = vsel %vm224, %v314, 0.0
        %v324 = vld [vmem:[#allocation4] sm:$0x1]
        %v325 = vmul.f32 %v315, %v315
        %v326 = vmul.f32 %v316, %v316
        %v327 = vmul.f32 %v317, %v317
        %v328 = vmul.f32 %v318, %v318
        %v329 = vmul.f32 %v319, %v319
        %v330 = vmul.f32 %v320, %v320
        %v331 = vmul.f32 %v321, %v321
        %v332 = vmul.f32 %v322, %v322
        %v333 = vmul.f32 %v323, %v323
        %vm334 = vcmask 121856
        %v335 = vsel %vm334, %v325, 0.0
        %v336 = vsel %vm334, %v326, 0.0
        %v337 = vadd.f32 %v335, %v336
        %v338 = vsel %vm334, %v327, 0.0
        %v339 = vadd.f32 %v337, %v338
        %v340 = vsel %vm334, %v328, 0.0
        %v341 = vadd.f32 %v339, %v340
        %v342 = vsel %vm334, %v329, 0.0
        %v343 = vadd.f32 %v341, %v342
        %v344 = vsel %vm334, %v330, 0.0
        %v345 = vadd.f32 %v343, %v344
        %v346 = vsel %vm334, %v331, 0.0
        %v347 = vadd.f32 %v345, %v346
        %v348 = vsel %vm334, %v332, 0.0
        %v349 = vadd.f32 %v347, %v348
        %vm350 = vcmask 117760
        %v351 = vsel %vm350, %v333, 0.0
        %v352 = vadd.f32 %v349, %v351
        %v353 = vrot.slane %v352, 4
        %v354 = vadd.f32 %v352, %v353
        %v355 = vrot.slane %v354, 2
        %v356 = vadd.f32 %v354, %v355
        %v357 = vrot.slane %v356, 1
        %v358 = vadd.f32 %v356, %v357
        %v359 = vadd.f32 %v324, %v358
        %vm360 = vcmask 114688
        %361 = vst.msk [vmem:[#allocation4] sm:$0x1] %vm360, %v359
      $region52: #{logsigrnn_forward.4} parent=31 // pred_fallthru
        _
      // Predicated region
      $region53: #{logsigrnn_forward.4} parent=31 // pred_check
        _
      $region54: #{logsigrnn_forward.4} parent=31 // pred_check_branch
        %363 = sbr.rel (%p290) target = $region56
      $region55: #{logsigrnn_forward.4} parent=31 // pred_region
        %v364 = vld [vmem:[#allocation4] sm:$0x1]
        %v365 = vmul.f32 %v364, 0.014705882
        %v366 = vadd.f32 %v365, 1e-05
        %v367 = vrsqrt.pop %v366
        %v368 = vld [vmem:[%s1] sm:$0x1]
        %v369 = vmul.f32 %v368, %v367
        %vm370 = vcmask 114688
        %371 = vst.msk [vmem:[%s3] sm:$0x1] %vm370, %v369
        %v372 = vld [vmem:[%s2] sm:$0x1]
        %v373 = vld [vmem:[#allocation3] sm:$0x1]
        %v374 = vmul.f32 %v373, %v369
        %v375 = vsub.f32 %v372, %v374
        %376 = vst.msk [vmem:[%s4] sm:$0x1] %vm370, %v375
      $region56: #{logsigrnn_forward.4} parent=31 // pred_fallthru
        _
      // Predicated region
      $region57: #{logsigrnn_forward.4} parent=31 // pred_check
        %p377 = pneg %p109
      $region58: #{logsigrnn_forward.4} parent=31 // pred_check_branch
        %379 = sbr.rel (%p377) target = $region60
      $region59: #{logsigrnn_forward.4} parent=31 // pred_region
        _
      $region60: #{logsigrnn_forward.4} parent=31 // pred_fallthru
        _
      // Predicated region
      $region61: #{logsigrnn_forward.4} parent=31 // pred_check
        %p380 = pneg %p130
      $region62: #{logsigrnn_forward.4} parent=31 // pred_check_branch
        %382 = sbr.rel (%p380) target = $region64
      $region63: #{logsigrnn_forward.4} parent=31 // pred_region
        _
      $region64: #{logsigrnn_forward.4} parent=31 // pred_fallthru
        _
      // Predicated region
      $region65: #{logsigrnn_forward.4} parent=31 // pred_check
        %p383 = pneg %p109
      $region66: #{logsigrnn_forward.4} parent=31 // pred_check_branch
        %385 = sbr.rel (%p383) target = $region68
      $region67: #{logsigrnn_forward.4} parent=31 // pred_region
        _
      $region68: #{logsigrnn_forward.4} parent=31 // pred_fallthru
        _
      // Predicated region
      $region69: #{logsigrnn_forward.4} parent=31 // pred_check
        %p386 = pneg %p130
      $region70: #{logsigrnn_forward.4} parent=31 // pred_check_branch
        %388 = sbr.rel (%p386) target = $region72
      $region71: #{logsigrnn_forward.4} parent=31 // pred_region
        _
      $region72: #{logsigrnn_forward.4} parent=31 // pred_fallthru
        _
    $region32: #{logsigrnn_forward.4} parent=5 // pred_fallthru
      _
    %p389 = scmp.le.s32.totalorder 2, %s11
    // Predicated region
    $region73: #{logsigrnn_forward.4} parent=5 // pred_check
      %p390 = pneg %p389
    $region74: #{logsigrnn_forward.4} parent=5 // pred_check_branch
      %392 = sbr.rel (%p390) target = $region76
    $region75: #{logsigrnn_forward.4} parent=5 // pred_region
      %s393 = ssub.s32 %s11, 2
    $region76: #{logsigrnn_forward.4} parent=5 // pred_fallthru
      _
  $region6: #{logsigrnn_forward.4} parent=0 // loop_footer
    %s15 = sadd.s32 1, %s11
  $region7: #{logsigrnn_forward.4} parent=0 // loop_footer_branch
    %10 = sbr.rel target = $region3
  $region8: #{logsigrnn_forward.4} parent=0 // loop_exit
    _

// kernel: logsigrnn_forward.7
$region0: #{logsigrnn_forward.7}
  #allocation0 [shape = 'u32[]', space=smem, size = 0x4, offset = 0x4, fixed_abs, tag = 'smem constant byte address 0x4 - core index']
  #allocation1 [shape = 'u32[144,128]{1,0:T(1,128)}', space=vmem, size = 0x12000, scoped, tag = 'internal scratch']
  %s0 = inlined_call_operand.vmem [shape: f32[4,128], index: 0, kind: input, shape index: {}]
  %s1 = inlined_call_operand.vmem [shape: f32[2,4], index: 1, kind: input, shape index: {}]
  %s2 = inlined_call_operand.vmem [shape: f32[128,10], index: 2, kind: input, shape index: {}]
  %s3 = inlined_call_operand.vmem [shape: f32[1,10], index: 3, kind: input, shape index: {}]
  %s4 = inlined_call_operand.hbm [shape: f32[2,10], index: 4, kind: output, shape index: {}]
  %s5 = sld [smem:[#allocation0]]
  $region26: #{logsigrnn_forward.7} parent=0
    _
  %s7 = ssub.s32 1, %s5
  %s8 = scalar_select 0, %s7, %s5
  $region1: #{logsigrnn_forward.7} parent=0
    #allocation2 [shape = 'u8[1024]{0}', space=vmem, size = 0x400, scoped, tag = 'output window, operand 0, single buffered']
    #allocation3 [shape = 's32[1]{0}', space=sflag, size = 0x4, scoped, tag = 'scoped memory for logsigrnn_forward.7']
    %9 = vsyncpa [#allocation3], 0
    // Predicated region
    $region2: #{logsigrnn_forward.7} parent=1 // pred_check
      _
    $region3: #{logsigrnn_forward.7} parent=1 // pred_check_branch
      %11 = sbr.rel (0) target = $region5
    $region4: #{logsigrnn_forward.7} parent=1 // pred_region
      _
    $region5: #{logsigrnn_forward.7} parent=1 // pred_fallthru
      _
    // Predicated region
    $region6: #{logsigrnn_forward.7} parent=1 // pred_check
      _
    $region7: #{logsigrnn_forward.7} parent=1 // pred_check_branch
      %13 = sbr.rel (0) target = $region9
    $region8: #{logsigrnn_forward.7} parent=1 // pred_region
      _
    $region9: #{logsigrnn_forward.7} parent=1 // pred_fallthru
      _
    // Predicated region
    $region10: #{logsigrnn_forward.7} parent=1 // pred_check
      _
    $region11: #{logsigrnn_forward.7} parent=1 // pred_check_branch
      %15 = sbr.rel (0) target = $region13
    $region12: #{logsigrnn_forward.7} parent=1 // pred_region
      _
    $region13: #{logsigrnn_forward.7} parent=1 // pred_fallthru
      _
    // Predicated region
    $region14: #{logsigrnn_forward.7} parent=1 // pred_check
      _
    $region15: #{logsigrnn_forward.7} parent=1 // pred_check_branch
      %17 = sbr.rel (0) target = $region17
    $region16: #{logsigrnn_forward.7} parent=1 // pred_region
      _
    $region17: #{logsigrnn_forward.7} parent=1 // pred_fallthru
      _
    %v18 = vld [vmem:[%s0] sm:$0xf]
    %v19 = vld [vmem:[%s2] sm:$0xff]
    %v20 = vld [vmem:[%s2 + $0x8] sm:$0xff]
    %v21 = vld [vmem:[%s2 + $0x10] sm:$0xff]
    %v22 = vld [vmem:[%s2 + $0x18] sm:$0xff]
    %v23 = vld [vmem:[%s2 + $0x20] sm:$0xff]
    %v24 = vld [vmem:[%s2 + $0x28] sm:$0xff]
    %v25 = vld [vmem:[%s2 + $0x30] sm:$0xff]
    %v26 = vld [vmem:[%s2 + $0x38] sm:$0xff]
    %v27 = vld [vmem:[%s2 + $0x40] sm:$0xff]
    %v28 = vld [vmem:[%s2 + $0x48] sm:$0xff]
    %v29 = vld [vmem:[%s2 + $0x50] sm:$0xff]
    %v30 = vld [vmem:[%s2 + $0x58] sm:$0xff]
    %v31 = vld [vmem:[%s2 + $0x60] sm:$0xff]
    %v32 = vld [vmem:[%s2 + $0x68] sm:$0xff]
    %v33 = vld [vmem:[%s2 + $0x70] sm:$0xff]
    %v34 = vld [vmem:[%s2 + $0x78] sm:$0xff]
    %35 = vmatprep.subr.mxu0 0.0
    %36 = vmatpush1.msra.mxu0 %v19
    %37 = vmatprep.subr.mxu0 0.0
    %38 = vmatpush1.msra.mxu0 %v20
    %39 = vmatprep.subr.mxu0 0.0
    %40 = vmatpush1.msra.mxu0 %v21
    %41 = vmatprep.subr.mxu0 0.0
    %42 = vmatpush1.msra.mxu0 %v22
    %43 = vmatprep.subr.mxu0 0.0
    %44 = vmatpush1.msra.mxu0 %v23
    %45 = vmatprep.subr.mxu0 0.0
    %46 = vmatpush1.msra.mxu0 %v24
    %47 = vmatprep.subr.mxu0 0.0
    %48 = vmatpush1.msra.mxu0 %v25
    %49 = vmatprep.subr.mxu0 0.0
    %50 = vmatpush1.msra.mxu0 %v26
    %51 = vmatprep.subr.mxu0 0.0
    %52 = vmatpush1.msra.mxu0 %v27
    %53 = vmatprep.subr.mxu0 0.0
    %54 = vmatpush1.msra.mxu0 %v28
    %55 = vmatprep.subr.mxu0 0.0
    %56 = vmatpush1.msra.mxu0 %v29
    %57 = vmatprep.subr.mxu0 0.0
    %58 = vmatpush1.msra.mxu0 %v30
    %59 = vmatprep.subr.mxu0 0.0
    %60 = vmatpush1.msra.mxu0 %v31
    %61 = vmatprep.subr.mxu0 0.0
    %62 = vmatpush1.msra.mxu0 %v32
    %63 = vmatprep.subr.mxu0 0.0
    %64 = vmatpush1.msra.mxu0 %v33
    %65 = vmatprep.subr.mxu0 0.0
    %66 = vmatpush1.msra.mxu0 %v34
    %67 = vmatprep.subr.mxu0 0.0
    %68 = vmatpush1.msra.mxu0 0.0
    %69 = vmatprep.subr.mxu0 0.0
    %70 = vmatpush1.msra.mxu0 0.0
    %71 = vmatprep.subr.mxu0 0.0
    %72 = vmatpush1.msra.mxu0 0.0
    %73 = vmatprep.subr.mxu0 0.0
    %74 = vmatpush1.msra.mxu0 0.0
    %75 = vmatprep.subr.mxu0 0.0
    %76 = vmatpush1.msra.mxu0 0.0
    %77 = vmatprep.subr.mxu0 0.0
    %78 = vmatpush1.msra.mxu0 0.0
    %79 = vmatprep.subr.mxu0 0.0
    %80 = vmatpush1.msra.mxu0 0.0
    %81 = vmatprep.subr.mxu0 0.0
    %82 = vmatpush1.msra.mxu0 0.0
    %83 = vmatprep.subr.mxu0 0.0
    %84 = vmatpush1.msra.mxu0 0.0
    %85 = vmatprep.subr.mxu0 0.0
    %86 = vmatpush1.msra.mxu0 0.0
    %87 = vmatprep.subr.mxu0 0.0
    %88 = vmatpush1.msra.mxu0 0.0
    %89 = vmatprep.subr.mxu0 0.0
    %90 = vmatpush1.msra.mxu0 0.0
    %91 = vmatprep.subr.mxu0 0.0
    %92 = vmatpush1.msra.mxu0 0.0
    %93 = vmatprep.subr.mxu0 0.0
    %94 = vmatpush1.msra.mxu0 0.0
    %95 = vmatprep.subr.mxu0 0.0
    %96 = vmatpush1.msra.mxu0 0.0
    %97 = vmatprep.subr.mxu0 0.0
    %98 = vmatpush1.msra.mxu0 0.0
    %99 = vmatprep.mubr.f32.mxu0 0.0
    %100 = vmatmul.mubr.f32.gmra.mrb[0].mxu0 %v18
    %v101 = vpop.f32.mrb[0].mxu0
    %v102 = vadd.f32 0.0, %v101
    %v103 = vpop.f32.mrb[0].mxu0
    %104 = vdwg.mxu0
    %v105 = vld [vmem:[%s1] sm:$0x3]
    %v106 = vld [vmem:[%s3] sm:$0x1]
    %v108 = vlaneseq
    %v109 = vshrl.u32 %v108, 7
    %v110 = vsub.s32 0, %v109
    %v111 = vrot.slane %v106, %v110
    %vm113 = vcmask 31744
    %v115 = vsel %vm113, %v105, 0
    %vm117 = vcmask 1043456
    %v119 = vsel %vm117, %v102, 0
    %121 = vmatprep.subr.mxu0 0.0
    %122 = vmatpush1.msra.mxu0 %v119
    %123 = vmatprep.subr.mxu0 0.0
    %124 = vmatpush1.msra.mxu0 0.0
    %125 = vmatprep.subr.mxu0 0.0
    %126 = vmatpush1.msra.mxu0 0.0
    %127 = vmatprep.subr.mxu0 0.0
    %128 = vmatpush1.msra.mxu0 0.0
    %129 = vmatprep.subr.mxu0 0.0
    %130 = vmatpush1.msra.mxu0 0.0
    %131 = vmatprep.subr.mxu0 0.0
    %132 = vmatpush1.msra.mxu0 0.0
    %133 = vmatprep.subr.mxu0 0.0
    %134 = vmatpush1.msra.mxu0 0.0
    %135 = vmatprep.subr.mxu0 0.0
    %136 = vmatpush1.msra.mxu0 0.0
    %137 = vmatprep.subr.mxu0 0.0
    %138 = vmatpush1.msra.mxu0 0.0
    %139 = vmatprep.subr.mxu0 0.0
    %140 = vmatpush1.msra.mxu0 0.0
    %141 = vmatprep.subr.mxu0 0.0
    %142 = vmatpush1.msra.mxu0 0.0
    %143 = vmatprep.subr.mxu0 0.0
    %144 = vmatpush1.msra.mxu0 0.0
    %145 = vmatprep.subr.mxu0 0.0
    %146 = vmatpush1.msra.mxu0 0.0
    %147 = vmatprep.subr.mxu0 0.0
    %148 = vmatpush1.msra.mxu0 0.0
    %149 = vmatprep.subr.mxu0 0.0
    %150 = vmatpush1.msra.mxu0 0.0
    %151 = vmatprep.subr.mxu0 0.0
    %152 = vmatpush1.msra.mxu0 0.0
    %153 = vmatprep.subr.mxu0 0.0
    %154 = vmatpush1.msra.mxu0 0.0
    %155 = vmatprep.subr.mxu0 0.0
    %156 = vmatpush1.msra.mxu0 0.0
    %157 = vmatprep.subr.mxu0 0.0
    %158 = vmatpush1.msra.mxu0 0.0
    %159 = vmatprep.subr.mxu0 0.0
    %160 = vmatpush1.msra.mxu0 0.0
    %161 = vmatprep.subr.mxu0 0.0
    %162 = vmatpush1.msra.mxu0 0.0
    %163 = vmatprep.subr.mxu0 0.0
    %164 = vmatpush1.msra.mxu0 0.0
    %165 = vmatprep.subr.mxu0 0.0
    %166 = vmatpush1.msra.mxu0 0.0
    %167 = vmatprep.subr.mxu0 0.0
    %168 = vmatpush1.msra.mxu0 0.0
    %169 = vmatprep.subr.mxu0 0.0
    %170 = vmatpush1.msra.mxu0 0.0
    %171 = vmatprep.subr.mxu0 0.0
    %172 = vmatpush1.msra.mxu0 0.0
    %173 = vmatprep.subr.mxu0 0.0
    %174 = vmatpush1.msra.mxu0 0.0
    %175 = vmatprep.subr.mxu0 0.0
    %176 = vmatpush1.msra.mxu0 0.0
    %177 = vmatprep.subr.mxu0 0.0
    %178 = vmatpush1.msra.mxu0 0.0
    %179 = vmatprep.subr.mxu0 0.0
    %180 = vmatpush1.msra.mxu0 0.0
    %181 = vmatprep.subr.mxu0 0.0
    %182 = vmatpush1.msra.mxu0 0.0
    %183 = vmatprep.subr.mxu0 0.0
    %184 = vmatpush1.msra.mxu0 0.0
    %185 = vmatprep.mubr.f32.mxu0 0.0
    %186 = vmatmul.mubr.f32.gmra.mrb[0].mxu0 %v115
    %v187 = vpop.f32.mrb[0].mxu0
    %v188 = vadd.f32 %v111, %v187
    %v189 = vpop.f32.mrb[0].mxu0
    %190 = vdwg.mxu0
    %vm191 = vcmask 74752
    %192 = vst.msk [vmem:[#allocation2] sm:$0x3] %vm191, %v188
    // Predicated region
    $region18: #{logsigrnn_forward.7} parent=1 // pred_check
      _
    $region19: #{logsigrnn_forward.7} parent=1 // pred_check_branch
      %194 = sbr.rel (0) target = $region21
    $region20: #{logsigrnn_forward.7} parent=1 // pred_region
      %s196 = ssub.s32 32, 32
      %197 = vsyncadd [#allocation3], %s196
      %s199 = sshll.u32 [#allocation2], 4
      %s200 = int_to_ptr.vmem [resolvable:$true] %s199
      %202 = dma.vmem_to_hbm [thread:$0]  %s200, 32, %s4, [#allocation3]
    $region21: #{logsigrnn_forward.7} parent=1 // pred_fallthru
      _
    // Predicated region
    $region22: #{logsigrnn_forward.7} parent=1 // pred_check
      _
    $region23: #{logsigrnn_forward.7} parent=1 // pred_check_branch
      %204 = sbr.rel (0) target = $region25
    $region24: #{logsigrnn_forward.7} parent=1 // pred_region
      %205 = dma.done [#allocation3], 32
    $region25: #{logsigrnn_forward.7} parent=1 // pred_fallthru
      _
    %206 = vsyncpa [#allocation3], 1

// kernel: logsigrnn_forward.6
$region0: #{logsigrnn_forward.6}
  #allocation0 [shape = 'u32[]', space=smem, size = 0x4, offset = 0x4, fixed_abs, tag = 'smem constant byte address 0x4 - core index']
  #allocation1 [shape = 'u32[144,128]{1,0:T(1,128)}', space=vmem, size = 0x12000, scoped, tag = 'internal scratch']
  #allocation2 [shape = 'f32[4,32]{1,0:T(4,128)}', space=vmem, size = 0x800, scoped, tag = 'scratch operand']
  #allocation3 [shape = 'f32[4,32]{1,0:T(4,128)}', space=vmem, size = 0x800, scoped, tag = 'scratch operand']
  %s0 = inlined_call_operand.vmem [shape: f32[4,4,4,32], index: 0, kind: input, shape index: {}]
  %s1 = inlined_call_operand.vmem [shape: f32[4,32,32], index: 1, kind: input, shape index: {}]
  %s2 = inlined_call_operand.vmem [shape: f32[4,1,32], index: 2, kind: input, shape index: {}]
  %s3 = inlined_call_operand.vmem [shape: f32[4,4,32], index: 3, kind: output, shape index: {}]
  %s4 = sld [smem:[#allocation0]]
  $region49: #{logsigrnn_forward.6} parent=0
    _
  %s6 = ssub.s32 1, %s4
  %s7 = scalar_select 0, %s6, %s4
  loop: start=0, step=1, limit=6
  $region2: #{logsigrnn_forward.6} parent=0 // loop_pre_header
    _
  $region3: #{logsigrnn_forward.6} parent=0 // loop_header
    %s9 = sphi 0, %s13
    %p10 = scmp.ge.s32.totalorder %s9, 6
    %s16 = sphi 0, %s28
    %s17 = sphi 0, %s24
    %s18 = sphi 0, %s16
    %s19 = sphi 0, %s17
    %s20 = sphi 0, %s18
    %s21 = sphi 0, %s19
    %s33 = sphi 0, %s35
    %s36 = sphi 0, %s33
    %s37 = sphi 0, %s36
    %s53 = sphi 0, %s37
    %s57 = sphi 0, %s57
    %s59 = sphi 0, %s57
    %s60 = sphi 0, %s59
    %s74 = sphi 0, %s60
    %s78 = sphi 0, %s78
    %s80 = sphi 0, %s78
    %s81 = sphi 0, %s80
    %s95 = sphi 0, %s81
    %s103 = sphi 0, %s105
    %s106 = sphi 0, %s103
    %s107 = sphi 0, %s106
    %s123 = sphi 0, %s107
  $region4: #{logsigrnn_forward.6} parent=0 // loop_header_branch
    %12 = sbr.rel (%p10) target = $region8
  $region5: #{logsigrnn_forward.6} parent=0 // loop_body
    %s14 = ssub.s32 %s9, 1
    %s15 = ssub.s32 %s9, 2
    %s22 = sadd.s32 1, %s17
    %p23 = scmp.ge.s32.totalorder %s22, 4
    %s24 = scalar_select %p23, 0, %s22
    %s25 = sadd.s32 1, %s16
    %s26 = scalar_select %p23, %s25, %s16
    %p27 = scmp.ge.s32.totalorder %s26, 1
    %s28 = scalar_select %p27, 0, %s26
    %s29 = ssub.s32 %s17, %s24
    %s30 = ssub.s32 %s16, %s28
    %s31 = sor.u32 %s29, %s30
    %p32 = scmp.eq.s32.totalorder %s31, 0
    %s34 = sadd.s32 %s33, 1
    %s35 = scalar_select %p32, %s33, %s34
    %p38 = pneg %p32
    %p39 = scmp.eq.s32.totalorder %s9, 3
    %p40 = por %p38, %p39
    %p41 = scmp.ne.s32.totalorder %s33, %s36
    %p42 = scmp.eq.s32.totalorder %s9, 0
    %p43 = por %p41, %p42
    %p44 = scmp.ne.s32.totalorder %s33, %s36
    %p45 = scmp.eq.s32.totalorder %s14, 3
    %p46 = por %p44, %p45
    %p47 = scmp.ne.s32.totalorder %s36, %s37
    %p48 = scmp.eq.s32.totalorder %s14, 0
    %p49 = por %p47, %p48
    %p50 = scmp.ne.s32.totalorder %s36, %s37
    %p51 = scmp.eq.s32.totalorder %s15, 3
    %p52 = por %p50, %p51
    %p54 = scmp.ne.s32.totalorder %s37, %s53
    %p55 = scmp.eq.s32.totalorder %s15, 0
    %p56 = por %p54, %p55
    %s58 = sadd.s32 %s57, 1
    %p61 = scmp.eq.s32.totalorder %s9, 3
    %p62 = scmp.ne.s32.totalorder %s57, %s59
    %p63 = scmp.eq.s32.totalorder %s9, 0
    %p64 = por %p62, %p63
    %p65 = scmp.ne.s32.totalorder %s57, %s59
    %p66 = scmp.eq.s32.totalorder %s14, 3
    %p67 = por %p65, %p66
    %p68 = scmp.ne.s32.totalorder %s59, %s60
    %p69 = scmp.eq.s32.totalorder %s14, 0
    %p70 = por %p68, %p69
    %p71 = scmp.ne.s32.totalorder %s59, %s60
    %p72 = scmp.eq.s32.totalorder %s15, 3
    %p73 = por %p71, %p72
    %p75 = scmp.ne.s32.totalorder %s60, %s74
    %p76 = scmp.eq.s32.totalorder %s15, 0
    %p77 = por %p75, %p76
    %s79 = sadd.s32 %s78, 1
    %p82 = scmp.eq.s32.totalorder %s9, 3
    %p83 = scmp.ne.s32.totalorder %s78, %s80
    %p84 = scmp.eq.s32.totalorder %s9, 0
    %p85 = por %p83, %p84
    %p86 = scmp.ne.s32.totalorder %s78, %s80
    %p87 = scmp.eq.s32.totalorder %s14, 3
    %p88 = por %p86, %p87
    %p89 = scmp.ne.s32.totalorder %s80, %s81
    %p90 = scmp.eq.s32.totalorder %s14, 0
    %p91 = por %p89, %p90
    %p92 = scmp.ne.s32.totalorder %s80, %s81
    %p93 = scmp.eq.s32.totalorder %s15, 3
    %p94 = por %p92, %p93
    %p96 = scmp.ne.s32.totalorder %s81, %s95
    %p97 = scmp.eq.s32.totalorder %s15, 0
    %p98 = por %p96, %p97
    %s99 = ssub.s32 %s17, %s24
    %s100 = ssub.s32 %s16, %s28
    %s101 = sor.u32 %s99, %s100
    %p102 = scmp.eq.s32.totalorder %s101, 0
    %s104 = sadd.s32 %s103, 1
    %s105 = scalar_select %p102, %s103, %s104
    %p108 = pneg %p102
    %p109 = scmp.eq.s32.totalorder %s9, 3
    %p110 = por %p108, %p109
    %p111 = scmp.ne.s32.totalorder %s103, %s106
    %p112 = scmp.eq.s32.totalorder %s9, 0
    %p113 = por %p111, %p112
    %p114 = scmp.ne.s32.totalorder %s103, %s106
    %p115 = scmp.eq.s32.totalorder %s14, 3
    %p116 = por %p114, %p115
    %p117 = scmp.ne.s32.totalorder %s106, %s107
    %p118 = scmp.eq.s32.totalorder %s14, 0
    %p119 = por %p117, %p118
    %p120 = scmp.ne.s32.totalorder %s106, %s107
    %p121 = scmp.eq.s32.totalorder %s15, 3
    %p122 = por %p120, %p121
    %p124 = scmp.ne.s32.totalorder %s107, %s123
    %p125 = scmp.eq.s32.totalorder %s15, 0
    %p126 = por %p124, %p125
    %p127 = scmp.le.s32.totalorder 1, %s9
    %p128 = scmp.lt.s32.totalorder %s9, 5
    %p129 = pnand %p127, %p128
    %p130 = pneg %p129
    // Predicated region
    $region9: #{logsigrnn_forward.6} parent=5 // pred_check
      _
    $region10: #{logsigrnn_forward.6} parent=5 // pred_check_branch
      %132 = sbr.rel (%p129) target = $region12
    $region11: #{logsigrnn_forward.6} parent=5 // pred_region
      %s133 = ssub.s32 %s9, 1
      // Predicated region
      $region13: #{logsigrnn_forward.6} parent=11 // pred_check
        %p134 = pneg %p70
      $region14: #{logsigrnn_forward.6} parent=11 // pred_check_branch
        %136 = sbr.rel (%p134) target = $region16
      $region15: #{logsigrnn_forward.6} parent=11 // pred_region
        _
      $region16: #{logsigrnn_forward.6} parent=11 // pred_fallthru
        _
      // Predicated region
      $region17: #{logsigrnn_forward.6} parent=11 // pred_check
        %p137 = pneg %p91
      $region18: #{logsigrnn_forward.6} parent=11 // pred_check_branch
        %139 = sbr.rel (%p137) target = $region20
      $region19: #{logsigrnn_forward.6} parent=11 // pred_region
        _
      $region20: #{logsigrnn_forward.6} parent=11 // pred_fallthru
        _
    $region12: #{logsigrnn_forward.6} parent=5 // pred_fallthru
      _
    %p140 = scmp.lt.s32.totalorder %s9, 4
    // Predicated region
    $region21: #{logsigrnn_forward.6} parent=5 // pred_check
      %p141 = pneg %p140
    $region22: #{logsigrnn_forward.6} parent=5 // pred_check_branch
      %143 = sbr.rel (%p141) target = $region24
    $region23: #{logsigrnn_forward.6} parent=5 // pred_region
      // Predicated region
      $region25: #{logsigrnn_forward.6} parent=23 // pred_check
        %p144 = pneg %p43
      $region26: #{logsigrnn_forward.6} parent=23 // pred_check_branch
        %146 = sbr.rel (%p144) target = $region28
      $region27: #{logsigrnn_forward.6} parent=23 // pred_region
        %p147 = scmp.lt.s32.totalorder %s17, 3
        %s148 = scalar_select %p147, %s17, 3
        %p149 = scmp.lt.s32.totalorder %s16, 0
        %s150 = scalar_select %p149, %s16, 0
        %s151 = smul.addr %s148, 4
        %s152 = sadd.s32 %s150, %s151
        %s153 = smul.addr %s152, 4
        %s154 = scalar_lea.vmem %s0, %s153
      $region28: #{logsigrnn_forward.6} parent=23 // pred_fallthru
        _
    $region24: #{logsigrnn_forward.6} parent=5 // pred_fallthru
      _
    %p155 = scmp.le.s32.totalorder 1, %s9
    %p156 = scmp.lt.s32.totalorder %s9, 5
    %p157 = pnand %p155, %p156
    %p158 = pneg %p157
    // Predicated region
    $region29: #{logsigrnn_forward.6} parent=5 // pred_check
      _
    $region30: #{logsigrnn_forward.6} parent=5 // pred_check_branch
      %160 = sbr.rel (%p157) target = $region32
    $region31: #{logsigrnn_forward.6} parent=5 // pred_region
      %s161 = ssub.s32 %s9, 1
      %p162 = scmp.lt.s32.totalorder %s19, 3
      %s163 = scalar_select %p162, %s19, 3
      %p164 = scmp.lt.s32.totalorder %s18, 0
      %s165 = scalar_select %p164, %s18, 0
      %s166 = smul.addr %s163, 4
      %s167 = sadd.s32 %s165, %s166
      %s168 = smul.addr %s167, 4
      %s169 = scalar_lea.vmem %s0, %s168
      %p170 = pneg %p49
      %p171 = pneg %p46
      %p172 = pneg %p70
      %p173 = pneg %p67
      %p174 = pneg %p91
      %p175 = pneg %p88
      %p176 = pneg %p119
      %p177 = pneg %p116
      %p178 = scmp.lt.s32.totalorder %s19, 3
      %s179 = scalar_select %p178, %s19, 3
      %p180 = scmp.lt.s32.totalorder %s18, 0
      %s181 = scalar_select %p180, %s18, 0
      %s182 = sadd.s32 %s181, %s179
      %s183 = smul.addr %s182, 4
      %s184 = scalar_lea.vmem %s3, %s183
      %p185 = scmp.lt.s32.totalorder %s19, 3
      %s186 = scalar_select %p185, %s19, 3
      %p187 = scmp.lt.s32.totalorder %s18, 0
      %s188 = scalar_select %p187, %s18, 0
      %s189 = smul.addr %s186, 4
      %s190 = sadd.s32 %s188, %s189
      %s191 = smul.addr %s190, 4
      %s192 = scalar_lea.vmem %s0, %s191
      %p193 = scmp.lt.s32.totalorder %s19, 3
      %s194 = scalar_select %p193, %s19, 3
      %p195 = scmp.lt.s32.totalorder %s18, 0
      %s196 = scalar_select %p195, %s18, 0
      %s197 = sadd.s32 %s196, %s194
      %s198 = smul.addr %s197, 4
      %s199 = scalar_lea.vmem %s3, %s198
      %p200 = scmp.eq.s32.totalorder %s19, 0
      // Predicated region
      $region33: #{logsigrnn_forward.6} parent=31 // pred_check
        %p201 = pneg %p200
      $region34: #{logsigrnn_forward.6} parent=31 // pred_check_branch
        %203 = sbr.rel (%p201) target = $region36
      $region35: #{logsigrnn_forward.6} parent=31 // pred_region
        %vm204 = vcmask 257024
        %205 = vst.msk [vmem:[#allocation2] sm:$0xf] %vm204, 0.0
        %206 = vst.msk [vmem:[#allocation3] sm:$0xf] %vm204, 0.0
      $region36: #{logsigrnn_forward.6} parent=31 // pred_fallthru
        _
      %v207 = vld [vmem:[#allocation2] sm:$0xf]
      %v208 = vld [vmem:[%s192] sm:$0xf]
      %v209 = vld [vmem:[%s192 + $0x4] sm:$0xf]
      %v210 = vld [vmem:[%s192 + $0x8] sm:$0xf]
      %v211 = vld [vmem:[%s192 + $0xc] sm:$0xf]
      %v212 = vld [vmem:[%s2] sm:$0x1]
      %v213 = vld [vmem:[%s2 + $0x1] sm:$0x1]
      %v214 = vld [vmem:[%s2 + $0x2] sm:$0x1]
      %v215 = vld [vmem:[%s2 + $0x3] sm:$0x1]
      %v216 = vld [vmem:[%s1] sm:$0xff]
      %v217 = vld [vmem:[%s1 + $0x8] sm:$0xff]
      %v218 = vld [vmem:[%s1 + $0x10] sm:$0xff]
      %v219 = vld [vmem:[%s1 + $0x18] sm:$0xff]
      %vm220 = vcmask 261120
      %v222 = vsel %vm220, %v207, 0
      %224 = vmatprep.subr.mxu0 0.0
      %225 = vmatpush1.msra.mxu0 %v216
      %226 = vmatprep.subr.mxu0 0.0
      %227 = vmatpush1.msra.mxu0 %v217
      %228 = vmatprep.subr.mxu0 0.0
      %229 = vmatpush1.msra.mxu0 %v218
      %230 = vmatprep.subr.mxu0 0.0
      %231 = vmatpush1.msra.mxu0 %v219
      %232 = vmatprep.subr.mxu0 0.0
      %233 = vmatpush1.msra.mxu0 0.0
      %234 = vmatprep.subr.mxu0 0.0
      %235 = vmatpush1.msra.mxu0 0.0
      %236 = vmatprep.subr.mxu0 0.0
      %237 = vmatpush1.msra.mxu0 0.0
      %238 = vmatprep.subr.mxu0 0.0
      %239 = vmatpush1.msra.mxu0 0.0
      %240 = vmatprep.subr.mxu0 0.0
      %241 = vmatpush1.msra.mxu0 0.0
      %242 = vmatprep.subr.mxu0 0.0
      %243 = vmatpush1.msra.mxu0 0.0
      %244 = vmatprep.subr.mxu0 0.0
      %245 = vmatpush1.msra.mxu0 0.0
      %246 = vmatprep.subr.mxu0 0.0
      %247 = vmatpush1.msra.mxu0 0.0
      %248 = vmatprep.subr.mxu0 0.0
      %249 = vmatpush1.msra.mxu0 0.0
      %250 = vmatprep.subr.mxu0 0.0
      %251 = vmatpush1.msra.mxu0 0.0
      %252 = vmatprep.subr.mxu0 0.0
      %253 = vmatpush1.msra.mxu0 0.0
      %254 = vmatprep.subr.mxu0 0.0
      %255 = vmatpush1.msra.mxu0 0.0
      %256 = vmatprep.subr.mxu0 0.0
      %257 = vmatpush1.msra.mxu0 0.0
      %258 = vmatprep.subr.mxu0 0.0
      %259 = vmatpush1.msra.mxu0 0.0
      %260 = vmatprep.subr.mxu0 0.0
      %261 = vmatpush1.msra.mxu0 0.0
      %262 = vmatprep.subr.mxu0 0.0
      %263 = vmatpush1.msra.mxu0 0.0
      %264 = vmatprep.subr.mxu0 0.0
      %265 = vmatpush1.msra.mxu0 0.0
      %266 = vmatprep.subr.mxu0 0.0
      %267 = vmatpush1.msra.mxu0 0.0
      %268 = vmatprep.subr.mxu0 0.0
      %269 = vmatpush1.msra.mxu0 0.0
      %270 = vmatprep.subr.mxu0 0.0
      %271 = vmatpush1.msra.mxu0 0.0
      %272 = vmatprep.subr.mxu0 0.0
      %273 = vmatpush1.msra.mxu0 0.0
      %274 = vmatprep.subr.mxu0 0.0
      %275 = vmatpush1.msra.mxu0 0.0
      %276 = vmatprep.subr.mxu0 0.0
      %277 = vmatpush1.msra.mxu0 0.0
      %278 = vmatprep.subr.mxu0 0.0
      %279 = vmatpush1.msra.mxu0 0.0
      %280 = vmatprep.subr.mxu0 0.0
      %281 = vmatpush1.msra.mxu0 0.0
      %282 = vmatprep.subr.mxu0 0.0
      %283 = vmatpush1.msra.mxu0 0.0
      %284 = vmatprep.subr.mxu0 0.0
      %285 = vmatpush1.msra.mxu0 0.0
      %286 = vmatprep.subr.mxu0 0.0
      %287 = vmatpush1.msra.mxu0 0.0
      %288 = vmatprep.mubr.f32.mxu0 0.0
      %289 = vmatmul.mubr.f32.gmra.mrb[0].mxu0 %v222
      %v290 = vpop.f32.mrb[0].mxu0
      %v291 = vadd.f32 0.0, %v290
      %v292 = vpop.f32.mrb[0].mxu0
      %293 = vdwg.mxu0
      %v294 = vadd.f32 %v208, %v291
      %v296 = vlaneseq
      %v297 = vshrl.u32 %v296, 7
      %v298 = vsub.s32 0, %v297
      %v299 = vrot.slane %v212, %v298
      %v301 = vadd.f32 %v294, %v299
      %s302 = scalar_lea.vmem %s1, 32
      %v303 = vld [vmem:[%s302] sm:$0xff]
      %v304 = vld [vmem:[%s302 + $0x8] sm:$0xff]
      %v305 = vld [vmem:[%s302 + $0x10] sm:$0xff]
      %v306 = vld [vmem:[%s302 + $0x18] sm:$0xff]
      %307 = vmatprep.subr.mxu0 0.0
      %308 = vmatpush1.msra.mxu0 %v303
      %309 = vmatprep.subr.mxu0 0.0
      %310 = vmatpush1.msra.mxu0 %v304
      %311 = vmatprep.subr.mxu0 0.0
      %312 = vmatpush1.msra.mxu0 %v305
      %313 = vmatprep.subr.mxu0 0.0
      %314 = vmatpush1.msra.mxu0 %v306
      %315 = vmatprep.subr.mxu0 0.0
      %316 = vmatpush1.msra.mxu0 0.0
      %317 = vmatprep.subr.mxu0 0.0
      %318 = vmatpush1.msra.mxu0 0.0
      %319 = vmatprep.subr.mxu0 0.0
      %320 = vmatpush1.msra.mxu0 0.0
      %321 = vmatprep.subr.mxu0 0.0
      %322 = vmatpush1.msra.mxu0 0.0
      %323 = vmatprep.subr.mxu0 0.0
      %324 = vmatpush1.msra.mxu0 0.0
      %325 = vmatprep.subr.mxu0 0.0
      %326 = vmatpush1.msra.mxu0 0.0
      %327 = vmatprep.subr.mxu0 0.0
      %328 = vmatpush1.msra.mxu0 0.0
      %329 = vmatprep.subr.mxu0 0.0
      %330 = vmatpush1.msra.mxu0 0.0
      %331 = vmatprep.subr.mxu0 0.0
      %332 = vmatpush1.msra.mxu0 0.0
      %333 = vmatprep.subr.mxu0 0.0
      %334 = vmatpush1.msra.mxu0 0.0
      %335 = vmatprep.subr.mxu0 0.0
      %336 = vmatpush1.msra.mxu0 0.0
      %337 = vmatprep.subr.mxu0 0.0
      %338 = vmatpush1.msra.mxu0 0.0
      %339 = vmatprep.subr.mxu0 0.0
      %340 = vmatpush1.msra.mxu0 0.0
      %341 = vmatprep.subr.mxu0 0.0
      %342 = vmatpush1.msra.mxu0 0.0
      %343 = vmatprep.subr.mxu0 0.0
      %344 = vmatpush1.msra.mxu0 0.0
      %345 = vmatprep.subr.mxu0 0.0
      %346 = vmatpush1.msra.mxu0 0.0
      %347 = vmatprep.subr.mxu0 0.0
      %348 = vmatpush1.msra.mxu0 0.0
      %349 = vmatprep.subr.mxu0 0.0
      %350 = vmatpush1.msra.mxu0 0.0
      %351 = vmatprep.subr.mxu0 0.0
      %352 = vmatpush1.msra.mxu0 0.0
      %353 = vmatprep.subr.mxu0 0.0
      %354 = vmatpush1.msra.mxu0 0.0
      %355 = vmatprep.subr.mxu0 0.0
      %356 = vmatpush1.msra.mxu0 0.0
      %357 = vmatprep.subr.mxu0 0.0
      %358 = vmatpush1.msra.mxu0 0.0
      %359 = vmatprep.subr.mxu0 0.0
      %360 = vmatpush1.msra.mxu0 0.0
      %361 = vmatprep.subr.mxu0 0.0
      %362 = vmatpush1.msra.mxu0 0.0
      %363 = vmatprep.subr.mxu0 0.0
      %364 = vmatpush1.msra.mxu0 0.0
      %365 = vmatprep.subr.mxu0 0.0
      %366 = vmatpush1.msra.mxu0 0.0
      %367 = vmatprep.subr.mxu0 0.0
      %368 = vmatpush1.msra.mxu0 0.0
      %369 = vmatprep.subr.mxu0 0.0
      %370 = vmatpush1.msra.mxu0 0.0
      %371 = vmatprep.mubr.f32.mxu0 0.0
      %372 = vmatmul.mubr.f32.gmra.mrb[0].mxu0 %v222
      %v373 = vpop.f32.mrb[0].mxu0
      %v374 = vadd.f32 0.0, %v373
      %v375 = vpop.f32.mrb[0].mxu0
      %376 = vdwg.mxu0
      %v377 = vadd.f32 %v209, %v374
      %v379 = vlaneseq
      %v380 = vshrl.u32 %v379, 7
      %v381 = vsub.s32 0, %v380
      %v382 = vrot.slane %v213, %v381
      %v384 = vadd.f32 %v377, %v382
      %s385 = scalar_lea.vmem %s1, 64
      %v386 = vld [vmem:[%s385] sm:$0xff]
      %v387 = vld [vmem:[%s385 + $0x8] sm:$0xff]
      %v388 = vld [vmem:[%s385 + $0x10] sm:$0xff]
      %v389 = vld [vmem:[%s385 + $0x18] sm:$0xff]
      %390 = vmatprep.subr.mxu0 0.0
      %391 = vmatpush1.msra.mxu0 %v386
      %392 = vmatprep.subr.mxu0 0.0
      %393 = vmatpush1.msra.mxu0 %v387
      %394 = vmatprep.subr.mxu0 0.0
      %395 = vmatpush1.msra.mxu0 %v388
      %396 = vmatprep.subr.mxu0 0.0
      %397 = vmatpush1.msra.mxu0 %v389
      %398 = vmatprep.subr.mxu0 0.0
      %399 = vmatpush1.msra.mxu0 0.0
      %400 = vmatprep.subr.mxu0 0.0
      %401 = vmatpush1.msra.mxu0 0.0
      %402 = vmatprep.subr.mxu0 0.0
      %403 = vmatpush1.msra.mxu0 0.0
      %404 = vmatprep.subr.mxu0 0.0
      %405 = vmatpush1.msra.mxu0 0.0
      %406 = vmatprep.subr.mxu0 0.0
      %407 = vmatpush1.msra.mxu0 0.0
      %408 = vmatprep.subr.mxu0 0.0
      %409 = vmatpush1.msra.mxu0 0.0
      %410 = vmatprep.subr.mxu0 0.0
      %411 = vmatpush1.msra.mxu0 0.0
      %412 = vmatprep.subr.mxu0 0.0
      %413 = vmatpush1.msra.mxu0 0.0
      %414 = vmatprep.subr.mxu0 0.0
      %415 = vmatpush1.msra.mxu0 0.0
      %416 = vmatprep.subr.mxu0 0.0
      %417 = vmatpush1.msra.mxu0 0.0
      %418 = vmatprep.subr.mxu0 0.0
      %419 = vmatpush1.msra.mxu0 0.0
      %420 = vmatprep.subr.mxu0 0.0
      %421 = vmatpush1.msra.mxu0 0.0
      %422 = vmatprep.subr.mxu0 0.0
      %423 = vmatpush1.msra.mxu0 0.0
      %424 = vmatprep.subr.mxu0 0.0
      %425 = vmatpush1.msra.mxu0 0.0
      %426 = vmatprep.subr.mxu0 0.0
      %427 = vmatpush1.msra.mxu0 0.0
      %428 = vmatprep.subr.mxu0 0.0
      %429 = vmatpush1.msra.mxu0 0.0
      %430 = vmatprep.subr.mxu0 0.0
      %431 = vmatpush1.msra.mxu0 0.0
      %432 = vmatprep.subr.mxu0 0.0
      %433 = vmatpush1.msra.mxu0 0.0
      %434 = vmatprep.subr.mxu0 0.0
      %435 = vmatpush1.msra.mxu0 0.0
      %436 = vmatprep.subr.mxu0 0.0
      %437 = vmatpush1.msra.mxu0 0.0
      %438 = vmatprep.subr.mxu0 0.0
      %439 = vmatpush1.msra.mxu0 0.0
      %440 = vmatprep.subr.mxu0 0.0
      %441 = vmatpush1.msra.mxu0 0.0
      %442 = vmatprep.subr.mxu0 0.0
      %443 = vmatpush1.msra.mxu0 0.0
      %444 = vmatprep.subr.mxu0 0.0
      %445 = vmatpush1.msra.mxu0 0.0
      %446 = vmatprep.subr.mxu0 0.0
      %447 = vmatpush1.msra.mxu0 0.0
      %448 = vmatprep.subr.mxu0 0.0
      %449 = vmatpush1.msra.mxu0 0.0
      %450 = vmatprep.subr.mxu0 0.0
      %451 = vmatpush1.msra.mxu0 0.0
      %452 = vmatprep.subr.mxu0 0.0
      %453 = vmatpush1.msra.mxu0 0.0
      %454 = vmatprep.mubr.f32.mxu0 0.0
      %455 = vmatmul.mubr.f32.gmra.mrb[0].mxu0 %v222
      %v456 = vpop.f32.mrb[0].mxu0
      %v457 = vadd.f32 0.0, %v456
      %v458 = vpop.f32.mrb[0].mxu0
      %459 = vdwg.mxu0
      %v460 = vadd.f32 %v210, %v457
      %v462 = vlaneseq
      %v463 = vshrl.u32 %v462, 7
      %v464 = vsub.s32 0, %v463
      %v465 = vrot.slane %v214, %v464
      %v467 = vadd.f32 %v460, %v465
      %s468 = scalar_lea.vmem %s1, 96
      %v469 = vld [vmem:[%s468] sm:$0xff]
      %v470 = vld [vmem:[%s468 + $0x8] sm:$0xff]
      %v471 = vld [vmem:[%s468 + $0x10] sm:$0xff]
      %v472 = vld [vmem:[%s468 + $0x18] sm:$0xff]
      %473 = vmatprep.subr.mxu0 0.0
      %474 = vmatpush1.msra.mxu0 %v469
      %475 = vmatprep.subr.mxu0 0.0
      %476 = vmatpush1.msra.mxu0 %v470
      %477 = vmatprep.subr.mxu0 0.0
      %478 = vmatpush1.msra.mxu0 %v471
      %479 = vmatprep.subr.mxu0 0.0
      %480 = vmatpush1.msra.mxu0 %v472
      %481 = vmatprep.subr.mxu0 0.0
      %482 = vmatpush1.msra.mxu0 0.0
      %483 = vmatprep.subr.mxu0 0.0
      %484 = vmatpush1.msra.mxu0 0.0
      %485 = vmatprep.subr.mxu0 0.0
      %486 = vmatpush1.msra.mxu0 0.0
      %487 = vmatprep.subr.mxu0 0.0
      %488 = vmatpush1.msra.mxu0 0.0
      %489 = vmatprep.subr.mxu0 0.0
      %490 = vmatpush1.msra.mxu0 0.0
      %491 = vmatprep.subr.mxu0 0.0
      %492 = vmatpush1.msra.mxu0 0.0
      %493 = vmatprep.subr.mxu0 0.0
      %494 = vmatpush1.msra.mxu0 0.0
      %495 = vmatprep.subr.mxu0 0.0
      %496 = vmatpush1.msra.mxu0 0.0
      %497 = vmatprep.subr.mxu0 0.0
      %498 = vmatpush1.msra.mxu0 0.0
      %499 = vmatprep.subr.mxu0 0.0
      %500 = vmatpush1.msra.mxu0 0.0
      %501 = vmatprep.subr.mxu0 0.0
      %502 = vmatpush1.msra.mxu0 0.0
      %503 = vmatprep.subr.mxu0 0.0
      %504 = vmatpush1.msra.mxu0 0.0
      %505 = vmatprep.subr.mxu0 0.0
      %506 = vmatpush1.msra.mxu0 0.0
      %507 = vmatprep.subr.mxu0 0.0
      %508 = vmatpush1.msra.mxu0 0.0
      %509 = vmatprep.subr.mxu0 0.0
      %510 = vmatpush1.msra.mxu0 0.0
      %511 = vmatprep.subr.mxu0 0.0
      %512 = vmatpush1.msra.mxu0 0.0
      %513 = vmatprep.subr.mxu0 0.0
      %514 = vmatpush1.msra.mxu0 0.0
      %515 = vmatprep.subr.mxu0 0.0
      %516 = vmatpush1.msra.mxu0 0.0
      %517 = vmatprep.subr.mxu0 0.0
      %518 = vmatpush1.msra.mxu0 0.0
      %519 = vmatprep.subr.mxu0 0.0
      %520 = vmatpush1.msra.mxu0 0.0
      %521 = vmatprep.subr.mxu0 0.0
      %522 = vmatpush1.msra.mxu0 0.0
      %523 = vmatprep.subr.mxu0 0.0
      %524 = vmatpush1.msra.mxu0 0.0
      %525 = vmatprep.subr.mxu0 0.0
      %526 = vmatpush1.msra.mxu0 0.0
      %527 = vmatprep.subr.mxu0 0.0
      %528 = vmatpush1.msra.mxu0 0.0
      %529 = vmatprep.subr.mxu0 0.0
      %530 = vmatpush1.msra.mxu0 0.0
      %531 = vmatprep.subr.mxu0 0.0
      %532 = vmatpush1.msra.mxu0 0.0
      %533 = vmatprep.subr.mxu0 0.0
      %534 = vmatpush1.msra.mxu0 0.0
      %535 = vmatprep.subr.mxu0 0.0
      %536 = vmatpush1.msra.mxu0 0.0
      %537 = vmatprep.mubr.f32.mxu0 0.0
      %538 = vmatmul.mubr.f32.gmra.mrb[0].mxu0 %v222
      %v539 = vpop.f32.mrb[0].mxu0
      %v540 = vadd.f32 0.0, %v539
      %v541 = vpop.f32.mrb[0].mxu0
      %542 = vdwg.mxu0
      %v543 = vadd.f32 %v211, %v540
      %v545 = vlaneseq
      %v546 = vshrl.u32 %v545, 7
      %v547 = vsub.s32 0, %v546
      %v548 = vrot.slane %v215, %v547
      %v550 = vadd.f32 %v543, %v548
      %v551 = vxor.u32 %v301, 2147483648
      %v552 = vmul.f32 %v551, 1.442695
      %v553 = vpow.pop %v552
      %v554 = vadd.f32 %v553, 1.0
      %v555 = vrcp.pop %v554
      %v556 = vmul.f32 1.0, %v555
      %v557 = vxor.u32 %v384, 2147483648
      %v558 = vmul.f32 %v557, 1.442695
      %v559 = vpow.pop %v558
      %v560 = vadd.f32 %v559, 1.0
      %v561 = vrcp.pop %v560
      %v562 = vmul.f32 1.0, %v561
      %v563 = vtanh.pop %v467
      %v564 = vxor.u32 %v550, 2147483648
      %v565 = vmul.f32 %v564, 1.442695
      %v566 = vpow.pop %v565
      %v567 = vadd.f32 %v566, 1.0
      %v568 = vrcp.pop %v567
      %v569 = vmul.f32 1.0, %v568
      %v570 = vld [vmem:[#allocation3] sm:$0xf]
      %v571 = vmul.f32 %v562, %v570
      %v572 = vmul.f32 %v556, %v563
      %v573 = vadd.f32 %v571, %v572
      %v574 = vtanh.pop %v573
      %v575 = vmul.f32 %v569, %v574
      %vm576 = vcmask 257024
      %577 = vst.msk [vmem:[#allocation3] sm:$0xf] %vm576, %v573
      %578 = vst.msk [vmem:[#allocation2] sm:$0xf] %vm576, %v575
      %579 = vst.msk [vmem:[%s199] sm:$0xf] %vm576, %v575
      %p580 = scmp.lt.s32.totalorder %s19, 3
      %s581 = scalar_select %p580, %s19, 3
      %p582 = scmp.lt.s32.totalorder %s18, 0
      %s583 = scalar_select %p582, %s18, 0
      %s584 = sadd.s32 %s583, %s581
      %s585 = smul.addr %s584, 4
      %s586 = scalar_lea.vmem %s3, %s585
      // Predicated region
      $region37: #{logsigrnn_forward.6} parent=31 // pred_check
        %p587 = pneg %p116
      $region38: #{logsigrnn_forward.6} parent=31 // pred_check_branch
        %589 = sbr.rel (%p587) target = $region40
      $region39: #{logsigrnn_forward.6} parent=31 // pred_region
        _
      $region40: #{logsigrnn_forward.6} parent=31 // pred_fallthru
        _
    $region32: #{logsigrnn_forward.6} parent=5 // pred_fallthru
      _
    %p590 = scmp.le.s32.totalorder 2, %s9
    // Predicated region
    $region41: #{logsigrnn_forward.6} parent=5 // pred_check
      %p591 = pneg %p590
    $region42: #{logsigrnn_forward.6} parent=5 // pred_check_branch
      %593 = sbr.rel (%p591) target = $region44
    $region43: #{logsigrnn_forward.6} parent=5 // pred_region
      %s594 = ssub.s32 %s9, 2
      // Predicated region
      $region45: #{logsigrnn_forward.6} parent=43 // pred_check
        %p595 = pneg %p122
      $region46: #{logsigrnn_forward.6} parent=43 // pred_check_branch
        %597 = sbr.rel (%p595) target = $region48
      $region47: #{logsigrnn_forward.6} parent=43 // pred_region
        %p598 = scmp.lt.s32.totalorder %s21, 3
        %s599 = scalar_select %p598, %s21, 3
        %p600 = scmp.lt.s32.totalorder %s20, 0
        %s601 = scalar_select %p600, %s20, 0
        %s602 = sadd.s32 %s601, %s599
        %s603 = smul.addr %s602, 4
        %s604 = scalar_lea.vmem %s3, %s603
      $region48: #{logsigrnn_forward.6} parent=43 // pred_fallthru
        _
    $region44: #{logsigrnn_forward.6} parent=5 // pred_fallthru
      _
  $region6: #{logsigrnn_forward.6} parent=0 // loop_footer
    %s13 = sadd.s32 1, %s9
  $region7: #{logsigrnn_forward.6} parent=0 // loop_footer_branch
    %8 = sbr.rel target = $region3
  $region8: #{logsigrnn_forward.6} parent=0 // loop_exit
    _

// kernel: logsigrnn_forward.5
$region0: #{logsigrnn_forward.5}
  #allocation0 [shape = 'u32[]', space=smem, size = 0x4, offset = 0x4, fixed_abs, tag = 'smem constant byte address 0x4 - core index']
  #allocation1 [shape = 'u32[144,128]{1,0:T(1,128)}', space=vmem, size = 0x12000, scoped, tag = 'internal scratch']
  #allocation2 [shape = 's32[1]{0}', space=sflag, size = 0x4, scoped, tag = 'scoped memory for logsigrnn_forward.5']
  #allocation3 [shape = 'u8[512]{0}', space=smem, size = 0x200, scoped, tag = 'prefetched SMEM operand 0']
  #allocation4 [shape = 'u8[512]{0}', space=smem, size = 0x200, scoped, tag = 'prefetched SMEM operand 1']
  %s0 = inlined_call_operand.vmem [shape: s32[4], index: 0, kind: input, shape index: {}]
  %s1 = inlined_call_operand.vmem [shape: s32[4], index: 1, kind: input, shape index: {}]
  %s2 = inlined_call_operand.vmem [shape: f32[4,17,15], index: 2, kind: input, shape index: {}]
  %s3 = inlined_call_operand.vmem [shape: f32[1,15], index: 3, kind: input, shape index: {}]
  %s4 = inlined_call_operand.vmem [shape: f32[1,15], index: 4, kind: input, shape index: {}]
  %s5 = inlined_call_operand.vmem [shape: f32[15,128], index: 5, kind: input, shape index: {}]
  %s6 = inlined_call_operand.vmem [shape: f32[15,128], index: 6, kind: input, shape index: {}]
  %s7 = inlined_call_operand.vmem [shape: f32[15,15,128], index: 7, kind: input, shape index: {}]
  %s8 = inlined_call_operand.vmem [shape: f32[4,4,4,32], index: 8, kind: output, shape index: {}]
  %s9 = sld [smem:[#allocation0]]
  $region57: #{logsigrnn_forward.5} parent=0
    _
  %s11 = ssub.s32 1, %s9
  %s12 = scalar_select 0, %s11, %s9
  %s13 = sshll.u32 %s0, 4
  %s14 = int_to_ptr.vmem [resolvable:$true] %s13
  %16 = dma.vmem_to_smem %s14, 16, [#allocation3], [#allocation2]
  %s17 = sshll.u32 %s1, 4
  %s18 = int_to_ptr.vmem [resolvable:$true] %s17
  %20 = dma.vmem_to_smem %s18, 16, [#allocation4], [#allocation2]
  %21 = dma.done [#allocation2], 32
  %22 = sfence
  loop: start=0, step=1, limit=6
  $region2: #{logsigrnn_forward.5} parent=0 // loop_pre_header
    _
  $region3: #{logsigrnn_forward.5} parent=0 // loop_header
    %s24 = sphi 0, %s28
    %p25 = scmp.ge.s32.totalorder %s24, 6
    %s31 = sphi 0, %s43
    %s32 = sphi 0, %s39
    %s33 = sphi 0, %s31
    %s34 = sphi 0, %s32
    %s35 = sphi 0, %s33
    %s36 = sphi 0, %s34
    %s46 = sphi 0, %s48
    %s49 = sphi 0, %s46
    %s50 = sphi 0, %s49
    %s66 = sphi 0, %s50
    %s70 = sphi 0, %s70
    %s72 = sphi 0, %s70
    %s73 = sphi 0, %s72
    %s87 = sphi 0, %s73
    %s91 = sphi 0, %s91
    %s93 = sphi 0, %s91
    %s94 = sphi 0, %s93
    %s108 = sphi 0, %s94
    %s112 = sphi 0, %s112
    %s114 = sphi 0, %s112
    %s115 = sphi 0, %s114
    %s129 = sphi 0, %s115
    %s133 = sphi 0, %s133
    %s135 = sphi 0, %s133
    %s136 = sphi 0, %s135
    %s150 = sphi 0, %s136
    %s154 = sphi 0, %s154
    %s156 = sphi 0, %s154
    %s157 = sphi 0, %s156
    %s171 = sphi 0, %s157
    %s179 = sphi 0, %s181
    %s182 = sphi 0, %s179
    %s183 = sphi 0, %s182
    %s199 = sphi 0, %s183
  $region4: #{logsigrnn_forward.5} parent=0 // loop_header_branch
    %27 = sbr.rel (%p25) target = $region8
  $region5: #{logsigrnn_forward.5} parent=0 // loop_body
    %s29 = ssub.s32 %s24, 1
    %s30 = ssub.s32 %s24, 2
    %s37 = sadd.s32 1, %s32
    %p38 = scmp.ge.s32.totalorder %s37, 4
    %s39 = scalar_select %p38, 0, %s37
    %s40 = sadd.s32 1, %s31
    %s41 = scalar_select %p38, %s40, %s31
    %p42 = scmp.ge.s32.totalorder %s41, 1
    %s43 = scalar_select %p42, 0, %s41
    %s44 = ssub.s32 %s31, %s43
    %p45 = scmp.eq.s32.totalorder %s44, 0
    %s47 = sadd.s32 %s46, 1
    %s48 = scalar_select %p45, %s46, %s47
    %p51 = pneg %p45
    %p52 = scmp.eq.s32.totalorder %s24, 3
    %p53 = por %p51, %p52
    %p54 = scmp.ne.s32.totalorder %s46, %s49
    %p55 = scmp.eq.s32.totalorder %s24, 0
    %p56 = por %p54, %p55
    %p57 = scmp.ne.s32.totalorder %s46, %s49
    %p58 = scmp.eq.s32.totalorder %s29, 3
    %p59 = por %p57, %p58
    %p60 = scmp.ne.s32.totalorder %s49, %s50
    %p61 = scmp.eq.s32.totalorder %s29, 0
    %p62 = por %p60, %p61
    %p63 = scmp.ne.s32.totalorder %s49, %s50
    %p64 = scmp.eq.s32.totalorder %s30, 3
    %p65 = por %p63, %p64
    %p67 = scmp.ne.s32.totalorder %s50, %s66
    %p68 = scmp.eq.s32.totalorder %s30, 0
    %p69 = por %p67, %p68
    %s71 = sadd.s32 %s70, 1
    %p74 = scmp.eq.s32.totalorder %s24, 3
    %p75 = scmp.ne.s32.totalorder %s70, %s72
    %p76 = scmp.eq.s32.totalorder %s24, 0
    %p77 = por %p75, %p76
    %p78 = scmp.ne.s32.totalorder %s70, %s72
    %p79 = scmp.eq.s32.totalorder %s29, 3
    %p80 = por %p78, %p79
    %p81 = scmp.ne.s32.totalorder %s72, %s73
    %p82 = scmp.eq.s32.totalorder %s29, 0
    %p83 = por %p81, %p82
    %p84 = scmp.ne.s32.totalorder %s72, %s73
    %p85 = scmp.eq.s32.totalorder %s30, 3
    %p86 = por %p84, %p85
    %p88 = scmp.ne.s32.totalorder %s73, %s87
    %p89 = scmp.eq.s32.totalorder %s30, 0
    %p90 = por %p88, %p89
    %s92 = sadd.s32 %s91, 1
    %p95 = scmp.eq.s32.totalorder %s24, 3
    %p96 = scmp.ne.s32.totalorder %s91, %s93
    %p97 = scmp.eq.s32.totalorder %s24, 0
    %p98 = por %p96, %p97
    %p99 = scmp.ne.s32.totalorder %s91, %s93
    %p100 = scmp.eq.s32.totalorder %s29, 3
    %p101 = por %p99, %p100
    %p102 = scmp.ne.s32.totalorder %s93, %s94
    %p103 = scmp.eq.s32.totalorder %s29, 0
    %p104 = por %p102, %p103
    %p105 = scmp.ne.s32.totalorder %s93, %s94
    %p106 = scmp.eq.s32.totalorder %s30, 3
    %p107 = por %p105, %p106
    %p109 = scmp.ne.s32.totalorder %s94, %s108
    %p110 = scmp.eq.s32.totalorder %s30, 0
    %p111 = por %p109, %p110
    %s113 = sadd.s32 %s112, 1
    %p116 = scmp.eq.s32.totalorder %s24, 3
    %p117 = scmp.ne.s32.totalorder %s112, %s114
    %p118 = scmp.eq.s32.totalorder %s24, 0
    %p119 = por %p117, %p118
    %p120 = scmp.ne.s32.totalorder %s112, %s114
    %p121 = scmp.eq.s32.totalorder %s29, 3
    %p122 = por %p120, %p121
    %p123 = scmp.ne.s32.totalorder %s114, %s115
    %p124 = scmp.eq.s32.totalorder %s29, 0
    %p125 = por %p123, %p124
    %p126 = scmp.ne.s32.totalorder %s114, %s115
    %p127 = scmp.eq.s32.totalorder %s30, 3
    %p128 = por %p126, %p127
    %p130 = scmp.ne.s32.totalorder %s115, %s129
    %p131 = scmp.eq.s32.totalorder %s30, 0
    %p132 = por %p130, %p131
    %s134 = sadd.s32 %s133, 1
    %p137 = scmp.eq.s32.totalorder %s24, 3
    %p138 = scmp.ne.s32.totalorder %s133, %s135
    %p139 = scmp.eq.s32.totalorder %s24, 0
    %p140 = por %p138, %p139
    %p141 = scmp.ne.s32.totalorder %s133, %s135
    %p142 = scmp.eq.s32.totalorder %s29, 3
    %p143 = por %p141, %p142
    %p144 = scmp.ne.s32.totalorder %s135, %s136
    %p145 = scmp.eq.s32.totalorder %s29, 0
    %p146 = por %p144, %p145
    %p147 = scmp.ne.s32.totalorder %s135, %s136
    %p148 = scmp.eq.s32.totalorder %s30, 3
    %p149 = por %p147, %p148
    %p151 = scmp.ne.s32.totalorder %s136, %s150
    %p152 = scmp.eq.s32.totalorder %s30, 0
    %p153 = por %p151, %p152
    %s155 = sadd.s32 %s154, 1
    %p158 = scmp.eq.s32.totalorder %s24, 3
    %p159 = scmp.ne.s32.totalorder %s154, %s156
    %p160 = scmp.eq.s32.totalorder %s24, 0
    %p161 = por %p159, %p160
    %p162 = scmp.ne.s32.totalorder %s154, %s156
    %p163 = scmp.eq.s32.totalorder %s29, 3
    %p164 = por %p162, %p163
    %p165 = scmp.ne.s32.totalorder %s156, %s157
    %p166 = scmp.eq.s32.totalorder %s29, 0
    %p167 = por %p165, %p166
    %p168 = scmp.ne.s32.totalorder %s156, %s157
    %p169 = scmp.eq.s32.totalorder %s30, 3
    %p170 = por %p168, %p169
    %p172 = scmp.ne.s32.totalorder %s157, %s171
    %p173 = scmp.eq.s32.totalorder %s30, 0
    %p174 = por %p172, %p173
    %s175 = ssub.s32 %s32, %s39
    %s176 = ssub.s32 %s31, %s43
    %s177 = sor.u32 %s175, %s176
    %p178 = scmp.eq.s32.totalorder %s177, 0
    %s180 = sadd.s32 %s179, 1
    %s181 = scalar_select %p178, %s179, %s180
    %p184 = pneg %p178
    %p185 = scmp.eq.s32.totalorder %s24, 3
    %p186 = por %p184, %p185
    %p187 = scmp.ne.s32.totalorder %s179, %s182
    %p188 = scmp.eq.s32.totalorder %s24, 0
    %p189 = por %p187, %p188
    %p190 = scmp.ne.s32.totalorder %s179, %s182
    %p191 = scmp.eq.s32.totalorder %s29, 3
    %p192 = por %p190, %p191
    %p193 = scmp.ne.s32.totalorder %s182, %s183
    %p194 = scmp.eq.s32.totalorder %s29, 0
    %p195 = por %p193, %p194
    %p196 = scmp.ne.s32.totalorder %s182, %s183
    %p197 = scmp.eq.s32.totalorder %s30, 3
    %p198 = por %p196, %p197
    %p200 = scmp.ne.s32.totalorder %s183, %s199
    %p201 = scmp.eq.s32.totalorder %s30, 0
    %p202 = por %p200, %p201
    %p203 = scmp.le.s32.totalorder 1, %s24
    %p204 = scmp.lt.s32.totalorder %s24, 5
    %p205 = pnand %p203, %p204
    %p206 = pneg %p205
    // Predicated region
    $region9: #{logsigrnn_forward.5} parent=5 // pred_check
      _
    $region10: #{logsigrnn_forward.5} parent=5 // pred_check_branch
      %208 = sbr.rel (%p205) target = $region12
    $region11: #{logsigrnn_forward.5} parent=5 // pred_region
      %s209 = ssub.s32 %s24, 1
      // Predicated region
      $region13: #{logsigrnn_forward.5} parent=11 // pred_check
        %p210 = pneg %p62
      $region14: #{logsigrnn_forward.5} parent=11 // pred_check_branch
        %212 = sbr.rel (%p210) target = $region16
      $region15: #{logsigrnn_forward.5} parent=11 // pred_region
        %s213 = smul.u32 4, %s33
        %p214 = scmp.lt.s32.totalorder %s213, 3
        %s215 = scalar_select %p214, %s213, 3
        %s216 = smul.addr %s215, 3
        %s217 = smul.addr %s216, 8
        %s218 = scalar_lea.vmem %s2, %s217
        %s219 = smul.u32 4, %s33
      $region16: #{logsigrnn_forward.5} parent=11 // pred_fallthru
        _
      // Predicated region
      $region17: #{logsigrnn_forward.5} parent=11 // pred_check
        %p220 = pneg %p83
      $region18: #{logsigrnn_forward.5} parent=11 // pred_check_branch
        %222 = sbr.rel (%p220) target = $region20
      $region19: #{logsigrnn_forward.5} parent=11 // pred_region
        _
      $region20: #{logsigrnn_forward.5} parent=11 // pred_fallthru
        _
      // Predicated region
      $region21: #{logsigrnn_forward.5} parent=11 // pred_check
        %p223 = pneg %p104
      $region22: #{logsigrnn_forward.5} parent=11 // pred_check_branch
        %225 = sbr.rel (%p223) target = $region24
      $region23: #{logsigrnn_forward.5} parent=11 // pred_region
        _
      $region24: #{logsigrnn_forward.5} parent=11 // pred_fallthru
        _
      // Predicated region
      $region25: #{logsigrnn_forward.5} parent=11 // pred_check
        %p226 = pneg %p125
      $region26: #{logsigrnn_forward.5} parent=11 // pred_check_branch
        %228 = sbr.rel (%p226) target = $region28
      $region27: #{logsigrnn_forward.5} parent=11 // pred_region
        _
      $region28: #{logsigrnn_forward.5} parent=11 // pred_fallthru
        _
      // Predicated region
      $region29: #{logsigrnn_forward.5} parent=11 // pred_check
        %p229 = pneg %p146
      $region30: #{logsigrnn_forward.5} parent=11 // pred_check_branch
        %231 = sbr.rel (%p229) target = $region32
      $region31: #{logsigrnn_forward.5} parent=11 // pred_region
        _
      $region32: #{logsigrnn_forward.5} parent=11 // pred_fallthru
        _
      // Predicated region
      $region33: #{logsigrnn_forward.5} parent=11 // pred_check
        %p232 = pneg %p167
      $region34: #{logsigrnn_forward.5} parent=11 // pred_check_branch
        %234 = sbr.rel (%p232) target = $region36
      $region35: #{logsigrnn_forward.5} parent=11 // pred_region
        _
      $region36: #{logsigrnn_forward.5} parent=11 // pred_fallthru
        _
    $region12: #{logsigrnn_forward.5} parent=5 // pred_fallthru
      _
    %p235 = scmp.lt.s32.totalorder %s24, 4
    // Predicated region
    $region37: #{logsigrnn_forward.5} parent=5 // pred_check
      %p236 = pneg %p235
    $region38: #{logsigrnn_forward.5} parent=5 // pred_check_branch
      %238 = sbr.rel (%p236) target = $region40
    $region39: #{logsigrnn_forward.5} parent=5 // pred_region
      _
    $region40: #{logsigrnn_forward.5} parent=5 // pred_fallthru
      _
    %p239 = scmp.le.s32.totalorder 1, %s24
    %p240 = scmp.lt.s32.totalorder %s24, 5
    %p241 = pnand %p239, %p240
    %p242 = pneg %p241
    // Predicated region
    $region41: #{logsigrnn_forward.5} parent=5 // pred_check
      _
    $region42: #{logsigrnn_forward.5} parent=5 // pred_check_branch
      %244 = sbr.rel (%p241) target = $region44
    $region43: #{logsigrnn_forward.5} parent=5 // pred_region
      %s245 = ssub.s32 %s24, 1
      %s246 = smul.u32 4, %s33
      %p247 = scmp.lt.s32.totalorder %s246, 3
      %s248 = scalar_select %p247, %s246, 3
      %s249 = smul.addr %s248, 3
      %s250 = smul.addr %s249, 8
      %s251 = scalar_lea.vmem %s2, %s250
      %p252 = pneg %p62
      %p253 = pneg %p59
      %p254 = pneg %p83
      %p255 = pneg %p80
      %p256 = pneg %p104
      %p257 = pneg %p101
      %p258 = pneg %p125
      %p259 = pneg %p122
      %p260 = pneg %p146
      %p261 = pneg %p143
      %p262 = pneg %p167
      %p263 = pneg %p164
      %p264 = pneg %p195
      %p265 = pneg %p192
      %p266 = scmp.lt.s32.totalorder %s34, 3
      %s267 = scalar_select %p266, %s34, 3
      %p268 = scmp.lt.s32.totalorder %s33, 0
      %s269 = scalar_select %p268, %s33, 0
      %s270 = smul.addr %s267, 4
      %s271 = sadd.s32 %s269, %s270
      %s272 = smul.addr %s271, 4
      %s273 = scalar_lea.vmem %s8, %s272
      %s274 = smul.u32 4, %s33
      %p275 = scmp.lt.s32.totalorder %s274, 3
      %s276 = scalar_select %p275, %s274, 3
      %s277 = smul.addr %s276, 3
      %s278 = smul.addr %s277, 8
      %s279 = scalar_lea.vmem %s2, %s278
      %s280 = smul.u32 4, %s33
      %p281 = scmp.lt.s32.totalorder %s34, 3
      %s282 = scalar_select %p281, %s34, 3
      %p283 = scmp.lt.s32.totalorder %s33, 0
      %s284 = scalar_select %p283, %s33, 0
      %s285 = smul.addr %s282, 4
      %s286 = sadd.s32 %s284, %s285
      %s287 = smul.addr %s286, 4
      %s288 = scalar_lea.vmem %s8, %s287
      %s289 = sld [smem:[#allocation3 + %s34]]
      %s290 = sld [smem:[#allocation4 + %s34]]
      %p291 = scmp.lt.s32.totalorder %s289, 12
      %s292 = scalar_select %p291, %s289, 12
      %s293 = ssub.s32 %s289, %s292
      %v294 = vld [vmem:[%s3] sm:$0x1]
      %v295 = vld [vmem:[%s4] sm:$0x1]
      %s296 = scalar_lea.vmem %s279, %s292
      %v297 = vld [vmem:[%s296] sm:$0x1f]
      %v298 = vld [vmem:[%s296 + $0x18] sm:$0x1f]
      %v299 = vld [vmem:[%s296 + $0x30] sm:$0x1f]
      %v300 = vld [vmem:[%s296 + $0x48] sm:$0x1f]
      %v302 = vlaneseq
      %v303 = vshrl.u32 %v302, 7
      %v304 = vsub.s32 0, %v303
      %v305 = vrot.slane %v294, %v304
      %v307 = vmul.f32 %v297, %v305
      %v308 = vmul.f32 %v298, %v305
      %v309 = vmul.f32 %v299, %v305
      %v310 = vmul.f32 %v300, %v305
      %v312 = vlaneseq
      %v313 = vshrl.u32 %v312, 7
      %v314 = vsub.s32 0, %v313
      %v315 = vrot.slane %v295, %v314
      %v317 = vadd.f32 %v307, %v315
      %v318 = vadd.f32 %v308, %v315
      %v319 = vadd.f32 %v309, %v315
      %v320 = vadd.f32 %v310, %v315
      %s321 = scalar_lea.vmem %s279, %s289
      %v322 = vld [vmem:[%s321] sm:$0x1]
      %v323 = vld [vmem:[%s321 + $0x18] sm:$0x1]
      %v324 = vld [vmem:[%s321 + $0x30] sm:$0x1]
      %v325 = vld [vmem:[%s321 + $0x48] sm:$0x1]
      %v326 = vmul.f32 %v322, %v305
      %v327 = vmul.f32 %v323, %v305
      %v328 = vmul.f32 %v324, %v305
      %v329 = vmul.f32 %v325, %v305
      %v330 = vadd.f32 %v326, %v315
      %v331 = vadd.f32 %v327, %v315
      %v332 = vadd.f32 %v328, %v315
      %v333 = vadd.f32 %v329, %v315
      %v338 = vrot.slane %v317, 7
      %v339 = vrot.slane %v318, 7
      %v340 = vrot.slane %v319, 7
      %v341 = vrot.slane %v320, 7
      %v346 = vsub.f32 %v317, %v338
      %v347 = vsub.f32 %v318, %v339
      %v348 = vsub.f32 %v319, %v340
      %v349 = vsub.f32 %v320, %v341
      %v350 = vlaneseq
      %v351 = vshrl.u32 %v350, 7
      %v352 = vsub.s32 0, %v351
      %v353 = vrot.slane %v330, %v352
      %v354 = vlaneseq
      %v355 = vshrl.u32 %v354, 7
      %v356 = vsub.s32 0, %v355
      %v357 = vrot.slane %v331, %v356
      %v358 = vlaneseq
      %v359 = vshrl.u32 %v358, 7
      %v360 = vsub.s32 0, %v359
      %v361 = vrot.slane %v332, %v360
      %v362 = vlaneseq
      %v363 = vshrl.u32 %v362, 7
      %v364 = vsub.s32 0, %v363
      %v365 = vrot.slane %v333, %v364
      %v366 = vsub.f32 %v317, %v353
      %v367 = vsub.f32 %v318, %v357
      %v368 = vsub.f32 %v319, %v361
      %v369 = vsub.f32 %v320, %v365
      %v370 = vlaneseq
      %v371 = vshrl.u32 %v370, 7
      %v372 = vstv %s293
      %vm373 = vcmp.ge.s32.totalorder %v371, %v372
      %s374 = sadd.s32 %s293, %s290
      %s375 = ssub.s32 %s374, 1
      %v376 = vstv %s375
      %vm377 = vcmp.lt.s32.totalorder %v371, %v376
      %vm378 = vmand %vm373, %vm377
      %v379 = vsel %vm378, 1, 0
      %vm380 = vcmp.eq.s32.totalorder %v379, 1
      %v385 = vrot.slane %v346, 1
      %v386 = vrot.slane %v347, 1
      %v387 = vrot.slane %v348, 1
      %v388 = vrot.slane %v349, 1
      %v393 = vsel %vm380, %v385, 0.0
      %v394 = vsel %vm380, %v386, 0.0
      %v395 = vsel %vm380, %v387, 0.0
      %v396 = vsel %vm380, %v388, 0.0
      %vm397 = vcmask 117760
      %v398 = vsel %vm397, %v393, 0.0
      %v399 = vrot.slane %v398, 4
      %v400 = vadd.f32 %v398, %v399
      %v401 = vrot.slane %v400, 2
      %v402 = vadd.f32 %v400, %v401
      %v403 = vrot.slane %v402, 1
      %v404 = vadd.f32 %v402, %v403
      %v405 = vsel %vm397, %v394, 0.0
      %v406 = vrot.slane %v405, 4
      %v407 = vadd.f32 %v405, %v406
      %v408 = vrot.slane %v407, 2
      %v409 = vadd.f32 %v407, %v408
      %v410 = vrot.slane %v409, 1
      %v411 = vadd.f32 %v409, %v410
      %v412 = vsel %vm397, %v395, 0.0
      %v413 = vrot.slane %v412, 4
      %v414 = vadd.f32 %v412, %v413
      %v415 = vrot.slane %v414, 2
      %v416 = vadd.f32 %v414, %v415
      %v417 = vrot.slane %v416, 1
      %v418 = vadd.f32 %v416, %v417
      %v419 = vsel %vm397, %v396, 0.0
      %v420 = vrot.slane %v419, 4
      %v421 = vadd.f32 %v419, %v420
      %v422 = vrot.slane %v421, 2
      %v423 = vadd.f32 %v421, %v422
      %v424 = vrot.slane %v423, 1
      %v425 = vadd.f32 %v423, %v424
      %426 = vxpose.xlu0.b32.start [1/16] %v366, 128
      %427 = vxpose.xlu0.b32.cont [2/16] 0.0, 128
      %428 = vxpose.xlu0.b32.cont [3/16] 0.0, 128
      %429 = vxpose.xlu0.b32.cont [4/16] 0.0, 128
      %430 = vxpose.xlu0.b32.cont [5/16] 0.0, 128
      %431 = vxpose.xlu0.b32.cont [6/16] 0.0, 128
      %432 = vxpose.xlu0.b32.cont [7/16] 0.0, 128
      %433 = vxpose.xlu0.b32.cont [8/16] 0.0, 128
      %434 = vxpose.xlu0.b32.cont [9/16] 0.0, 128
      %435 = vxpose.xlu0.b32.cont [10/16] 0.0, 128
      %436 = vxpose.xlu0.b32.cont [11/16] 0.0, 128
      %437 = vxpose.xlu0.b32.cont [12/16] 0.0, 128
      %438 = vxpose.xlu0.b32.cont [13/16] 0.0, 128
      %439 = vxpose.xlu0.b32.cont [14/16] 0.0, 128
      %440 = vxpose.xlu0.b32.cont [15/16] 0.0, 128
      %441 = vxpose.xlu0.b32.end [16/16] 0.0, 128
      %v442 = vpop.trf.xlu0
      %v443 = vpop.trf.xlu0
      %v444 = vpop.trf.xlu0
      %v445 = vpop.trf.xlu0
      %v446 = vpop.trf.xlu0
      %v447 = vpop.trf.xlu0
      %v448 = vpop.trf.xlu0
      %v449 = vpop.trf.xlu0
      %v450 = vpop.trf.xlu0
      %v451 = vpop.trf.xlu0
      %v452 = vpop.trf.xlu0
      %v453 = vpop.trf.xlu0
      %v454 = vpop.trf.xlu0
      %v455 = vpop.trf.xlu0
      %v456 = vpop.trf.xlu0
      %v457 = vpop.trf.xlu0
      %vm458 = vcmask 31744
      %v460 = vsel %vm458, %v442, 0
      %v463 = vsel %vm458, %v443, 0
      %vm465 = vcmask 1043456
      %v467 = vsel %vm465, %v393, 0
      %469 = vmatprep.subr.mxu0 0.0
      %470 = vmatpush1.msra.mxu0 %v467
      %471 = vmatprep.subr.mxu0 0.0
      %472 = vmatpush1.msra.mxu0 0.0
      %473 = vmatprep.subr.mxu0 0.0
      %474 = vmatpush1.msra.mxu0 0.0
      %475 = vmatprep.subr.mxu0 0.0
      %476 = vmatpush1.msra.mxu0 0.0
      %477 = vmatprep.subr.mxu0 0.0
      %478 = vmatpush1.msra.mxu0 0.0
      %479 = vmatprep.subr.mxu0 0.0
      %480 = vmatpush1.msra.mxu0 0.0
      %481 = vmatprep.subr.mxu0 0.0
      %482 = vmatpush1.msra.mxu0 0.0
      %483 = vmatprep.subr.mxu0 0.0
      %484 = vmatpush1.msra.mxu0 0.0
      %485 = vmatprep.subr.mxu0 0.0
      %486 = vmatpush1.msra.mxu0 0.0
      %487 = vmatprep.subr.mxu0 0.0
      %488 = vmatpush1.msra.mxu0 0.0
      %489 = vmatprep.subr.mxu0 0.0
      %490 = vmatpush1.msra.mxu0 0.0
      %491 = vmatprep.subr.mxu0 0.0
      %492 = vmatpush1.msra.mxu0 0.0
      %493 = vmatprep.subr.mxu0 0.0
      %494 = vmatpush1.msra.mxu0 0.0
      %495 = vmatprep.subr.mxu0 0.0
      %496 = vmatpush1.msra.mxu0 0.0
      %497 = vmatprep.subr.mxu0 0.0
      %498 = vmatpush1.msra.mxu0 0.0
      %499 = vmatprep.subr.mxu0 0.0
      %500 = vmatpush1.msra.mxu0 0.0
      %501 = vmatprep.subr.mxu0 0.0
      %502 = vmatpush1.msra.mxu0 0.0
      %503 = vmatprep.subr.mxu0 0.0
      %504 = vmatpush1.msra.mxu0 0.0
      %505 = vmatprep.subr.mxu0 0.0
      %506 = vmatpush1.msra.mxu0 0.0
      %507 = vmatprep.subr.mxu0 0.0
      %508 = vmatpush1.msra.mxu0 0.0
      %509 = vmatprep.subr.mxu0 0.0
      %510 = vmatpush1.msra.mxu0 0.0
      %511 = vmatprep.subr.mxu0 0.0
      %512 = vmatpush1.msra.mxu0 0.0
      %513 = vmatprep.subr.mxu0 0.0
      %514 = vmatpush1.msra.mxu0 0.0
      %515 = vmatprep.subr.mxu0 0.0
      %516 = vmatpush1.msra.mxu0 0.0
      %517 = vmatprep.subr.mxu0 0.0
      %518 = vmatpush1.msra.mxu0 0.0
      %519 = vmatprep.subr.mxu0 0.0
      %520 = vmatpush1.msra.mxu0 0.0
      %521 = vmatprep.subr.mxu0 0.0
      %522 = vmatpush1.msra.mxu0 0.0
      %523 = vmatprep.subr.mxu0 0.0
      %524 = vmatpush1.msra.mxu0 0.0
      %525 = vmatprep.subr.mxu0 0.0
      %526 = vmatpush1.msra.mxu0 0.0
      %527 = vmatprep.subr.mxu0 0.0
      %528 = vmatpush1.msra.mxu0 0.0
      %529 = vmatprep.subr.mxu0 0.0
      %530 = vmatpush1.msra.mxu0 0.0
      %531 = vmatprep.subr.mxu0 0.0
      %532 = vmatpush1.msra.mxu0 0.0
      %533 = vmatprep.mubr.f32.mxu0 0.0
      %534 = vmatmul.mubr.f32.gmra.mrb[0].mxu0 %v460
      %v535 = vpop.f32.mrb[0].mxu0
      %v536 = vadd.f32 0.0, %v535
      %v537 = vpop.f32.mrb[0].mxu0
      %538 = vmatprep.mubr.f32.mxu0 0.0
      %539 = vmatmul.mubr.f32.gmra.mrb[0].mxu0 %v463
      %v540 = vpop.f32.mrb[0].mxu0
      %v541 = vadd.f32 0.0, %v540
      %v542 = vpop.f32.mrb[0].mxu0
      %543 = vdwg.mxu0
      %544 = vxpose.xlu0.b32.start [1/16] %v367, 128
      %545 = vxpose.xlu0.b32.cont [2/16] 0.0, 128
      %546 = vxpose.xlu0.b32.cont [3/16] 0.0, 128
      %547 = vxpose.xlu0.b32.cont [4/16] 0.0, 128
      %548 = vxpose.xlu0.b32.cont [5/16] 0.0, 128
      %549 = vxpose.xlu0.b32.cont [6/16] 0.0, 128
      %550 = vxpose.xlu0.b32.cont [7/16] 0.0, 128
      %551 = vxpose.xlu0.b32.cont [8/16] 0.0, 128
      %552 = vxpose.xlu0.b32.cont [9/16] 0.0, 128
      %553 = vxpose.xlu0.b32.cont [10/16] 0.0, 128
      %554 = vxpose.xlu0.b32.cont [11/16] 0.0, 128
      %555 = vxpose.xlu0.b32.cont [12/16] 0.0, 128
      %556 = vxpose.xlu0.b32.cont [13/16] 0.0, 128
      %557 = vxpose.xlu0.b32.cont [14/16] 0.0, 128
      %558 = vxpose.xlu0.b32.cont [15/16] 0.0, 128
      %559 = vxpose.xlu0.b32.end [16/16] 0.0, 128
      %v560 = vpop.trf.xlu0
      %v561 = vpop.trf.xlu0
      %v562 = vpop.trf.xlu0
      %v563 = vpop.trf.xlu0
      %v564 = vpop.trf.xlu0
      %v565 = vpop.trf.xlu0
      %v566 = vpop.trf.xlu0
      %v567 = vpop.trf.xlu0
      %v568 = vpop.trf.xlu0
      %v569 = vpop.trf.xlu0
      %v570 = vpop.trf.xlu0
      %v571 = vpop.trf.xlu0
      %v572 = vpop.trf.xlu0
      %v573 = vpop.trf.xlu0
      %v574 = vpop.trf.xlu0
      %v575 = vpop.trf.xlu0
      %v577 = vsel %vm458, %v560, 0
      %v580 = vsel %vm458, %v561, 0
      %v583 = vsel %vm465, %v394, 0
      %585 = vmatprep.subr.mxu0 0.0
      %586 = vmatpush1.msra.mxu0 %v583
      %587 = vmatprep.subr.mxu0 0.0
      %588 = vmatpush1.msra.mxu0 0.0
      %589 = vmatprep.subr.mxu0 0.0
      %590 = vmatpush1.msra.mxu0 0.0
      %591 = vmatprep.subr.mxu0 0.0
      %592 = vmatpush1.msra.mxu0 0.0
      %593 = vmatprep.subr.mxu0 0.0
      %594 = vmatpush1.msra.mxu0 0.0
      %595 = vmatprep.subr.mxu0 0.0
      %596 = vmatpush1.msra.mxu0 0.0
      %597 = vmatprep.subr.mxu0 0.0
      %598 = vmatpush1.msra.mxu0 0.0
      %599 = vmatprep.subr.mxu0 0.0
      %600 = vmatpush1.msra.mxu0 0.0
      %601 = vmatprep.subr.mxu0 0.0
      %602 = vmatpush1.msra.mxu0 0.0
      %603 = vmatprep.subr.mxu0 0.0
      %604 = vmatpush1.msra.mxu0 0.0
      %605 = vmatprep.subr.mxu0 0.0
      %606 = vmatpush1.msra.mxu0 0.0
      %607 = vmatprep.subr.mxu0 0.0
      %608 = vmatpush1.msra.mxu0 0.0
      %609 = vmatprep.subr.mxu0 0.0
      %610 = vmatpush1.msra.mxu0 0.0
      %611 = vmatprep.subr.mxu0 0.0
      %612 = vmatpush1.msra.mxu0 0.0
      %613 = vmatprep.subr.mxu0 0.0
      %614 = vmatpush1.msra.mxu0 0.0
      %615 = vmatprep.subr.mxu0 0.0
      %616 = vmatpush1.msra.mxu0 0.0
      %617 = vmatprep.subr.mxu0 0.0
      %618 = vmatpush1.msra.mxu0 0.0
      %619 = vmatprep.subr.mxu0 0.0
      %620 = vmatpush1.msra.mxu0 0.0
      %621 = vmatprep.subr.mxu0 0.0
      %622 = vmatpush1.msra.mxu0 0.0
      %623 = vmatprep.subr.mxu0 0.0
      %624 = vmatpush1.msra.mxu0 0.0
      %625 = vmatprep.subr.mxu0 0.0
      %626 = vmatpush1.msra.mxu0 0.0
      %627 = vmatprep.subr.mxu0 0.0
      %628 = vmatpush1.msra.mxu0 0.0
      %629 = vmatprep.subr.mxu0 0.0
      %630 = vmatpush1.msra.mxu0 0.0
      %631 = vmatprep.subr.mxu0 0.0
      %632 = vmatpush1.msra.mxu0 0.0
      %633 = vmatprep.subr.mxu0 0.0
      %634 = vmatpush1.msra.mxu0 0.0
      %635 = vmatprep.subr.mxu0 0.0
      %636 = vmatpush1.msra.mxu0 0.0
      %637 = vmatprep.subr.mxu0 0.0
      %638 = vmatpush1.msra.mxu0 0.0
      %639 = vmatprep.subr.mxu0 0.0
      %640 = vmatpush1.msra.mxu0 0.0
      %641 = vmatprep.subr.mxu0 0.0
      %642 = vmatpush1.msra.mxu0 0.0
      %643 = vmatprep.subr.mxu0 0.0
      %644 = vmatpush1.msra.mxu0 0.0
      %645 = vmatprep.subr.mxu0 0.0
      %646 = vmatpush1.msra.mxu0 0.0
      %647 = vmatprep.subr.mxu0 0.0
      %648 = vmatpush1.msra.mxu0 0.0
      %649 = vmatprep.mubr.f32.mxu0 0.0
      %650 = vmatmul.mubr.f32.gmra.mrb[0].mxu0 %v577
      %v651 = vpop.f32.mrb[0].mxu0
      %v652 = vadd.f32 0.0, %v651
      %v653 = vpop.f32.mrb[0].mxu0
      %654 = vmatprep.mubr.f32.mxu0 0.0
      %655 = vmatmul.mubr.f32.gmra.mrb[0].mxu0 %v580
      %v656 = vpop.f32.mrb[0].mxu0
      %v657 = vadd.f32 0.0, %v656
      %v658 = vpop.f32.mrb[0].mxu0
      %659 = vdwg.mxu0
      %660 = vxpose.xlu0.b32.start [1/16] %v368, 128
      %661 = vxpose.xlu0.b32.cont [2/16] 0.0, 128
      %662 = vxpose.xlu0.b32.cont [3/16] 0.0, 128
      %663 = vxpose.xlu0.b32.cont [4/16] 0.0, 128
      %664 = vxpose.xlu0.b32.cont [5/16] 0.0, 128
      %665 = vxpose.xlu0.b32.cont [6/16] 0.0, 128
      %666 = vxpose.xlu0.b32.cont [7/16] 0.0, 128
      %667 = vxpose.xlu0.b32.cont [8/16] 0.0, 128
      %668 = vxpose.xlu0.b32.cont [9/16] 0.0, 128
      %669 = vxpose.xlu0.b32.cont [10/16] 0.0, 128
      %670 = vxpose.xlu0.b32.cont [11/16] 0.0, 128
      %671 = vxpose.xlu0.b32.cont [12/16] 0.0, 128
      %672 = vxpose.xlu0.b32.cont [13/16] 0.0, 128
      %673 = vxpose.xlu0.b32.cont [14/16] 0.0, 128
      %674 = vxpose.xlu0.b32.cont [15/16] 0.0, 128
      %675 = vxpose.xlu0.b32.end [16/16] 0.0, 128
      %v676 = vpop.trf.xlu0
      %v677 = vpop.trf.xlu0
      %v678 = vpop.trf.xlu0
      %v679 = vpop.trf.xlu0
      %v680 = vpop.trf.xlu0
      %v681 = vpop.trf.xlu0
      %v682 = vpop.trf.xlu0
      %v683 = vpop.trf.xlu0
      %v684 = vpop.trf.xlu0
      %v685 = vpop.trf.xlu0
      %v686 = vpop.trf.xlu0
      %v687 = vpop.trf.xlu0
      %v688 = vpop.trf.xlu0
      %v689 = vpop.trf.xlu0
      %v690 = vpop.trf.xlu0
      %v691 = vpop.trf.xlu0
      %v693 = vsel %vm458, %v676, 0
      %v696 = vsel %vm458, %v677, 0
      %v699 = vsel %vm465, %v395, 0
      %701 = vmatprep.subr.mxu0 0.0
      %702 = vmatpush1.msra.mxu0 %v699
      %703 = vmatprep.subr.mxu0 0.0
      %704 = vmatpush1.msra.mxu0 0.0
      %705 = vmatprep.subr.mxu0 0.0
      %706 = vmatpush1.msra.mxu0 0.0
      %707 = vmatprep.subr.mxu0 0.0
      %708 = vmatpush1.msra.mxu0 0.0
      %709 = vmatprep.subr.mxu0 0.0
      %710 = vmatpush1.msra.mxu0 0.0
      %711 = vmatprep.subr.mxu0 0.0
      %712 = vmatpush1.msra.mxu0 0.0
      %713 = vmatprep.subr.mxu0 0.0
      %714 = vmatpush1.msra.mxu0 0.0
      %715 = vmatprep.subr.mxu0 0.0
      %716 = vmatpush1.msra.mxu0 0.0
      %717 = vmatprep.subr.mxu0 0.0
      %718 = vmatpush1.msra.mxu0 0.0
      %719 = vmatprep.subr.mxu0 0.0
      %720 = vmatpush1.msra.mxu0 0.0
      %721 = vmatprep.subr.mxu0 0.0
      %722 = vmatpush1.msra.mxu0 0.0
      %723 = vmatprep.subr.mxu0 0.0
      %724 = vmatpush1.msra.mxu0 0.0
      %725 = vmatprep.subr.mxu0 0.0
      %726 = vmatpush1.msra.mxu0 0.0
      %727 = vmatprep.subr.mxu0 0.0
      %728 = vmatpush1.msra.mxu0 0.0
      %729 = vmatprep.subr.mxu0 0.0
      %730 = vmatpush1.msra.mxu0 0.0
      %731 = vmatprep.subr.mxu0 0.0
      %732 = vmatpush1.msra.mxu0 0.0
      %733 = vmatprep.subr.mxu0 0.0
      %734 = vmatpush1.msra.mxu0 0.0
      %735 = vmatprep.subr.mxu0 0.0
      %736 = vmatpush1.msra.mxu0 0.0
      %737 = vmatprep.subr.mxu0 0.0
      %738 = vmatpush1.msra.mxu0 0.0
      %739 = vmatprep.subr.mxu0 0.0
      %740 = vmatpush1.msra.mxu0 0.0
      %741 = vmatprep.subr.mxu0 0.0
      %742 = vmatpush1.msra.mxu0 0.0
      %743 = vmatprep.subr.mxu0 0.0
      %744 = vmatpush1.msra.mxu0 0.0
      %745 = vmatprep.subr.mxu0 0.0
      %746 = vmatpush1.msra.mxu0 0.0
      %747 = vmatprep.subr.mxu0 0.0
      %748 = vmatpush1.msra.mxu0 0.0
      %749 = vmatprep.subr.mxu0 0.0
      %750 = vmatpush1.msra.mxu0 0.0
      %751 = vmatprep.subr.mxu0 0.0
      %752 = vmatpush1.msra.mxu0 0.0
      %753 = vmatprep.subr.mxu0 0.0
      %754 = vmatpush1.msra.mxu0 0.0
      %755 = vmatprep.subr.mxu0 0.0
      %756 = vmatpush1.msra.mxu0 0.0
      %757 = vmatprep.subr.mxu0 0.0
      %758 = vmatpush1.msra.mxu0 0.0
      %759 = vmatprep.subr.mxu0 0.0
      %760 = vmatpush1.msra.mxu0 0.0
      %761 = vmatprep.subr.mxu0 0.0
      %762 = vmatpush1.msra.mxu0 0.0
      %763 = vmatprep.subr.mxu0 0.0
      %764 = vmatpush1.msra.mxu0 0.0
      %765 = vmatprep.mubr.f32.mxu0 0.0
      %766 = vmatmul.mubr.f32.gmra.mrb[0].mxu0 %v693
      %v767 = vpop.f32.mrb[0].mxu0
      %v768 = vadd.f32 0.0, %v767
      %v769 = vpop.f32.mrb[0].mxu0
      %770 = vmatprep.mubr.f32.mxu0 0.0
      %771 = vmatmul.mubr.f32.gmra.mrb[0].mxu0 %v696
      %v772 = vpop.f32.mrb[0].mxu0
      %v773 = vadd.f32 0.0, %v772
      %v774 = vpop.f32.mrb[0].mxu0
      %775 = vdwg.mxu0
      %776 = vxpose.xlu0.b32.start [1/16] %v369, 128
      %777 = vxpose.xlu0.b32.cont [2/16] 0.0, 128
      %778 = vxpose.xlu0.b32.cont [3/16] 0.0, 128
      %779 = vxpose.xlu0.b32.cont [4/16] 0.0, 128
      %780 = vxpose.xlu0.b32.cont [5/16] 0.0, 128
      %781 = vxpose.xlu0.b32.cont [6/16] 0.0, 128
      %782 = vxpose.xlu0.b32.cont [7/16] 0.0, 128
      %783 = vxpose.xlu0.b32.cont [8/16] 0.0, 128
      %784 = vxpose.xlu0.b32.cont [9/16] 0.0, 128
      %785 = vxpose.xlu0.b32.cont [10/16] 0.0, 128
      %786 = vxpose.xlu0.b32.cont [11/16] 0.0, 128
      %787 = vxpose.xlu0.b32.cont [12/16] 0.0, 128
      %788 = vxpose.xlu0.b32.cont [13/16] 0.0, 128
      %789 = vxpose.xlu0.b32.cont [14/16] 0.0, 128
      %790 = vxpose.xlu0.b32.cont [15/16] 0.0, 128
      %791 = vxpose.xlu0.b32.end [16/16] 0.0, 128
      %v792 = vpop.trf.xlu0
      %v793 = vpop.trf.xlu0
      %v794 = vpop.trf.xlu0
      %v795 = vpop.trf.xlu0
      %v796 = vpop.trf.xlu0
      %v797 = vpop.trf.xlu0
      %v798 = vpop.trf.xlu0
      %v799 = vpop.trf.xlu0
      %v800 = vpop.trf.xlu0
      %v801 = vpop.trf.xlu0
      %v802 = vpop.trf.xlu0
      %v803 = vpop.trf.xlu0
      %v804 = vpop.trf.xlu0
      %v805 = vpop.trf.xlu0
      %v806 = vpop.trf.xlu0
      %v807 = vpop.trf.xlu0
      %v809 = vsel %vm458, %v792, 0
      %v812 = vsel %vm458, %v793, 0
      %v815 = vsel %vm465, %v396, 0
      %817 = vmatprep.subr.mxu0 0.0
      %818 = vmatpush1.msra.mxu0 %v815
      %819 = vmatprep.subr.mxu0 0.0
      %820 = vmatpush1.msra.mxu0 0.0
      %821 = vmatprep.subr.mxu0 0.0
      %822 = vmatpush1.msra.mxu0 0.0
      %823 = vmatprep.subr.mxu0 0.0
      %824 = vmatpush1.msra.mxu0 0.0
      %825 = vmatprep.subr.mxu0 0.0
      %826 = vmatpush1.msra.mxu0 0.0
      %827 = vmatprep.subr.mxu0 0.0
      %828 = vmatpush1.msra.mxu0 0.0
      %829 = vmatprep.subr.mxu0 0.0
      %830 = vmatpush1.msra.mxu0 0.0
      %831 = vmatprep.subr.mxu0 0.0
      %832 = vmatpush1.msra.mxu0 0.0
      %833 = vmatprep.subr.mxu0 0.0
      %834 = vmatpush1.msra.mxu0 0.0
      %835 = vmatprep.subr.mxu0 0.0
      %836 = vmatpush1.msra.mxu0 0.0
      %837 = vmatprep.subr.mxu0 0.0
      %838 = vmatpush1.msra.mxu0 0.0
      %839 = vmatprep.subr.mxu0 0.0
      %840 = vmatpush1.msra.mxu0 0.0
      %841 = vmatprep.subr.mxu0 0.0
      %842 = vmatpush1.msra.mxu0 0.0
      %843 = vmatprep.subr.mxu0 0.0
      %844 = vmatpush1.msra.mxu0 0.0
      %845 = vmatprep.subr.mxu0 0.0
      %846 = vmatpush1.msra.mxu0 0.0
      %847 = vmatprep.subr.mxu0 0.0
      %848 = vmatpush1.msra.mxu0 0.0
      %849 = vmatprep.subr.mxu0 0.0
      %850 = vmatpush1.msra.mxu0 0.0
      %851 = vmatprep.subr.mxu0 0.0
      %852 = vmatpush1.msra.mxu0 0.0
      %853 = vmatprep.subr.mxu0 0.0
      %854 = vmatpush1.msra.mxu0 0.0
      %855 = vmatprep.subr.mxu0 0.0
      %856 = vmatpush1.msra.mxu0 0.0
      %857 = vmatprep.subr.mxu0 0.0
      %858 = vmatpush1.msra.mxu0 0.0
      %859 = vmatprep.subr.mxu0 0.0
      %860 = vmatpush1.msra.mxu0 0.0
      %861 = vmatprep.subr.mxu0 0.0
      %862 = vmatpush1.msra.mxu0 0.0
      %863 = vmatprep.subr.mxu0 0.0
      %864 = vmatpush1.msra.mxu0 0.0
      %865 = vmatprep.subr.mxu0 0.0
      %866 = vmatpush1.msra.mxu0 0.0
      %867 = vmatprep.subr.mxu0 0.0
      %868 = vmatpush1.msra.mxu0 0.0
      %869 = vmatprep.subr.mxu0 0.0
      %870 = vmatpush1.msra.mxu0 0.0
      %871 = vmatprep.subr.mxu0 0.0
      %872 = vmatpush1.msra.mxu0 0.0
      %873 = vmatprep.subr.mxu0 0.0
      %874 = vmatpush1.msra.mxu0 0.0
      %875 = vmatprep.subr.mxu0 0.0
      %876 = vmatpush1.msra.mxu0 0.0
      %877 = vmatprep.subr.mxu0 0.0
      %878 = vmatpush1.msra.mxu0 0.0
      %879 = vmatprep.subr.mxu0 0.0
      %880 = vmatpush1.msra.mxu0 0.0
      %881 = vmatprep.mubr.f32.mxu0 0.0
      %882 = vmatmul.mubr.f32.gmra.mrb[0].mxu0 %v809
      %v883 = vpop.f32.mrb[0].mxu0
      %v884 = vadd.f32 0.0, %v883
      %v885 = vpop.f32.mrb[0].mxu0
      %886 = vmatprep.mubr.f32.mxu0 0.0
      %887 = vmatmul.mubr.f32.gmra.mrb[0].mxu0 %v812
      %v888 = vpop.f32.mrb[0].mxu0
      %v889 = vadd.f32 0.0, %v888
      %v890 = vpop.f32.mrb[0].mxu0
      %891 = vdwg.mxu0
      %v892 = vld [vmem:[%s5] sm:$0xff]
      %v893 = vld [vmem:[%s5 + $0x8] sm:$0x7f]
      %v894 = vld [vmem:[%s6] sm:$0xff]
      %v895 = vld [vmem:[%s6 + $0x8] sm:$0x7f]
      %vm900 = vcmask 1041409
      %v901 = vsel %vm900, %v411, %v404
      %vm902 = vcmask 1042434
      %v903 = vsel %vm902, %v418, %v901
      %vm904 = vcmask 1043459
      %v905 = vsel %vm904, %v425, %v903
      %vm906 = vcmask 121856
      %v907 = vsel %vm906, %v905, 0
      %vm909 = vcmask 1046528
      %v911 = vsel %vm909, %v895, 0
      %913 = vmatprep.subr.mxu0 0.0
      %914 = vmatpush1.msra.mxu0 %v894
      %915 = vmatprep.subr.mxu0 0.0
      %916 = vmatpush1.msra.mxu0 %v911
      %917 = vmatprep.subr.mxu0 0.0
      %918 = vmatpush1.msra.mxu0 0.0
      %919 = vmatprep.subr.mxu0 0.0
      %920 = vmatpush1.msra.mxu0 0.0
      %921 = vmatprep.subr.mxu0 0.0
      %922 = vmatpush1.msra.mxu0 0.0
      %923 = vmatprep.subr.mxu0 0.0
      %924 = vmatpush1.msra.mxu0 0.0
      %925 = vmatprep.subr.mxu0 0.0
      %926 = vmatpush1.msra.mxu0 0.0
      %927 = vmatprep.subr.mxu0 0.0
      %928 = vmatpush1.msra.mxu0 0.0
      %929 = vmatprep.subr.mxu0 0.0
      %930 = vmatpush1.msra.mxu0 0.0
      %931 = vmatprep.subr.mxu0 0.0
      %932 = vmatpush1.msra.mxu0 0.0
      %933 = vmatprep.subr.mxu0 0.0
      %934 = vmatpush1.msra.mxu0 0.0
      %935 = vmatprep.subr.mxu0 0.0
      %936 = vmatpush1.msra.mxu0 0.0
      %937 = vmatprep.subr.mxu0 0.0
      %938 = vmatpush1.msra.mxu0 0.0
      %939 = vmatprep.subr.mxu0 0.0
      %940 = vmatpush1.msra.mxu0 0.0
      %941 = vmatprep.subr.mxu0 0.0
      %942 = vmatpush1.msra.mxu0 0.0
      %943 = vmatprep.subr.mxu0 0.0
      %944 = vmatpush1.msra.mxu0 0.0
      %945 = vmatprep.subr.mxu0 0.0
      %946 = vmatpush1.msra.mxu0 0.0
      %947 = vmatprep.subr.mxu0 0.0
      %948 = vmatpush1.msra.mxu0 0.0
      %949 = vmatprep.subr.mxu0 0.0
      %950 = vmatpush1.msra.mxu0 0.0
      %951 = vmatprep.subr.mxu0 0.0
      %952 = vmatpush1.msra.mxu0 0.0
      %953 = vmatprep.subr.mxu0 0.0
      %954 = vmatpush1.msra.mxu0 0.0
      %955 = vmatprep.subr.mxu0 0.0
      %956 = vmatpush1.msra.mxu0 0.0
      %957 = vmatprep.subr.mxu0 0.0
      %958 = vmatpush1.msra.mxu0 0.0
      %959 = vmatprep.subr.mxu0 0.0
      %960 = vmatpush1.msra.mxu0 0.0
      %961 = vmatprep.subr.mxu0 0.0
      %962 = vmatpush1.msra.mxu0 0.0
      %963 = vmatprep.subr.mxu0 0.0
      %964 = vmatpush1.msra.mxu0 0.0
      %965 = vmatprep.subr.mxu0 0.0
      %966 = vmatpush1.msra.mxu0 0.0
      %967 = vmatprep.subr.mxu0 0.0
      %968 = vmatpush1.msra.mxu0 0.0
      %969 = vmatprep.subr.mxu0 0.0
      %970 = vmatpush1.msra.mxu0 0.0
      %971 = vmatprep.subr.mxu0 0.0
      %972 = vmatpush1.msra.mxu0 0.0
      %973 = vmatprep.subr.mxu0 0.0
      %974 = vmatpush1.msra.mxu0 0.0
      %975 = vmatprep.subr.mxu0 0.0
      %976 = vmatpush1.msra.mxu0 0.0
      %977 = vmatprep.mubr.f32.mxu0 0.0
      %978 = vmatmul.mubr.f32.gmra.mrb[0].mxu0 %v907
      %v979 = vpop.f32.mrb[0].mxu0
      %v980 = vadd.f32 0.0, %v979
      %v981 = vpop.f32.mrb[0].mxu0
      %982 = vdwg.mxu0
      %v987 = vrot.slane %v331, 7
      %v988 = vsel %vm900, %v987, %v330
      %v989 = vrot.slane %v332, 6
      %v990 = vsel %vm902, %v989, %v988
      %v991 = vrot.slane %v333, 5
      %v992 = vsel %vm904, %v991, %v990
      %v993 = vsel %vm906, %v992, 0
      %v996 = vsel %vm909, %v893, 0
      %998 = vmatprep.subr.mxu0 0.0
      %999 = vmatpush1.msra.mxu0 %v892
      %1000 = vmatprep.subr.mxu0 0.0
      %1001 = vmatpush1.msra.mxu0 %v996
      %1002 = vmatprep.subr.mxu0 0.0
      %1003 = vmatpush1.msra.mxu0 0.0
      %1004 = vmatprep.subr.mxu0 0.0
      %1005 = vmatpush1.msra.mxu0 0.0
      %1006 = vmatprep.subr.mxu0 0.0
      %1007 = vmatpush1.msra.mxu0 0.0
      %1008 = vmatprep.subr.mxu0 0.0
      %1009 = vmatpush1.msra.mxu0 0.0
      %1010 = vmatprep.subr.mxu0 0.0
      %1011 = vmatpush1.msra.mxu0 0.0
      %1012 = vmatprep.subr.mxu0 0.0
      %1013 = vmatpush1.msra.mxu0 0.0
      %1014 = vmatprep.subr.mxu0 0.0
      %1015 = vmatpush1.msra.mxu0 0.0
      %1016 = vmatprep.subr.mxu0 0.0
      %1017 = vmatpush1.msra.mxu0 0.0
      %1018 = vmatprep.subr.mxu0 0.0
      %1019 = vmatpush1.msra.mxu0 0.0
      %1020 = vmatprep.subr.mxu0 0.0
      %1021 = vmatpush1.msra.mxu0 0.0
      %1022 = vmatprep.subr.mxu0 0.0
      %1023 = vmatpush1.msra.mxu0 0.0
      %1024 = vmatprep.subr.mxu0 0.0
      %1025 = vmatpush1.msra.mxu0 0.0
      %1026 = vmatprep.subr.mxu0 0.0
      %1027 = vmatpush1.msra.mxu0 0.0
      %1028 = vmatprep.subr.mxu0 0.0
      %1029 = vmatpush1.msra.mxu0 0.0
      %1030 = vmatprep.subr.mxu0 0.0
      %1031 = vmatpush1.msra.mxu0 0.0
      %1032 = vmatprep.subr.mxu0 0.0
      %1033 = vmatpush1.msra.mxu0 0.0
      %1034 = vmatprep.subr.mxu0 0.0
      %1035 = vmatpush1.msra.mxu0 0.0
      %1036 = vmatprep.subr.mxu0 0.0
      %1037 = vmatpush1.msra.mxu0 0.0
      %1038 = vmatprep.subr.mxu0 0.0
      %1039 = vmatpush1.msra.mxu0 0.0
      %1040 = vmatprep.subr.mxu0 0.0
      %1041 = vmatpush1.msra.mxu0 0.0
      %1042 = vmatprep.subr.mxu0 0.0
      %1043 = vmatpush1.msra.mxu0 0.0
      %1044 = vmatprep.subr.mxu0 0.0
      %1045 = vmatpush1.msra.mxu0 0.0
      %1046 = vmatprep.subr.mxu0 0.0
      %1047 = vmatpush1.msra.mxu0 0.0
      %1048 = vmatprep.subr.mxu0 0.0
      %1049 = vmatpush1.msra.mxu0 0.0
      %1050 = vmatprep.subr.mxu0 0.0
      %1051 = vmatpush1.msra.mxu0 0.0
      %1052 = vmatprep.subr.mxu0 0.0
      %1053 = vmatpush1.msra.mxu0 0.0
      %1054 = vmatprep.subr.mxu0 0.0
      %1055 = vmatpush1.msra.mxu0 0.0
      %1056 = vmatprep.subr.mxu0 0.0
      %1057 = vmatpush1.msra.mxu0 0.0
      %1058 = vmatprep.subr.mxu0 0.0
      %1059 = vmatpush1.msra.mxu0 0.0
      %1060 = vmatprep.subr.mxu0 0.0
      %1061 = vmatpush1.msra.mxu0 0.0
      %1062 = vmatprep.mubr.f32.mxu0 0.0
      %1063 = vmatmul.mubr.f32.gmra.mrb[0].mxu0 %v993
      %v1064 = vpop.f32.mrb[0].mxu0
      %v1065 = vadd.f32 %v980, %v1064
      %v1066 = vpop.f32.mrb[0].mxu0
      %1067 = vdwg.mxu0
      %v1068 = vld [vmem:[%s7] sm:$0xff]
      %v1069 = vld [vmem:[%s7 + $0x8] sm:$0x7f]
      %s1070 = scalar_lea.vmem %s7, 16
      %v1071 = vld [vmem:[%s1070] sm:$0xff]
      %v1072 = vld [vmem:[%s1070 + $0x8] sm:$0x7f]
      %v1077 = vrot.slane %v536, 1
      %v1078 = vsel %vm900, %v652, %v1077
      %v1079 = vrot.slane %v768, 7
      %v1080 = vsel %vm902, %v1079, %v1078
      %v1081 = vrot.slane %v884, 6
      %v1082 = vsel %vm904, %v1081, %v1080
      %v1083 = vsel %vm906, %v1082, 0
      %v1086 = vsel %vm909, %v1072, 0
      %1088 = vmatprep.subr.mxu0 0.0
      %1089 = vmatpush1.msra.mxu0 %v1071
      %1090 = vmatprep.subr.mxu0 0.0
      %1091 = vmatpush1.msra.mxu0 %v1086
      %1092 = vmatprep.subr.mxu0 0.0
      %1093 = vmatpush1.msra.mxu0 0.0
      %1094 = vmatprep.subr.mxu0 0.0
      %1095 = vmatpush1.msra.mxu0 0.0
      %1096 = vmatprep.subr.mxu0 0.0
      %1097 = vmatpush1.msra.mxu0 0.0
      %1098 = vmatprep.subr.mxu0 0.0
      %1099 = vmatpush1.msra.mxu0 0.0
      %1100 = vmatprep.subr.mxu0 0.0
      %1101 = vmatpush1.msra.mxu0 0.0
      %1102 = vmatprep.subr.mxu0 0.0
      %1103 = vmatpush1.msra.mxu0 0.0
      %1104 = vmatprep.subr.mxu0 0.0
      %1105 = vmatpush1.msra.mxu0 0.0
      %1106 = vmatprep.subr.mxu0 0.0
      %1107 = vmatpush1.msra.mxu0 0.0
      %1108 = vmatprep.subr.mxu0 0.0
      %1109 = vmatpush1.msra.mxu0 0.0
      %1110 = vmatprep.subr.mxu0 0.0
      %1111 = vmatpush1.msra.mxu0 0.0
      %1112 = vmatprep.subr.mxu0 0.0
      %1113 = vmatpush1.msra.mxu0 0.0
      %1114 = vmatprep.subr.mxu0 0.0
      %1115 = vmatpush1.msra.mxu0 0.0
      %1116 = vmatprep.subr.mxu0 0.0
      %1117 = vmatpush1.msra.mxu0 0.0
      %1118 = vmatprep.subr.mxu0 0.0
      %1119 = vmatpush1.msra.mxu0 0.0
      %1120 = vmatprep.subr.mxu0 0.0
      %1121 = vmatpush1.msra.mxu0 0.0
      %1122 = vmatprep.subr.mxu0 0.0
      %1123 = vmatpush1.msra.mxu0 0.0
      %1124 = vmatprep.subr.mxu0 0.0
      %1125 = vmatpush1.msra.mxu0 0.0
      %1126 = vmatprep.subr.mxu0 0.0
      %1127 = vmatpush1.msra.mxu0 0.0
      %1128 = vmatprep.subr.mxu0 0.0
      %1129 = vmatpush1.msra.mxu0 0.0
      %1130 = vmatprep.subr.mxu0 0.0
      %1131 = vmatpush1.msra.mxu0 0.0
      %1132 = vmatprep.subr.mxu0 0.0
      %1133 = vmatpush1.msra.mxu0 0.0
      %1134 = vmatprep.subr.mxu0 0.0
      %1135 = vmatpush1.msra.mxu0 0.0
      %1136 = vmatprep.subr.mxu0 0.0
      %1137 = vmatpush1.msra.mxu0 0.0
      %1138 = vmatprep.subr.mxu0 0.0
      %1139 = vmatpush1.msra.mxu0 0.0
      %1140 = vmatprep.subr.mxu0 0.0
      %1141 = vmatpush1.msra.mxu0 0.0
      %1142 = vmatprep.subr.mxu0 0.0
      %1143 = vmatpush1.msra.mxu0 0.0
      %1144 = vmatprep.subr.mxu0 0.0
      %1145 = vmatpush1.msra.mxu0 0.0
      %1146 = vmatprep.subr.mxu0 0.0
      %1147 = vmatpush1.msra.mxu0 0.0
      %1148 = vmatprep.subr.mxu0 0.0
      %1149 = vmatpush1.msra.mxu0 0.0
      %1150 = vmatprep.subr.mxu0 0.0
      %1151 = vmatpush1.msra.mxu0 0.0
      %1152 = vmatprep.mubr.f32.mxu0 0.0
      %1153 = vmatmul.mubr.f32.gmra.mrb[0].mxu0 %v1083
      %v1154 = vpop.f32.mrb[0].mxu0
      %v1155 = vadd.f32 0.0, %v1154
      %v1156 = vpop.f32.mrb[0].mxu0
      %1157 = vdwg.mxu0
      %v1158 = vrot.slane %v652, 7
      %v1159 = vsel %vm900, %v1158, %v536
      %v1160 = vrot.slane %v768, 6
      %v1161 = vsel %vm902, %v1160, %v1159
      %v1162 = vrot.slane %v884, 5
      %v1163 = vsel %vm904, %v1162, %v1161
      %v1164 = vsel %vm906, %v1163, 0
      %v1167 = vsel %vm909, %v1069, 0
      %1169 = vmatprep.subr.mxu0 0.0
      %1170 = vmatpush1.msra.mxu0 %v1068
      %1171 = vmatprep.subr.mxu0 0.0
      %1172 = vmatpush1.msra.mxu0 %v1167
      %1173 = vmatprep.subr.mxu0 0.0
      %1174 = vmatpush1.msra.mxu0 0.0
      %1175 = vmatprep.subr.mxu0 0.0
      %1176 = vmatpush1.msra.mxu0 0.0
      %1177 = vmatprep.subr.mxu0 0.0
      %1178 = vmatpush1.msra.mxu0 0.0
      %1179 = vmatprep.subr.mxu0 0.0
      %1180 = vmatpush1.msra.mxu0 0.0
      %1181 = vmatprep.subr.mxu0 0.0
      %1182 = vmatpush1.msra.mxu0 0.0
      %1183 = vmatprep.subr.mxu0 0.0
      %1184 = vmatpush1.msra.mxu0 0.0
      %1185 = vmatprep.subr.mxu0 0.0
      %1186 = vmatpush1.msra.mxu0 0.0
      %1187 = vmatprep.subr.mxu0 0.0
      %1188 = vmatpush1.msra.mxu0 0.0
      %1189 = vmatprep.subr.mxu0 0.0
      %1190 = vmatpush1.msra.mxu0 0.0
      %1191 = vmatprep.subr.mxu0 0.0
      %1192 = vmatpush1.msra.mxu0 0.0
      %1193 = vmatprep.subr.mxu0 0.0
      %1194 = vmatpush1.msra.mxu0 0.0
      %1195 = vmatprep.subr.mxu0 0.0
      %1196 = vmatpush1.msra.mxu0 0.0
      %1197 = vmatprep.subr.mxu0 0.0
      %1198 = vmatpush1.msra.mxu0 0.0
      %1199 = vmatprep.subr.mxu0 0.0
      %1200 = vmatpush1.msra.mxu0 0.0
      %1201 = vmatprep.subr.mxu0 0.0
      %1202 = vmatpush1.msra.mxu0 0.0
      %1203 = vmatprep.subr.mxu0 0.0
      %1204 = vmatpush1.msra.mxu0 0.0
      %1205 = vmatprep.subr.mxu0 0.0
      %1206 = vmatpush1.msra.mxu0 0.0
      %1207 = vmatprep.subr.mxu0 0.0
      %1208 = vmatpush1.msra.mxu0 0.0
      %1209 = vmatprep.subr.mxu0 0.0
      %1210 = vmatpush1.msra.mxu0 0.0
      %1211 = vmatprep.subr.mxu0 0.0
      %1212 = vmatpush1.msra.mxu0 0.0
      %1213 = vmatprep.subr.mxu0 0.0
      %1214 = vmatpush1.msra.mxu0 0.0
      %1215 = vmatprep.subr.mxu0 0.0
      %1216 = vmatpush1.msra.mxu0 0.0
      %1217 = vmatprep.subr.mxu0 0.0
      %1218 = vmatpush1.msra.mxu0 0.0
      %1219 = vmatprep.subr.mxu0 0.0
      %1220 = vmatpush1.msra.mxu0 0.0
      %1221 = vmatprep.subr.mxu0 0.0
      %1222 = vmatpush1.msra.mxu0 0.0
      %1223 = vmatprep.subr.mxu0 0.0
      %1224 = vmatpush1.msra.mxu0 0.0
      %1225 = vmatprep.subr.mxu0 0.0
      %1226 = vmatpush1.msra.mxu0 0.0
      %1227 = vmatprep.subr.mxu0 0.0
      %1228 = vmatpush1.msra.mxu0 0.0
      %1229 = vmatprep.subr.mxu0 0.0
      %1230 = vmatpush1.msra.mxu0 0.0
      %1231 = vmatprep.subr.mxu0 0.0
      %1232 = vmatpush1.msra.mxu0 0.0
      %1233 = vmatprep.mubr.f32.mxu0 0.0
      %1234 = vmatmul.mubr.f32.gmra.mrb[0].mxu0 %v1164
      %v1235 = vpop.f32.mrb[0].mxu0
      %v1236 = vadd.f32 %v1155, %v1235
      %v1237 = vpop.f32.mrb[0].mxu0
      %1238 = vdwg.mxu0
      %s1239 = scalar_lea.vmem %s7, 32
      %v1240 = vld [vmem:[%s1239] sm:$0xff]
      %v1241 = vld [vmem:[%s1239 + $0x8] sm:$0x7f]
      %v1242 = vrot.slane %v536, 2
      %v1243 = vrot.slane %v652, 1
      %v1244 = vsel %vm900, %v1243, %v1242
      %v1245 = vsel %vm902, %v768, %v1244
      %v1246 = vrot.slane %v884, 7
      %v1247 = vsel %vm904, %v1246, %v1245
      %v1248 = vsel %vm906, %v1247, 0
      %v1251 = vsel %vm909, %v1241, 0
      %1253 = vmatprep.subr.mxu0 0.0
      %1254 = vmatpush1.msra.mxu0 %v1240
      %1255 = vmatprep.subr.mxu0 0.0
      %1256 = vmatpush1.msra.mxu0 %v1251
      %1257 = vmatprep.subr.mxu0 0.0
      %1258 = vmatpush1.msra.mxu0 0.0
      %1259 = vmatprep.subr.mxu0 0.0
      %1260 = vmatpush1.msra.mxu0 0.0
      %1261 = vmatprep.subr.mxu0 0.0
      %1262 = vmatpush1.msra.mxu0 0.0
      %1263 = vmatprep.subr.mxu0 0.0
      %1264 = vmatpush1.msra.mxu0 0.0
      %1265 = vmatprep.subr.mxu0 0.0
      %1266 = vmatpush1.msra.mxu0 0.0
      %1267 = vmatprep.subr.mxu0 0.0
      %1268 = vmatpush1.msra.mxu0 0.0
      %1269 = vmatprep.subr.mxu0 0.0
      %1270 = vmatpush1.msra.mxu0 0.0
      %1271 = vmatprep.subr.mxu0 0.0
      %1272 = vmatpush1.msra.mxu0 0.0
      %1273 = vmatprep.subr.mxu0 0.0
      %1274 = vmatpush1.msra.mxu0 0.0
      %1275 = vmatprep.subr.mxu0 0.0
      %1276 = vmatpush1.msra.mxu0 0.0
      %1277 = vmatprep.subr.mxu0 0.0
      %1278 = vmatpush1.msra.mxu0 0.0
      %1279 = vmatprep.subr.mxu0 0.0
      %1280 = vmatpush1.msra.mxu0 0.0
      %1281 = vmatprep.subr.mxu0 0.0
      %1282 = vmatpush1.msra.mxu0 0.0
      %1283 = vmatprep.subr.mxu0 0.0
      %1284 = vmatpush1.msra.mxu0 0.0
      %1285 = vmatprep.subr.mxu0 0.0
      %1286 = vmatpush1.msra.mxu0 0.0
      %1287 = vmatprep.subr.mxu0 0.0
      %1288 = vmatpush1.msra.mxu0 0.0
      %1289 = vmatprep.subr.mxu0 0.0
      %1290 = vmatpush1.msra.mxu0 0.0
      %1291 = vmatprep.subr.mxu0 0.0
      %1292 = vmatpush1.msra.mxu0 0.0
      %1293 = vmatprep.subr.mxu0 0.0
      %1294 = vmatpush1.msra.mxu0 0.0
      %1295 = vmatprep.subr.mxu0 0.0
      %1296 = vmatpush1.msra.mxu0 0.0
      %1297 = vmatprep.subr.mxu0 0.0
      %1298 = vmatpush1.msra.mxu0 0.0
      %1299 = vmatprep.subr.mxu0 0.0
      %1300 = vmatpush1.msra.mxu0 0.0
      %1301 = vmatprep.subr.mxu0 0.0
      %1302 = vmatpush1.msra.mxu0 0.0
      %1303 = vmatprep.subr.mxu0 0.0
      %1304 = vmatpush1.msra.mxu0 0.0
      %1305 = vmatprep.subr.mxu0 0.0
      %1306 = vmatpush1.msra.mxu0 0.0
      %1307 = vmatprep.subr.mxu0 0.0
      %1308 = vmatpush1.msra.mxu0 0.0
      %1309 = vmatprep.subr.mxu0 0.0
      %1310 = vmatpush1.msra.mxu0 0.0
      %1311 = vmatprep.subr.mxu0 0.0
      %1312 = vmatpush1.msra.mxu0 0.0
      %1313 = vmatprep.subr.mxu0 0.0
      %1314 = vmatpush1.msra.mxu0 0.0
      %1315 = vmatprep.subr.mxu0 0.0
      %1316 = vmatpush1.msra.mxu0 0.0
      %1317 = vmatprep.mubr.f32.mxu0 0.0
      %1318 = vmatmul.mubr.f32.gmra.mrb[0].mxu0 %v1248
      %v1319 = vpop.f32.mrb[0].mxu0
      %v1320 = vadd.f32 0.0, %v1319
      %v1321 = vpop.f32.mrb[0].mxu0
      %1322 = vdwg.mxu0
      %v1323 = vadd.f32 %v1236, %v1320
      %s1324 = scalar_lea.vmem %s7, 48
      %v1325 = vld [vmem:[%s1324] sm:$0xff]
      %v1326 = vld [vmem:[%s1324 + $0x8] sm:$0x7f]
      %v1327 = vrot.slane %v536, 3
      %v1328 = vrot.slane %v652, 2
      %v1329 = vsel %vm900, %v1328, %v1327
      %v1330 = vrot.slane %v768, 1
      %v1331 = vsel %vm902, %v1330, %v1329
      %v1332 = vsel %vm904, %v884, %v1331
      %v1333 = vsel %vm906, %v1332, 0
      %v1336 = vsel %vm909, %v1326, 0
      %1338 = vmatprep.subr.mxu0 0.0
      %1339 = vmatpush1.msra.mxu0 %v1325
      %1340 = vmatprep.subr.mxu0 0.0
      %1341 = vmatpush1.msra.mxu0 %v1336
      %1342 = vmatprep.subr.mxu0 0.0
      %1343 = vmatpush1.msra.mxu0 0.0
      %1344 = vmatprep.subr.mxu0 0.0
      %1345 = vmatpush1.msra.mxu0 0.0
      %1346 = vmatprep.subr.mxu0 0.0
      %1347 = vmatpush1.msra.mxu0 0.0
      %1348 = vmatprep.subr.mxu0 0.0
      %1349 = vmatpush1.msra.mxu0 0.0
      %1350 = vmatprep.subr.mxu0 0.0
      %1351 = vmatpush1.msra.mxu0 0.0
      %1352 = vmatprep.subr.mxu0 0.0
      %1353 = vmatpush1.msra.mxu0 0.0
      %1354 = vmatprep.subr.mxu0 0.0
      %1355 = vmatpush1.msra.mxu0 0.0
      %1356 = vmatprep.subr.mxu0 0.0
      %1357 = vmatpush1.msra.mxu0 0.0
      %1358 = vmatprep.subr.mxu0 0.0
      %1359 = vmatpush1.msra.mxu0 0.0
      %1360 = vmatprep.subr.mxu0 0.0
      %1361 = vmatpush1.msra.mxu0 0.0
      %1362 = vmatprep.subr.mxu0 0.0
      %1363 = vmatpush1.msra.mxu0 0.0
      %1364 = vmatprep.subr.mxu0 0.0
      %1365 = vmatpush1.msra.mxu0 0.0
      %1366 = vmatprep.subr.mxu0 0.0
      %1367 = vmatpush1.msra.mxu0 0.0
      %1368 = vmatprep.subr.mxu0 0.0
      %1369 = vmatpush1.msra.mxu0 0.0
      %1370 = vmatprep.subr.mxu0 0.0
      %1371 = vmatpush1.msra.mxu0 0.0
      %1372 = vmatprep.subr.mxu0 0.0
      %1373 = vmatpush1.msra.mxu0 0.0
      %1374 = vmatprep.subr.mxu0 0.0
      %1375 = vmatpush1.msra.mxu0 0.0
      %1376 = vmatprep.subr.mxu0 0.0
      %1377 = vmatpush1.msra.mxu0 0.0
      %1378 = vmatprep.subr.mxu0 0.0
      %1379 = vmatpush1.msra.mxu0 0.0
      %1380 = vmatprep.subr.mxu0 0.0
      %1381 = vmatpush1.msra.mxu0 0.0
      %1382 = vmatprep.subr.mxu0 0.0
      %1383 = vmatpush1.msra.mxu0 0.0
      %1384 = vmatprep.subr.mxu0 0.0
      %1385 = vmatpush1.msra.mxu0 0.0
      %1386 = vmatprep.subr.mxu0 0.0
      %1387 = vmatpush1.msra.mxu0 0.0
      %1388 = vmatprep.subr.mxu0 0.0
      %1389 = vmatpush1.msra.mxu0 0.0
      %1390 = vmatprep.subr.mxu0 0.0
      %1391 = vmatpush1.msra.mxu0 0.0
      %1392 = vmatprep.subr.mxu0 0.0
      %1393 = vmatpush1.msra.mxu0 0.0
      %1394 = vmatprep.subr.mxu0 0.0
      %1395 = vmatpush1.msra.mxu0 0.0
      %1396 = vmatprep.subr.mxu0 0.0
      %1397 = vmatpush1.msra.mxu0 0.0
      %1398 = vmatprep.subr.mxu0 0.0
      %1399 = vmatpush1.msra.mxu0 0.0
      %1400 = vmatprep.subr.mxu0 0.0
      %1401 = vmatpush1.msra.mxu0 0.0
      %1402 = vmatprep.mubr.f32.mxu0 0.0
      %1403 = vmatmul.mubr.f32.gmra.mrb[0].mxu0 %v1333
      %v1404 = vpop.f32.mrb[0].mxu0
      %v1405 = vadd.f32 0.0, %v1404
      %v1406 = vpop.f32.mrb[0].mxu0
      %1407 = vdwg.mxu0
      %v1408 = vadd.f32 %v1323, %v1405
      %s1409 = scalar_lea.vmem %s7, 64
      %v1410 = vld [vmem:[%s1409] sm:$0xff]
      %v1411 = vld [vmem:[%s1409 + $0x8] sm:$0x7f]
      %v1412 = vrot.slane %v536, 4
      %v1413 = vrot.slane %v652, 3
      %v1414 = vsel %vm900, %v1413, %v1412
      %v1415 = vrot.slane %v768, 2
      %v1416 = vsel %vm902, %v1415, %v1414
      %v1417 = vrot.slane %v884, 1
      %v1418 = vsel %vm904, %v1417, %v1416
      %v1419 = vsel %vm906, %v1418, 0
      %v1422 = vsel %vm909, %v1411, 0
      %1424 = vmatprep.subr.mxu0 0.0
      %1425 = vmatpush1.msra.mxu0 %v1410
      %1426 = vmatprep.subr.mxu0 0.0
      %1427 = vmatpush1.msra.mxu0 %v1422
      %1428 = vmatprep.subr.mxu0 0.0
      %1429 = vmatpush1.msra.mxu0 0.0
      %1430 = vmatprep.subr.mxu0 0.0
      %1431 = vmatpush1.msra.mxu0 0.0
      %1432 = vmatprep.subr.mxu0 0.0
      %1433 = vmatpush1.msra.mxu0 0.0
      %1434 = vmatprep.subr.mxu0 0.0
      %1435 = vmatpush1.msra.mxu0 0.0
      %1436 = vmatprep.subr.mxu0 0.0
      %1437 = vmatpush1.msra.mxu0 0.0
      %1438 = vmatprep.subr.mxu0 0.0
      %1439 = vmatpush1.msra.mxu0 0.0
      %1440 = vmatprep.subr.mxu0 0.0
      %1441 = vmatpush1.msra.mxu0 0.0
      %1442 = vmatprep.subr.mxu0 0.0
      %1443 = vmatpush1.msra.mxu0 0.0
      %1444 = vmatprep.subr.mxu0 0.0
      %1445 = vmatpush1.msra.mxu0 0.0
      %1446 = vmatprep.subr.mxu0 0.0
      %1447 = vmatpush1.msra.mxu0 0.0
      %1448 = vmatprep.subr.mxu0 0.0
      %1449 = vmatpush1.msra.mxu0 0.0
      %1450 = vmatprep.subr.mxu0 0.0
      %1451 = vmatpush1.msra.mxu0 0.0
      %1452 = vmatprep.subr.mxu0 0.0
      %1453 = vmatpush1.msra.mxu0 0.0
      %1454 = vmatprep.subr.mxu0 0.0
      %1455 = vmatpush1.msra.mxu0 0.0
      %1456 = vmatprep.subr.mxu0 0.0
      %1457 = vmatpush1.msra.mxu0 0.0
      %1458 = vmatprep.subr.mxu0 0.0
      %1459 = vmatpush1.msra.mxu0 0.0
      %1460 = vmatprep.subr.mxu0 0.0
      %1461 = vmatpush1.msra.mxu0 0.0
      %1462 = vmatprep.subr.mxu0 0.0
      %1463 = vmatpush1.msra.mxu0 0.0
      %1464 = vmatprep.subr.mxu0 0.0
      %1465 = vmatpush1.msra.mxu0 0.0
      %1466 = vmatprep.subr.mxu0 0.0
      %1467 = vmatpush1.msra.mxu0 0.0
      %1468 = vmatprep.subr.mxu0 0.0
      %1469 = vmatpush1.msra.mxu0 0.0
      %1470 = vmatprep.subr.mxu0 0.0
      %1471 = vmatpush1.msra.mxu0 0.0
      %1472 = vmatprep.subr.mxu0 0.0
      %1473 = vmatpush1.msra.mxu0 0.0
      %1474 = vmatprep.subr.mxu0 0.0
      %1475 = vmatpush1.msra.mxu0 0.0
      %1476 = vmatprep.subr.mxu0 0.0
      %1477 = vmatpush1.msra.mxu0 0.0
      %1478 = vmatprep.subr.mxu0 0.0
      %1479 = vmatpush1.msra.mxu0 0.0
      %1480 = vmatprep.subr.mxu0 0.0
      %1481 = vmatpush1.msra.mxu0 0.0
      %1482 = vmatprep.subr.mxu0 0.0
      %1483 = vmatpush1.msra.mxu0 0.0
      %1484 = vmatprep.subr.mxu0 0.0
      %1485 = vmatpush1.msra.mxu0 0.0
      %1486 = vmatprep.subr.mxu0 0.0
      %1487 = vmatpush1.msra.mxu0 0.0
      %1488 = vmatprep.mubr.f32.mxu0 0.0
      %1489 = vmatmul.mubr.f32.gmra.mrb[0].mxu0 %v1419
      %v1490 = vpop.f32.mrb[0].mxu0
      %v1491 = vadd.f32 0.0, %v1490
      %v1492 = vpop.f32.mrb[0].mxu0
      %1493 = vdwg.mxu0
      %v1494 = vadd.f32 %v1408, %v1491
      %s1495 = scalar_lea.vmem %s7, 80
      %v1496 = vld [vmem:[%s1495] sm:$0xff]
      %v1497 = vld [vmem:[%s1495 + $0x8] sm:$0x7f]
      %v1498 = vrot.slane %v536, 5
      %v1499 = vrot.slane %v652, 4
      %v1500 = vsel %vm900, %v1499, %v1498
      %v1501 = vrot.slane %v768, 3
      %v1502 = vsel %vm902, %v1501, %v1500
      %v1503 = vrot.slane %v884, 2
      %v1504 = vsel %vm904, %v1503, %v1502
      %v1505 = vsel %vm906, %v1504, 0
      %v1508 = vsel %vm909, %v1497, 0
      %1510 = vmatprep.subr.mxu0 0.0
      %1511 = vmatpush1.msra.mxu0 %v1496
      %1512 = vmatprep.subr.mxu0 0.0
      %1513 = vmatpush1.msra.mxu0 %v1508
      %1514 = vmatprep.subr.mxu0 0.0
      %1515 = vmatpush1.msra.mxu0 0.0
      %1516 = vmatprep.subr.mxu0 0.0
      %1517 = vmatpush1.msra.mxu0 0.0
      %1518 = vmatprep.subr.mxu0 0.0
      %1519 = vmatpush1.msra.mxu0 0.0
      %1520 = vmatprep.subr.mxu0 0.0
      %1521 = vmatpush1.msra.mxu0 0.0
      %1522 = vmatprep.subr.mxu0 0.0
      %1523 = vmatpush1.msra.mxu0 0.0
      %1524 = vmatprep.subr.mxu0 0.0
      %1525 = vmatpush1.msra.mxu0 0.0
      %1526 = vmatprep.subr.mxu0 0.0
      %1527 = vmatpush1.msra.mxu0 0.0
      %1528 = vmatprep.subr.mxu0 0.0
      %1529 = vmatpush1.msra.mxu0 0.0
      %1530 = vmatprep.subr.mxu0 0.0
      %1531 = vmatpush1.msra.mxu0 0.0
      %1532 = vmatprep.subr.mxu0 0.0
      %1533 = vmatpush1.msra.mxu0 0.0
      %1534 = vmatprep.subr.mxu0 0.0
      %1535 = vmatpush1.msra.mxu0 0.0
      %1536 = vmatprep.subr.mxu0 0.0
      %1537 = vmatpush1.msra.mxu0 0.0
      %1538 = vmatprep.subr.mxu0 0.0
      %1539 = vmatpush1.msra.mxu0 0.0
      %1540 = vmatprep.subr.mxu0 0.0
      %1541 = vmatpush1.msra.mxu0 0.0
      %1542 = vmatprep.subr.mxu0 0.0
      %1543 = vmatpush1.msra.mxu0 0.0
      %1544 = vmatprep.subr.mxu0 0.0
      %1545 = vmatpush1.msra.mxu0 0.0
      %1546 = vmatprep.subr.mxu0 0.0
      %1547 = vmatpush1.msra.mxu0 0.0
      %1548 = vmatprep.subr.mxu0 0.0
      %1549 = vmatpush1.msra.mxu0 0.0
      %1550 = vmatprep.subr.mxu0 0.0
      %1551 = vmatpush1.msra.mxu0 0.0
      %1552 = vmatprep.subr.mxu0 0.0
      %1553 = vmatpush1.msra.mxu0 0.0
      %1554 = vmatprep.subr.mxu0 0.0
      %1555 = vmatpush1.msra.mxu0 0.0
      %1556 = vmatprep.subr.mxu0 0.0
      %1557 = vmatpush1.msra.mxu0 0.0
      %1558 = vmatprep.subr.mxu0 0.0
      %1559 = vmatpush1.msra.mxu0 0.0
      %1560 = vmatprep.subr.mxu0 0.0
      %1561 = vmatpush1.msra.mxu0 0.0
      %1562 = vmatprep.subr.mxu0 0.0
      %1563 = vmatpush1.msra.mxu0 0.0
      %1564 = vmatprep.subr.mxu0 0.0
      %1565 = vmatpush1.msra.mxu0 0.0
      %1566 = vmatprep.subr.mxu0 0.0
      %1567 = vmatpush1.msra.mxu0 0.0
      %1568 = vmatprep.subr.mxu0 0.0
      %1569 = vmatpush1.msra.mxu0 0.0
      %1570 = vmatprep.subr.mxu0 0.0
      %1571 = vmatpush1.msra.mxu0 0.0
      %1572 = vmatprep.subr.mxu0 0.0
      %1573 = vmatpush1.msra.mxu0 0.0
      %1574 = vmatprep.mubr.f32.mxu0 0.0
      %1575 = vmatmul.mubr.f32.gmra.mrb[0].mxu0 %v1505
      %v1576 = vpop.f32.mrb[0].mxu0
      %v1577 = vadd.f32 0.0, %v1576
      %v1578 = vpop.f32.mrb[0].mxu0
      %1579 = vdwg.mxu0
      %v1580 = vadd.f32 %v1494, %v1577
      %s1581 = scalar_lea.vmem %s7, 96
      %v1582 = vld [vmem:[%s1581] sm:$0xff]
      %v1583 = vld [vmem:[%s1581 + $0x8] sm:$0x7f]
      %v1584 = vrot.slane %v536, 6
      %v1585 = vrot.slane %v652, 5
      %v1586 = vsel %vm900, %v1585, %v1584
      %v1587 = vrot.slane %v768, 4
      %v1588 = vsel %vm902, %v1587, %v1586
      %v1589 = vrot.slane %v884, 3
      %v1590 = vsel %vm904, %v1589, %v1588
      %v1591 = vsel %vm906, %v1590, 0
      %v1594 = vsel %vm909, %v1583, 0
      %1596 = vmatprep.subr.mxu0 0.0
      %1597 = vmatpush1.msra.mxu0 %v1582
      %1598 = vmatprep.subr.mxu0 0.0
      %1599 = vmatpush1.msra.mxu0 %v1594
      %1600 = vmatprep.subr.mxu0 0.0
      %1601 = vmatpush1.msra.mxu0 0.0
      %1602 = vmatprep.subr.mxu0 0.0
      %1603 = vmatpush1.msra.mxu0 0.0
      %1604 = vmatprep.subr.mxu0 0.0
      %1605 = vmatpush1.msra.mxu0 0.0
      %1606 = vmatprep.subr.mxu0 0.0
      %1607 = vmatpush1.msra.mxu0 0.0
      %1608 = vmatprep.subr.mxu0 0.0
      %1609 = vmatpush1.msra.mxu0 0.0
      %1610 = vmatprep.subr.mxu0 0.0
      %1611 = vmatpush1.msra.mxu0 0.0
      %1612 = vmatprep.subr.mxu0 0.0
      %1613 = vmatpush1.msra.mxu0 0.0
      %1614 = vmatprep.subr.mxu0 0.0
      %1615 = vmatpush1.msra.mxu0 0.0
      %1616 = vmatprep.subr.mxu0 0.0
      %1617 = vmatpush1.msra.mxu0 0.0
      %1618 = vmatprep.subr.mxu0 0.0
      %1619 = vmatpush1.msra.mxu0 0.0
      %1620 = vmatprep.subr.mxu0 0.0
      %1621 = vmatpush1.msra.mxu0 0.0
      %1622 = vmatprep.subr.mxu0 0.0
      %1623 = vmatpush1.msra.mxu0 0.0
      %1624 = vmatprep.subr.mxu0 0.0
      %1625 = vmatpush1.msra.mxu0 0.0
      %1626 = vmatprep.subr.mxu0 0.0
      %1627 = vmatpush1.msra.mxu0 0.0
      %1628 = vmatprep.subr.mxu0 0.0
      %1629 = vmatpush1.msra.mxu0 0.0
      %1630 = vmatprep.subr.mxu0 0.0
      %1631 = vmatpush1.msra.mxu0 0.0
      %1632 = vmatprep.subr.mxu0 0.0
      %1633 = vmatpush1.msra.mxu0 0.0
      %1634 = vmatprep.subr.mxu0 0.0
      %1635 = vmatpush1.msra.mxu0 0.0
      %1636 = vmatprep.subr.mxu0 0.0
      %1637 = vmatpush1.msra.mxu0 0.0
      %1638 = vmatprep.subr.mxu0 0.0
      %1639 = vmatpush1.msra.mxu0 0.0
      %1640 = vmatprep.subr.mxu0 0.0
      %1641 = vmatpush1.msra.mxu0 0.0
      %1642 = vmatprep.subr.mxu0 0.0
      %1643 = vmatpush1.msra.mxu0 0.0
      %1644 = vmatprep.subr.mxu0 0.0
      %1645 = vmatpush1.msra.mxu0 0.0
      %1646 = vmatprep.subr.mxu0 0.0
      %1647 = vmatpush1.msra.mxu0 0.0
      %1648 = vmatprep.subr.mxu0 0.0
      %1649 = vmatpush1.msra.mxu0 0.0
      %1650 = vmatprep.subr.mxu0 0.0
      %1651 = vmatpush1.msra.mxu0 0.0
      %1652 = vmatprep.subr.mxu0 0.0
      %1653 = vmatpush1.msra.mxu0 0.0
      %1654 = vmatprep.subr.mxu0 0.0
      %1655 = vmatpush1.msra.mxu0 0.0
      %1656 = vmatprep.subr.mxu0 0.0
      %1657 = vmatpush1.msra.mxu0 0.0
      %1658 = vmatprep.subr.mxu0 0.0
      %1659 = vmatpush1.msra.mxu0 0.0
      %1660 = vmatprep.mubr.f32.mxu0 0.0
      %1661 = vmatmul.mubr.f32.gmra.mrb[0].mxu0 %v1591
      %v1662 = vpop.f32.mrb[0].mxu0
      %v1663 = vadd.f32 0.0, %v1662
      %v1664 = vpop.f32.mrb[0].mxu0
      %1665 = vdwg.mxu0
      %v1666 = vadd.f32 %v1580, %v1663
      %s1667 = scalar_lea.vmem %s7, 112
      %v1668 = vld [vmem:[%s1667] sm:$0xff]
      %v1669 = vld [vmem:[%s1667 + $0x8] sm:$0x7f]
      %v1670 = vrot.slane %v536, 7
      %v1671 = vrot.slane %v652, 6
      %v1672 = vsel %vm900, %v1671, %v1670
      %v1673 = vrot.slane %v768, 5
      %v1674 = vsel %vm902, %v1673, %v1672
      %v1675 = vrot.slane %v884, 4
      %v1676 = vsel %vm904, %v1675, %v1674
      %v1677 = vsel %vm906, %v1676, 0
      %v1680 = vsel %vm909, %v1669, 0
      %1682 = vmatprep.subr.mxu0 0.0
      %1683 = vmatpush1.msra.mxu0 %v1668
      %1684 = vmatprep.subr.mxu0 0.0
      %1685 = vmatpush1.msra.mxu0 %v1680
      %1686 = vmatprep.subr.mxu0 0.0
      %1687 = vmatpush1.msra.mxu0 0.0
      %1688 = vmatprep.subr.mxu0 0.0
      %1689 = vmatpush1.msra.mxu0 0.0
      %1690 = vmatprep.subr.mxu0 0.0
      %1691 = vmatpush1.msra.mxu0 0.0
      %1692 = vmatprep.subr.mxu0 0.0
      %1693 = vmatpush1.msra.mxu0 0.0
      %1694 = vmatprep.subr.mxu0 0.0
      %1695 = vmatpush1.msra.mxu0 0.0
      %1696 = vmatprep.subr.mxu0 0.0
      %1697 = vmatpush1.msra.mxu0 0.0
      %1698 = vmatprep.subr.mxu0 0.0
      %1699 = vmatpush1.msra.mxu0 0.0
      %1700 = vmatprep.subr.mxu0 0.0
      %1701 = vmatpush1.msra.mxu0 0.0
      %1702 = vmatprep.subr.mxu0 0.0
      %1703 = vmatpush1.msra.mxu0 0.0
      %1704 = vmatprep.subr.mxu0 0.0
      %1705 = vmatpush1.msra.mxu0 0.0
      %1706 = vmatprep.subr.mxu0 0.0
      %1707 = vmatpush1.msra.mxu0 0.0
      %1708 = vmatprep.subr.mxu0 0.0
      %1709 = vmatpush1.msra.mxu0 0.0
      %1710 = vmatprep.subr.mxu0 0.0
      %1711 = vmatpush1.msra.mxu0 0.0
      %1712 = vmatprep.subr.mxu0 0.0
      %1713 = vmatpush1.msra.mxu0 0.0
      %1714 = vmatprep.subr.mxu0 0.0
      %1715 = vmatpush1.msra.mxu0 0.0
      %1716 = vmatprep.subr.mxu0 0.0
      %1717 = vmatpush1.msra.mxu0 0.0
      %1718 = vmatprep.subr.mxu0 0.0
      %1719 = vmatpush1.msra.mxu0 0.0
      %1720 = vmatprep.subr.mxu0 0.0
      %1721 = vmatpush1.msra.mxu0 0.0
      %1722 = vmatprep.subr.mxu0 0.0
      %1723 = vmatpush1.msra.mxu0 0.0
      %1724 = vmatprep.subr.mxu0 0.0
      %1725 = vmatpush1.msra.mxu0 0.0
      %1726 = vmatprep.subr.mxu0 0.0
      %1727 = vmatpush1.msra.mxu0 0.0
      %1728 = vmatprep.subr.mxu0 0.0
      %1729 = vmatpush1.msra.mxu0 0.0
      %1730 = vmatprep.subr.mxu0 0.0
      %1731 = vmatpush1.msra.mxu0 0.0
      %1732 = vmatprep.subr.mxu0 0.0
      %1733 = vmatpush1.msra.mxu0 0.0
      %1734 = vmatprep.subr.mxu0 0.0
      %1735 = vmatpush1.msra.mxu0 0.0
      %1736 = vmatprep.subr.mxu0 0.0
      %1737 = vmatpush1.msra.mxu0 0.0
      %1738 = vmatprep.subr.mxu0 0.0
      %1739 = vmatpush1.msra.mxu0 0.0
      %1740 = vmatprep.subr.mxu0 0.0
      %1741 = vmatpush1.msra.mxu0 0.0
      %1742 = vmatprep.subr.mxu0 0.0
      %1743 = vmatpush1.msra.mxu0 0.0
      %1744 = vmatprep.subr.mxu0 0.0
      %1745 = vmatpush1.msra.mxu0 0.0
      %1746 = vmatprep.mubr.f32.mxu0 0.0
      %1747 = vmatmul.mubr.f32.gmra.mrb[0].mxu0 %v1677
      %v1748 = vpop.f32.mrb[0].mxu0
      %v1749 = vadd.f32 0.0, %v1748
      %v1750 = vpop.f32.mrb[0].mxu0
      %1751 = vdwg.mxu0
      %v1752 = vadd.f32 %v1666, %v1749
      %s1753 = scalar_lea.vmem %s7, 128
      %v1754 = vld [vmem:[%s1753] sm:$0xff]
      %v1755 = vld [vmem:[%s1753 + $0x8] sm:$0x7f]
      %v1760 = vrot.slane %v657, 7
      %v1761 = vsel %vm900, %v1760, %v541
      %v1762 = vrot.slane %v773, 6
      %v1763 = vsel %vm902, %v1762, %v1761
      %v1764 = vrot.slane %v889, 5
      %v1765 = vsel %vm904, %v1764, %v1763
      %v1766 = vsel %vm906, %v1765, 0
      %v1769 = vsel %vm909, %v1755, 0
      %1771 = vmatprep.subr.mxu0 0.0
      %1772 = vmatpush1.msra.mxu0 %v1754
      %1773 = vmatprep.subr.mxu0 0.0
      %1774 = vmatpush1.msra.mxu0 %v1769
      %1775 = vmatprep.subr.mxu0 0.0
      %1776 = vmatpush1.msra.mxu0 0.0
      %1777 = vmatprep.subr.mxu0 0.0
      %1778 = vmatpush1.msra.mxu0 0.0
      %1779 = vmatprep.subr.mxu0 0.0
      %1780 = vmatpush1.msra.mxu0 0.0
      %1781 = vmatprep.subr.mxu0 0.0
      %1782 = vmatpush1.msra.mxu0 0.0
      %1783 = vmatprep.subr.mxu0 0.0
      %1784 = vmatpush1.msra.mxu0 0.0
      %1785 = vmatprep.subr.mxu0 0.0
      %1786 = vmatpush1.msra.mxu0 0.0
      %1787 = vmatprep.subr.mxu0 0.0
      %1788 = vmatpush1.msra.mxu0 0.0
      %1789 = vmatprep.subr.mxu0 0.0
      %1790 = vmatpush1.msra.mxu0 0.0
      %1791 = vmatprep.subr.mxu0 0.0
      %1792 = vmatpush1.msra.mxu0 0.0
      %1793 = vmatprep.subr.mxu0 0.0
      %1794 = vmatpush1.msra.mxu0 0.0
      %1795 = vmatprep.subr.mxu0 0.0
      %1796 = vmatpush1.msra.mxu0 0.0
      %1797 = vmatprep.subr.mxu0 0.0
      %1798 = vmatpush1.msra.mxu0 0.0
      %1799 = vmatprep.subr.mxu0 0.0
      %1800 = vmatpush1.msra.mxu0 0.0
      %1801 = vmatprep.subr.mxu0 0.0
      %1802 = vmatpush1.msra.mxu0 0.0
      %1803 = vmatprep.subr.mxu0 0.0
      %1804 = vmatpush1.msra.mxu0 0.0
      %1805 = vmatprep.subr.mxu0 0.0
      %1806 = vmatpush1.msra.mxu0 0.0
      %1807 = vmatprep.subr.mxu0 0.0
      %1808 = vmatpush1.msra.mxu0 0.0
      %1809 = vmatprep.subr.mxu0 0.0
      %1810 = vmatpush1.msra.mxu0 0.0
      %1811 = vmatprep.subr.mxu0 0.0
      %1812 = vmatpush1.msra.mxu0 0.0
      %1813 = vmatprep.subr.mxu0 0.0
      %1814 = vmatpush1.msra.mxu0 0.0
      %1815 = vmatprep.subr.mxu0 0.0
      %1816 = vmatpush1.msra.mxu0 0.0
      %1817 = vmatprep.subr.mxu0 0.0
      %1818 = vmatpush1.msra.mxu0 0.0
      %1819 = vmatprep.subr.mxu0 0.0
      %1820 = vmatpush1.msra.mxu0 0.0
      %1821 = vmatprep.subr.mxu0 0.0
      %1822 = vmatpush1.msra.mxu0 0.0
      %1823 = vmatprep.subr.mxu0 0.0
      %1824 = vmatpush1.msra.mxu0 0.0
      %1825 = vmatprep.subr.mxu0 0.0
      %1826 = vmatpush1.msra.mxu0 0.0
      %1827 = vmatprep.subr.mxu0 0.0
      %1828 = vmatpush1.msra.mxu0 0.0
      %1829 = vmatprep.subr.mxu0 0.0
      %1830 = vmatpush1.msra.mxu0 0.0
      %1831 = vmatprep.subr.mxu0 0.0
      %1832 = vmatpush1.msra.mxu0 0.0
      %1833 = vmatprep.subr.mxu0 0.0
      %1834 = vmatpush1.msra.mxu0 0.0
      %1835 = vmatprep.mubr.f32.mxu0 0.0
      %1836 = vmatmul.mubr.f32.gmra.mrb[0].mxu0 %v1766
      %v1837 = vpop.f32.mrb[0].mxu0
      %v1838 = vadd.f32 0.0, %v1837
      %v1839 = vpop.f32.mrb[0].mxu0
      %1840 = vdwg.mxu0
      %v1841 = vadd.f32 %v1752, %v1838
      %s1842 = scalar_lea.vmem %s7, 144
      %v1843 = vld [vmem:[%s1842] sm:$0xff]
      %v1844 = vld [vmem:[%s1842 + $0x8] sm:$0x7f]
      %v1845 = vrot.slane %v541, 1
      %v1846 = vsel %vm900, %v657, %v1845
      %v1847 = vrot.slane %v773, 7
      %v1848 = vsel %vm902, %v1847, %v1846
      %v1849 = vrot.slane %v889, 6
      %v1850 = vsel %vm904, %v1849, %v1848
      %v1851 = vsel %vm906, %v1850, 0
      %v1854 = vsel %vm909, %v1844, 0
      %1856 = vmatprep.subr.mxu0 0.0
      %1857 = vmatpush1.msra.mxu0 %v1843
      %1858 = vmatprep.subr.mxu0 0.0
      %1859 = vmatpush1.msra.mxu0 %v1854
      %1860 = vmatprep.subr.mxu0 0.0
      %1861 = vmatpush1.msra.mxu0 0.0
      %1862 = vmatprep.subr.mxu0 0.0
      %1863 = vmatpush1.msra.mxu0 0.0
      %1864 = vmatprep.subr.mxu0 0.0
      %1865 = vmatpush1.msra.mxu0 0.0
      %1866 = vmatprep.subr.mxu0 0.0
      %1867 = vmatpush1.msra.mxu0 0.0
      %1868 = vmatprep.subr.mxu0 0.0
      %1869 = vmatpush1.msra.mxu0 0.0
      %1870 = vmatprep.subr.mxu0 0.0
      %1871 = vmatpush1.msra.mxu0 0.0
      %1872 = vmatprep.subr.mxu0 0.0
      %1873 = vmatpush1.msra.mxu0 0.0
      %1874 = vmatprep.subr.mxu0 0.0
      %1875 = vmatpush1.msra.mxu0 0.0
      %1876 = vmatprep.subr.mxu0 0.0
      %1877 = vmatpush1.msra.mxu0 0.0
      %1878 = vmatprep.subr.mxu0 0.0
      %1879 = vmatpush1.msra.mxu0 0.0
      %1880 = vmatprep.subr.mxu0 0.0
      %1881 = vmatpush1.msra.mxu0 0.0
      %1882 = vmatprep.subr.mxu0 0.0
      %1883 = vmatpush1.msra.mxu0 0.0
      %1884 = vmatprep.subr.mxu0 0.0
      %1885 = vmatpush1.msra.mxu0 0.0
      %1886 = vmatprep.subr.mxu0 0.0
      %1887 = vmatpush1.msra.mxu0 0.0
      %1888 = vmatprep.subr.mxu0 0.0
      %1889 = vmatpush1.msra.mxu0 0.0
      %1890 = vmatprep.subr.mxu0 0.0
      %1891 = vmatpush1.msra.mxu0 0.0
      %1892 = vmatprep.subr.mxu0 0.0
      %1893 = vmatpush1.msra.mxu0 0.0
      %1894 = vmatprep.subr.mxu0 0.0
      %1895 = vmatpush1.msra.mxu0 0.0
      %1896 = vmatprep.subr.mxu0 0.0
      %1897 = vmatpush1.msra.mxu0 0.0
      %1898 = vmatprep.subr.mxu0 0.0
      %1899 = vmatpush1.msra.mxu0 0.0
      %1900 = vmatprep.subr.mxu0 0.0
      %1901 = vmatpush1.msra.mxu0 0.0
      %1902 = vmatprep.subr.mxu0 0.0
      %1903 = vmatpush1.msra.mxu0 0.0
      %1904 = vmatprep.subr.mxu0 0.0
      %1905 = vmatpush1.msra.mxu0 0.0
      %1906 = vmatprep.subr.mxu0 0.0
      %1907 = vmatpush1.msra.mxu0 0.0
      %1908 = vmatprep.subr.mxu0 0.0
      %1909 = vmatpush1.msra.mxu0 0.0
      %1910 = vmatprep.subr.mxu0 0.0
      %1911 = vmatpush1.msra.mxu0 0.0
      %1912 = vmatprep.subr.mxu0 0.0
      %1913 = vmatpush1.msra.mxu0 0.0
      %1914 = vmatprep.subr.mxu0 0.0
      %1915 = vmatpush1.msra.mxu0 0.0
      %1916 = vmatprep.subr.mxu0 0.0
      %1917 = vmatpush1.msra.mxu0 0.0
      %1918 = vmatprep.subr.mxu0 0.0
      %1919 = vmatpush1.msra.mxu0 0.0
      %1920 = vmatprep.mubr.f32.mxu0 0.0
      %1921 = vmatmul.mubr.f32.gmra.mrb[0].mxu0 %v1851
      %v1922 = vpop.f32.mrb[0].mxu0
      %v1923 = vadd.f32 0.0, %v1922
      %v1924 = vpop.f32.mrb[0].mxu0
      %1925 = vdwg.mxu0
      %v1926 = vadd.f32 %v1841, %v1923
      %s1927 = scalar_lea.vmem %s7, 160
      %v1928 = vld [vmem:[%s1927] sm:$0xff]
      %v1929 = vld [vmem:[%s1927 + $0x8] sm:$0x7f]
      %v1930 = vrot.slane %v541, 2
      %v1931 = vrot.slane %v657, 1
      %v1932 = vsel %vm900, %v1931, %v1930
      %v1933 = vsel %vm902, %v773, %v1932
      %v1934 = vrot.slane %v889, 7
      %v1935 = vsel %vm904, %v1934, %v1933
      %v1936 = vsel %vm906, %v1935, 0
      %v1939 = vsel %vm909, %v1929, 0
      %1941 = vmatprep.subr.mxu0 0.0
      %1942 = vmatpush1.msra.mxu0 %v1928
      %1943 = vmatprep.subr.mxu0 0.0
      %1944 = vmatpush1.msra.mxu0 %v1939
      %1945 = vmatprep.subr.mxu0 0.0
      %1946 = vmatpush1.msra.mxu0 0.0
      %1947 = vmatprep.subr.mxu0 0.0
      %1948 = vmatpush1.msra.mxu0 0.0
      %1949 = vmatprep.subr.mxu0 0.0
      %1950 = vmatpush1.msra.mxu0 0.0
      %1951 = vmatprep.subr.mxu0 0.0
      %1952 = vmatpush1.msra.mxu0 0.0
      %1953 = vmatprep.subr.mxu0 0.0
      %1954 = vmatpush1.msra.mxu0 0.0
      %1955 = vmatprep.subr.mxu0 0.0
      %1956 = vmatpush1.msra.mxu0 0.0
      %1957 = vmatprep.subr.mxu0 0.0
      %1958 = vmatpush1.msra.mxu0 0.0
      %1959 = vmatprep.subr.mxu0 0.0
      %1960 = vmatpush1.msra.mxu0 0.0
      %1961 = vmatprep.subr.mxu0 0.0
      %1962 = vmatpush1.msra.mxu0 0.0
      %1963 = vmatprep.subr.mxu0 0.0
      %1964 = vmatpush1.msra.mxu0 0.0
      %1965 = vmatprep.subr.mxu0 0.0
      %1966 = vmatpush1.msra.mxu0 0.0
      %1967 = vmatprep.subr.mxu0 0.0
      %1968 = vmatpush1.msra.mxu0 0.0
      %1969 = vmatprep.subr.mxu0 0.0
      %1970 = vmatpush1.msra.mxu0 0.0
      %1971 = vmatprep.subr.mxu0 0.0
      %1972 = vmatpush1.msra.mxu0 0.0
      %1973 = vmatprep.subr.mxu0 0.0
      %1974 = vmatpush1.msra.mxu0 0.0
      %1975 = vmatprep.subr.mxu0 0.0
      %1976 = vmatpush1.msra.mxu0 0.0
      %1977 = vmatprep.subr.mxu0 0.0
      %1978 = vmatpush1.msra.mxu0 0.0
      %1979 = vmatprep.subr.mxu0 0.0
      %1980 = vmatpush1.msra.mxu0 0.0
      %1981 = vmatprep.subr.mxu0 0.0
      %1982 = vmatpush1.msra.mxu0 0.0
      %1983 = vmatprep.subr.mxu0 0.0
      %1984 = vmatpush1.msra.mxu0 0.0
      %1985 = vmatprep.subr.mxu0 0.0
      %1986 = vmatpush1.msra.mxu0 0.0
      %1987 = vmatprep.subr.mxu0 0.0
      %1988 = vmatpush1.msra.mxu0 0.0
      %1989 = vmatprep.subr.mxu0 0.0
      %1990 = vmatpush1.msra.mxu0 0.0
      %1991 = vmatprep.subr.mxu0 0.0
      %1992 = vmatpush1.msra.mxu0 0.0
      %1993 = vmatprep.subr.mxu0 0.0
      %1994 = vmatpush1.msra.mxu0 0.0
      %1995 = vmatprep.subr.mxu0 0.0
      %1996 = vmatpush1.msra.mxu0 0.0
      %1997 = vmatprep.subr.mxu0 0.0
      %1998 = vmatpush1.msra.mxu0 0.0
      %1999 = vmatprep.subr.mxu0 0.0
      %2000 = vmatpush1.msra.mxu0 0.0
      %2001 = vmatprep.subr.mxu0 0.0
      %2002 = vmatpush1.msra.mxu0 0.0
      %2003 = vmatprep.subr.mxu0 0.0
      %2004 = vmatpush1.msra.mxu0 0.0
      %2005 = vmatprep.mubr.f32.mxu0 0.0
      %2006 = vmatmul.mubr.f32.gmra.mrb[0].mxu0 %v1936
      %v2007 = vpop.f32.mrb[0].mxu0
      %v2008 = vadd.f32 0.0, %v2007
      %v2009 = vpop.f32.mrb[0].mxu0
      %2010 = vdwg.mxu0
      %v2011 = vadd.f32 %v1926, %v2008
      %s2012 = scalar_lea.vmem %s7, 176
      %v2013 = vld [vmem:[%s2012] sm:$0xff]
      %v2014 = vld [vmem:[%s2012 + $0x8] sm:$0x7f]
      %v2015 = vrot.slane %v541, 3
      %v2016 = vrot.slane %v657, 2
      %v2017 = vsel %vm900, %v2016, %v2015
      %v2018 = vrot.slane %v773, 1
      %v2019 = vsel %vm902, %v2018, %v2017
      %v2020 = vsel %vm904, %v889, %v2019
      %v2021 = vsel %vm906, %v2020, 0
      %v2024 = vsel %vm909, %v2014, 0
      %2026 = vmatprep.subr.mxu0 0.0
      %2027 = vmatpush1.msra.mxu0 %v2013
      %2028 = vmatprep.subr.mxu0 0.0
      %2029 = vmatpush1.msra.mxu0 %v2024
      %2030 = vmatprep.subr.mxu0 0.0
      %2031 = vmatpush1.msra.mxu0 0.0
      %2032 = vmatprep.subr.mxu0 0.0
      %2033 = vmatpush1.msra.mxu0 0.0
      %2034 = vmatprep.subr.mxu0 0.0
      %2035 = vmatpush1.msra.mxu0 0.0
      %2036 = vmatprep.subr.mxu0 0.0
      %2037 = vmatpush1.msra.mxu0 0.0
      %2038 = vmatprep.subr.mxu0 0.0
      %2039 = vmatpush1.msra.mxu0 0.0
      %2040 = vmatprep.subr.mxu0 0.0
      %2041 = vmatpush1.msra.mxu0 0.0
      %2042 = vmatprep.subr.mxu0 0.0
      %2043 = vmatpush1.msra.mxu0 0.0
      %2044 = vmatprep.subr.mxu0 0.0
      %2045 = vmatpush1.msra.mxu0 0.0
      %2046 = vmatprep.subr.mxu0 0.0
      %2047 = vmatpush1.msra.mxu0 0.0
      %2048 = vmatprep.subr.mxu0 0.0
      %2049 = vmatpush1.msra.mxu0 0.0
      %2050 = vmatprep.subr.mxu0 0.0
      %2051 = vmatpush1.msra.mxu0 0.0
      %2052 = vmatprep.subr.mxu0 0.0
      %2053 = vmatpush1.msra.mxu0 0.0
      %2054 = vmatprep.subr.mxu0 0.0
      %2055 = vmatpush1.msra.mxu0 0.0
      %2056 = vmatprep.subr.mxu0 0.0
      %2057 = vmatpush1.msra.mxu0 0.0
      %2058 = vmatprep.subr.mxu0 0.0
      %2059 = vmatpush1.msra.mxu0 0.0
      %2060 = vmatprep.subr.mxu0 0.0
      %2061 = vmatpush1.msra.mxu0 0.0
      %2062 = vmatprep.subr.mxu0 0.0
      %2063 = vmatpush1.msra.mxu0 0.0
      %2064 = vmatprep.subr.mxu0 0.0
      %2065 = vmatpush1.msra.mxu0 0.0
      %2066 = vmatprep.subr.mxu0 0.0
      %2067 = vmatpush1.msra.mxu0 0.0
      %2068 = vmatprep.subr.mxu0 0.0
      %2069 = vmatpush1.msra.mxu0 0.0
      %2070 = vmatprep.subr.mxu0 0.0
      %2071 = vmatpush1.msra.mxu0 0.0
      %2072 = vmatprep.subr.mxu0 0.0
      %2073 = vmatpush1.msra.mxu0 0.0
      %2074 = vmatprep.subr.mxu0 0.0
      %2075 = vmatpush1.msra.mxu0 0.0
      %2076 = vmatprep.subr.mxu0 0.0
      %2077 = vmatpush1.msra.mxu0 0.0
      %2078 = vmatprep.subr.mxu0 0.0
      %2079 = vmatpush1.msra.mxu0 0.0
      %2080 = vmatprep.subr.mxu0 0.0
      %2081 = vmatpush1.msra.mxu0 0.0
      %2082 = vmatprep.subr.mxu0 0.0
      %2083 = vmatpush1.msra.mxu0 0.0
      %2084 = vmatprep.subr.mxu0 0.0
      %2085 = vmatpush1.msra.mxu0 0.0
      %2086 = vmatprep.subr.mxu0 0.0
      %2087 = vmatpush1.msra.mxu0 0.0
      %2088 = vmatprep.subr.mxu0 0.0
      %2089 = vmatpush1.msra.mxu0 0.0
      %2090 = vmatprep.mubr.f32.mxu0 0.0
      %2091 = vmatmul.mubr.f32.gmra.mrb[0].mxu0 %v2021
      %v2092 = vpop.f32.mrb[0].mxu0
      %v2093 = vadd.f32 0.0, %v2092
      %v2094 = vpop.f32.mrb[0].mxu0
      %2095 = vdwg.mxu0
      %v2096 = vadd.f32 %v2011, %v2093
      %s2097 = scalar_lea.vmem %s7, 192
      %v2098 = vld [vmem:[%s2097] sm:$0xff]
      %v2099 = vld [vmem:[%s2097 + $0x8] sm:$0x7f]
      %v2100 = vrot.slane %v541, 4
      %v2101 = vrot.slane %v657, 3
      %v2102 = vsel %vm900, %v2101, %v2100
      %v2103 = vrot.slane %v773, 2
      %v2104 = vsel %vm902, %v2103, %v2102
      %v2105 = vrot.slane %v889, 1
      %v2106 = vsel %vm904, %v2105, %v2104
      %v2107 = vsel %vm906, %v2106, 0
      %v2110 = vsel %vm909, %v2099, 0
      %2112 = vmatprep.subr.mxu0 0.0
      %2113 = vmatpush1.msra.mxu0 %v2098
      %2114 = vmatprep.subr.mxu0 0.0
      %2115 = vmatpush1.msra.mxu0 %v2110
      %2116 = vmatprep.subr.mxu0 0.0
      %2117 = vmatpush1.msra.mxu0 0.0
      %2118 = vmatprep.subr.mxu0 0.0
      %2119 = vmatpush1.msra.mxu0 0.0
      %2120 = vmatprep.subr.mxu0 0.0
      %2121 = vmatpush1.msra.mxu0 0.0
      %2122 = vmatprep.subr.mxu0 0.0
      %2123 = vmatpush1.msra.mxu0 0.0
      %2124 = vmatprep.subr.mxu0 0.0
      %2125 = vmatpush1.msra.mxu0 0.0
      %2126 = vmatprep.subr.mxu0 0.0
      %2127 = vmatpush1.msra.mxu0 0.0
      %2128 = vmatprep.subr.mxu0 0.0
      %2129 = vmatpush1.msra.mxu0 0.0
      %2130 = vmatprep.subr.mxu0 0.0
      %2131 = vmatpush1.msra.mxu0 0.0
      %2132 = vmatprep.subr.mxu0 0.0
      %2133 = vmatpush1.msra.mxu0 0.0
      %2134 = vmatprep.subr.mxu0 0.0
      %2135 = vmatpush1.msra.mxu0 0.0
      %2136 = vmatprep.subr.mxu0 0.0
      %2137 = vmatpush1.msra.mxu0 0.0
      %2138 = vmatprep.subr.mxu0 0.0
      %2139 = vmatpush1.msra.mxu0 0.0
      %2140 = vmatprep.subr.mxu0 0.0
      %2141 = vmatpush1.msra.mxu0 0.0
      %2142 = vmatprep.subr.mxu0 0.0
      %2143 = vmatpush1.msra.mxu0 0.0
      %2144 = vmatprep.subr.mxu0 0.0
      %2145 = vmatpush1.msra.mxu0 0.0
      %2146 = vmatprep.subr.mxu0 0.0
      %2147 = vmatpush1.msra.mxu0 0.0
      %2148 = vmatprep.subr.mxu0 0.0
      %2149 = vmatpush1.msra.mxu0 0.0
      %2150 = vmatprep.subr.mxu0 0.0
      %2151 = vmatpush1.msra.mxu0 0.0
      %2152 = vmatprep.subr.mxu0 0.0
      %2153 = vmatpush1.msra.mxu0 0.0
      %2154 = vmatprep.subr.mxu0 0.0
      %2155 = vmatpush1.msra.mxu0 0.0
      %2156 = vmatprep.subr.mxu0 0.0
      %2157 = vmatpush1.msra.mxu0 0.0
      %2158 = vmatprep.subr.mxu0 0.0
      %2159 = vmatpush1.msra.mxu0 0.0
      %2160 = vmatprep.subr.mxu0 0.0
      %2161 = vmatpush1.msra.mxu0 0.0
      %2162 = vmatprep.subr.mxu0 0.0
      %2163 = vmatpush1.msra.mxu0 0.0
      %2164 = vmatprep.subr.mxu0 0.0
      %2165 = vmatpush1.msra.mxu0 0.0
      %2166 = vmatprep.subr.mxu0 0.0
      %2167 = vmatpush1.msra.mxu0 0.0
      %2168 = vmatprep.subr.mxu0 0.0
      %2169 = vmatpush1.msra.mxu0 0.0
      %2170 = vmatprep.subr.mxu0 0.0
      %2171 = vmatpush1.msra.mxu0 0.0
      %2172 = vmatprep.subr.mxu0 0.0
      %2173 = vmatpush1.msra.mxu0 0.0
      %2174 = vmatprep.subr.mxu0 0.0
      %2175 = vmatpush1.msra.mxu0 0.0
      %2176 = vmatprep.mubr.f32.mxu0 0.0
      %2177 = vmatmul.mubr.f32.gmra.mrb[0].mxu0 %v2107
      %v2178 = vpop.f32.mrb[0].mxu0
      %v2179 = vadd.f32 0.0, %v2178
      %v2180 = vpop.f32.mrb[0].mxu0
      %2181 = vdwg.mxu0
      %v2182 = vadd.f32 %v2096, %v2179
      %s2183 = scalar_lea.vmem %s7, 208
      %v2184 = vld [vmem:[%s2183] sm:$0xff]
      %v2185 = vld [vmem:[%s2183 + $0x8] sm:$0x7f]
      %v2186 = vrot.slane %v541, 5
      %v2187 = vrot.slane %v657, 4
      %v2188 = vsel %vm900, %v2187, %v2186
      %v2189 = vrot.slane %v773, 3
      %v2190 = vsel %vm902, %v2189, %v2188
      %v2191 = vrot.slane %v889, 2
      %v2192 = vsel %vm904, %v2191, %v2190
      %v2193 = vsel %vm906, %v2192, 0
      %v2196 = vsel %vm909, %v2185, 0
      %2198 = vmatprep.subr.mxu0 0.0
      %2199 = vmatpush1.msra.mxu0 %v2184
      %2200 = vmatprep.subr.mxu0 0.0
      %2201 = vmatpush1.msra.mxu0 %v2196
      %2202 = vmatprep.subr.mxu0 0.0
      %2203 = vmatpush1.msra.mxu0 0.0
      %2204 = vmatprep.subr.mxu0 0.0
      %2205 = vmatpush1.msra.mxu0 0.0
      %2206 = vmatprep.subr.mxu0 0.0
      %2207 = vmatpush1.msra.mxu0 0.0
      %2208 = vmatprep.subr.mxu0 0.0
      %2209 = vmatpush1.msra.mxu0 0.0
      %2210 = vmatprep.subr.mxu0 0.0
      %2211 = vmatpush1.msra.mxu0 0.0
      %2212 = vmatprep.subr.mxu0 0.0
      %2213 = vmatpush1.msra.mxu0 0.0
      %2214 = vmatprep.subr.mxu0 0.0
      %2215 = vmatpush1.msra.mxu0 0.0
      %2216 = vmatprep.subr.mxu0 0.0
      %2217 = vmatpush1.msra.mxu0 0.0
      %2218 = vmatprep.subr.mxu0 0.0
      %2219 = vmatpush1.msra.mxu0 0.0
      %2220 = vmatprep.subr.mxu0 0.0
      %2221 = vmatpush1.msra.mxu0 0.0
      %2222 = vmatprep.subr.mxu0 0.0
      %2223 = vmatpush1.msra.mxu0 0.0
      %2224 = vmatprep.subr.mxu0 0.0
      %2225 = vmatpush1.msra.mxu0 0.0
      %2226 = vmatprep.subr.mxu0 0.0
      %2227 = vmatpush1.msra.mxu0 0.0
      %2228 = vmatprep.subr.mxu0 0.0
      %2229 = vmatpush1.msra.mxu0 0.0
      %2230 = vmatprep.subr.mxu0 0.0
      %2231 = vmatpush1.msra.mxu0 0.0
      %2232 = vmatprep.subr.mxu0 0.0
      %2233 = vmatpush1.msra.mxu0 0.0
      %2234 = vmatprep.subr.mxu0 0.0
      %2235 = vmatpush1.msra.mxu0 0.0
      %2236 = vmatprep.subr.mxu0 0.0
      %2237 = vmatpush1.msra.mxu0 0.0
      %2238 = vmatprep.subr.mxu0 0.0
      %2239 = vmatpush1.msra.mxu0 0.0
      %2240 = vmatprep.subr.mxu0 0.0
      %2241 = vmatpush1.msra.mxu0 0.0
      %2242 = vmatprep.subr.mxu0 0.0
      %2243 = vmatpush1.msra.mxu0 0.0
      %2244 = vmatprep.subr.mxu0 0.0
      %2245 = vmatpush1.msra.mxu0 0.0
      %2246 = vmatprep.subr.mxu0 0.0
      %2247 = vmatpush1.msra.mxu0 0.0
      %2248 = vmatprep.subr.mxu0 0.0
      %2249 = vmatpush1.msra.mxu0 0.0
      %2250 = vmatprep.subr.mxu0 0.0
      %2251 = vmatpush1.msra.mxu0 0.0
      %2252 = vmatprep.subr.mxu0 0.0
      %2253 = vmatpush1.msra.mxu0 0.0
      %2254 = vmatprep.subr.mxu0 0.0
      %2255 = vmatpush1.msra.mxu0 0.0
      %2256 = vmatprep.subr.mxu0 0.0
      %2257 = vmatpush1.msra.mxu0 0.0
      %2258 = vmatprep.subr.mxu0 0.0
      %2259 = vmatpush1.msra.mxu0 0.0
      %2260 = vmatprep.subr.mxu0 0.0
      %2261 = vmatpush1.msra.mxu0 0.0
      %2262 = vmatprep.mubr.f32.mxu0 0.0
      %2263 = vmatmul.mubr.f32.gmra.mrb[0].mxu0 %v2193
      %v2264 = vpop.f32.mrb[0].mxu0
      %v2265 = vadd.f32 0.0, %v2264
      %v2266 = vpop.f32.mrb[0].mxu0
      %2267 = vdwg.mxu0
      %v2268 = vadd.f32 %v2182, %v2265
      %s2269 = scalar_lea.vmem %s7, 224
      %v2270 = vld [vmem:[%s2269] sm:$0xff]
      %v2271 = vld [vmem:[%s2269 + $0x8] sm:$0x7f]
      %v2272 = vrot.slane %v541, 6
      %v2273 = vrot.slane %v657, 5
      %v2274 = vsel %vm900, %v2273, %v2272
      %v2275 = vrot.slane %v773, 4
      %v2276 = vsel %vm902, %v2275, %v2274
      %v2277 = vrot.slane %v889, 3
      %v2278 = vsel %vm904, %v2277, %v2276
      %v2279 = vsel %vm906, %v2278, 0
      %v2282 = vsel %vm909, %v2271, 0
      %2284 = vmatprep.subr.mxu0 0.0
      %2285 = vmatpush1.msra.mxu0 %v2270
      %2286 = vmatprep.subr.mxu0 0.0
      %2287 = vmatpush1.msra.mxu0 %v2282
      %2288 = vmatprep.subr.mxu0 0.0
      %2289 = vmatpush1.msra.mxu0 0.0
      %2290 = vmatprep.subr.mxu0 0.0
      %2291 = vmatpush1.msra.mxu0 0.0
      %2292 = vmatprep.subr.mxu0 0.0
      %2293 = vmatpush1.msra.mxu0 0.0
      %2294 = vmatprep.subr.mxu0 0.0
      %2295 = vmatpush1.msra.mxu0 0.0
      %2296 = vmatprep.subr.mxu0 0.0
      %2297 = vmatpush1.msra.mxu0 0.0
      %2298 = vmatprep.subr.mxu0 0.0
      %2299 = vmatpush1.msra.mxu0 0.0
      %2300 = vmatprep.subr.mxu0 0.0
      %2301 = vmatpush1.msra.mxu0 0.0
      %2302 = vmatprep.subr.mxu0 0.0
      %2303 = vmatpush1.msra.mxu0 0.0
      %2304 = vmatprep.subr.mxu0 0.0
      %2305 = vmatpush1.msra.mxu0 0.0
      %2306 = vmatprep.subr.mxu0 0.0
      %2307 = vmatpush1.msra.mxu0 0.0
      %2308 = vmatprep.subr.mxu0 0.0
      %2309 = vmatpush1.msra.mxu0 0.0
      %2310 = vmatprep.subr.mxu0 0.0
      %2311 = vmatpush1.msra.mxu0 0.0
      %2312 = vmatprep.subr.mxu0 0.0
      %2313 = vmatpush1.msra.mxu0 0.0
      %2314 = vmatprep.subr.mxu0 0.0
      %2315 = vmatpush1.msra.mxu0 0.0
      %2316 = vmatprep.subr.mxu0 0.0
      %2317 = vmatpush1.msra.mxu0 0.0
      %2318 = vmatprep.subr.mxu0 0.0
      %2319 = vmatpush1.msra.mxu0 0.0
      %2320 = vmatprep.subr.mxu0 0.0
      %2321 = vmatpush1.msra.mxu0 0.0
      %2322 = vmatprep.subr.mxu0 0.0
      %2323 = vmatpush1.msra.mxu0 0.0
      %2324 = vmatprep.subr.mxu0 0.0
      %2325 = vmatpush1.msra.mxu0 0.0
      %2326 = vmatprep.subr.mxu0 0.0
      %2327 = vmatpush1.msra.mxu0 0.0
      %2328 = vmatprep.subr.mxu0 0.0
      %2329 = vmatpush1.msra.mxu0 0.0
      %2330 = vmatprep.subr.mxu0 0.0
      %2331 = vmatpush1.msra.mxu0 0.0
      %2332 = vmatprep.subr.mxu0 0.0
      %2333 = vmatpush1.msra.mxu0 0.0
      %2334 = vmatprep.subr.mxu0 0.0
      %2335 = vmatpush1.msra.mxu0 0.0
      %2336 = vmatprep.subr.mxu0 0.0
      %2337 = vmatpush1.msra.mxu0 0.0
      %2338 = vmatprep.subr.mxu0 0.0
      %2339 = vmatpush1.msra.mxu0 0.0
      %2340 = vmatprep.subr.mxu0 0.0
      %2341 = vmatpush1.msra.mxu0 0.0
      %2342 = vmatprep.subr.mxu0 0.0
      %2343 = vmatpush1.msra.mxu0 0.0
      %2344 = vmatprep.subr.mxu0 0.0
      %2345 = vmatpush1.msra.mxu0 0.0
      %2346 = vmatprep.subr.mxu0 0.0
      %2347 = vmatpush1.msra.mxu0 0.0
      %2348 = vmatprep.mubr.f32.mxu0 0.0
      %2349 = vmatmul.mubr.f32.gmra.mrb[0].mxu0 %v2279
      %v2350 = vpop.f32.mrb[0].mxu0
      %v2351 = vadd.f32 0.0, %v2350
      %v2352 = vpop.f32.mrb[0].mxu0
      %2353 = vdwg.mxu0
      %v2354 = vadd.f32 %v2268, %v2351
      %v2355 = vmul.f32 %v2354, 0.5
      %v2356 = vadd.f32 %v1065, %v2355
      %vm2357 = vcmask 257024
      %2358 = vst.msk [vmem:[%s288] sm:$0xf] %vm2357, %v2356
      %2360 = vrot.lane.b32.xlu0 %v2356, 96
      %v2361 = vpop.permute.xlu0 %2360
      %s2363 = scalar_lea.vmem %s288, 4
      %2364 = vst.msk [vmem:[%s2363] sm:$0xf] %vm2357, %v2361
      %2365 = vrot.lane.b32.xlu0 %v2356, 64
      %v2366 = vpop.permute.xlu0 %2365
      %s2368 = scalar_lea.vmem %s288, 8
      %2369 = vst.msk [vmem:[%s2368] sm:$0xf] %vm2357, %v2366
      %2370 = vrot.lane.b32.xlu0 %v2356, 32
      %v2371 = vpop.permute.xlu0 %2370
      %s2373 = scalar_lea.vmem %s288, 12
      %2374 = vst.msk [vmem:[%s2373] sm:$0xf] %vm2357, %v2371
      %p2375 = scmp.lt.s32.totalorder %s34, 3
      %s2376 = scalar_select %p2375, %s34, 3
      %p2377 = scmp.lt.s32.totalorder %s33, 0
      %s2378 = scalar_select %p2377, %s33, 0
      %s2379 = smul.addr %s2376, 4
      %s2380 = sadd.s32 %s2378, %s2379
      %s2381 = smul.addr %s2380, 4
      %s2382 = scalar_lea.vmem %s8, %s2381
      // Predicated region
      $region45: #{logsigrnn_forward.5} parent=43 // pred_check
        %p2383 = pneg %p192
      $region46: #{logsigrnn_forward.5} parent=43 // pred_check_branch
        %2385 = sbr.rel (%p2383) target = $region48
      $region47: #{logsigrnn_forward.5} parent=43 // pred_region
        _
      $region48: #{logsigrnn_forward.5} parent=43 // pred_fallthru
        _
    $region44: #{logsigrnn_forward.5} parent=5 // pred_fallthru
      _
    %p2386 = scmp.le.s32.totalorder 2, %s24
    // Predicated region
    $region49: #{logsigrnn_forward.5} parent=5 // pred_check
      %p2387 = pneg %p2386
    $region50: #{logsigrnn_forward.5} parent=5 // pred_check_branch
      %2389 = sbr.rel (%p2387) target = $region52
    $region51: #{logsigrnn_forward.5} parent=5 // pred_region
      %s2390 = ssub.s32 %s24, 2
      // Predicated region
      $region53: #{logsigrnn_forward.5} parent=51 // pred_check
        %p2391 = pneg %p198
      $region54: #{logsigrnn_forward.5} parent=51 // pred_check_branch
        %2393 = sbr.rel (%p2391) target = $region56
      $region55: #{logsigrnn_forward.5} parent=51 // pred_region
        %p2394 = scmp.lt.s32.totalorder %s36, 3
        %s2395 = scalar_select %p2394, %s36, 3
        %p2396 = scmp.lt.s32.totalorder %s35, 0
        %s2397 = scalar_select %p2396, %s35, 0
        %s2398 = smul.addr %s2395, 4
        %s2399 = sadd.s32 %s2397, %s2398
        %s2400 = smul.addr %s2399, 4
        %s2401 = scalar_lea.vmem %s8, %s2400
      $region56: #{logsigrnn_forward.5} parent=51 // pred_fallthru
        _
    $region52: #{logsigrnn_forward.5} parent=5 // pred_fallthru
      _
  $region6: #{logsigrnn_forward.5} parent=0 // loop_footer
    %s28 = sadd.s32 1, %s24
  $region7: #{logsigrnn_forward.5} parent=0 // loop_footer_branch
    %23 = sbr.rel target = $region3
  $region8: #{logsigrnn_forward.5} parent=0 // loop_exit
    _

</llo_original>
